<compile_context>
chip_gen: v5e
topology: v5e:2x2
jax: 0.10.0
libtpu: 0.0.40
codegen_flags: <defaults>
</compile_context>

<pallas_src>
import functools

import jax
import jax.numpy as jnp
import numpy as np
from jax.experimental import pallas as pl
from jax.experimental.pallas import tpu as pltpu


def bottleneck_kernel(x_ref, w1_ref, w2_ref, w3_ref, bn_ref, msk_ref, out_ref, *, img_w):
    # x_ref   : (Cin, NHW)  f32  input, channels-in-sublane / pixels-in-lane (Cin = 4*P)
    # w1_ref  : (P, Cin)    f32  conv1 1x1 weights (O, I)
    # w2_ref  : (P, 9*P)    f32  conv2 3x3 weights, (O, KH*KW*I) with tap t = dy*3+dx
    # w3_ref  : (Cout, P)   f32  conv3 1x1 weights (O, I), Cout = 4*P
    # bn_ref  : (Cout, 8)   f32  columns: g1,b1,g2,b2,g3,b3,0,0 (rows >= P unused for bn1/bn2)
    # msk_ref : (9, NHW)    f32  per-tap validity mask (1 inside image, 0 in the zero halo)
    # out_ref : (Cout, NHW) f32  lane-dense output slab
    Cin, NHW = x_ref.shape
    P = w1_ref.shape[0]
    eps = 1e-5
    inv_n = 1.0 / NHW
    HIGH = jax.lax.Precision.HIGHEST

    bnv = bn_ref[...]            # (Cout, 8) tiny, load once
    msk = msk_ref[...]           # (9, NHW)

    def bn_act(h, g, b, relu=True):
        # training-mode batch stats in one pass (biased variance), f32 accumulation
        s = jnp.sum(h, axis=1, keepdims=True)
        ss = jnp.sum(h * h, axis=1, keepdims=True)
        m = s * inv_n
        v = ss * inv_n - m * m
        h = (h - m) * jax.lax.rsqrt(v + eps) * g + b
        return jnp.maximum(h, 0.0) if relu else h

    # single load of x: conv1 operand AND f32 residual (same layout as the output)
    x = x_ref[...]                                                          # (Cin, NHW)

    # ---------- conv1 (1x1): (P, Cin) @ (Cin, NHW) ----------
    h1 = jnp.dot(w1_ref[...], x, preferred_element_type=jnp.float32, precision=HIGH)
    a1 = bn_act(h1, bnv[:P, 0:1], bnv[:P, 1:2])                             # (P, NHW)

    # ---------- conv2 (3x3, stride 1, pad 1) ----------
    # nine lane-rolled + halo-masked copies of a1, concatenated along the SUBLANE axis
    # (no padded scratch, no lane-offset masked stores), then one K=9P matmul.
    taps = []
    t = 0
    for dy in range(3):
        for dx in range(3):
            s_off = (dy - 1) * img_w + (dx - 1)
            if s_off == 0:
                taps.append(a1)
            else:
                taps.append(jnp.roll(a1, -s_off, axis=1) * msk[t:t + 1, :])
            t += 1
    cat = jnp.concatenate(taps, axis=0)                                     # (9P, NHW)
    h2 = jnp.dot(w2_ref[...], cat, preferred_element_type=jnp.float32, precision=HIGH)
    a2 = bn_act(h2, bnv[:P, 2:3], bnv[:P, 3:4])                             # (P, NHW)

    # ---------- conv3 (1x1): (Cout, P) @ (P, NHW) ----------
    h3 = jnp.dot(w3_ref[...], a2, preferred_element_type=jnp.float32, precision=HIGH)
    h3 = bn_act(h3, bnv[:, 4:5], bnv[:, 5:6], relu=False)                   # (Cout, NHW)

    # ---------- residual add + relu, full-width unmasked store ----------
    out_ref[...] = jnp.maximum(h3 + x, 0.0)


def _conv2_halo_masks(n, h, w):
    """(9, n*h*w) f32 masks: 1 where the 3x3 tap hits a real pixel, 0 in the zero halo."""
    yy, xx = np.meshgrid(np.arange(h), np.arange(w), indexing="ij")
    rows = []
    for dy in range(3):
        for dx in range(3):
            oy, ox = dy - 1, dx - 1
            valid = ((yy + oy >= 0) & (yy + oy < h) &
                     (xx + ox >= 0) & (xx + ox < w)).astype(np.float32)
            rows.append(np.tile(valid.reshape(-1), n))
    return np.stack(rows, axis=0)


def bottleneck_forward(x_nchw, w1_oihw, w2_oihw, w3_oihw, g1, b1, g2, b2, g3, b3):
    """Pallas implementation of Bottleneck.forward (stride=1, dilation=1, no downsample)."""
    N, Cin, H, W = x_nchw.shape
    P = w1_oihw.shape[0]            # planes
    Cout = w3_oihw.shape[0]         # planes * 4
    assert Cin == Cout == 4 * P, "downsample=None requires inplanes == planes * expansion"
    NHW = N * H * W

    # channels-in-sublane / pixels-in-lane slab (layout plumbing stays in the wrapper)
    x_t = jnp.transpose(x_nchw, (1, 0, 2, 3)).reshape(Cin, NHW).astype(jnp.float32)

    # torch OIHW -> matmul-ready (O, I) / (O, KH*KW*I), kept in f32
    w1 = w1_oihw[:, :, 0, 0].astype(jnp.float32)                              # (P, Cin)
    w2 = jnp.transpose(w2_oihw, (0, 2, 3, 1)).reshape(P, 9 * P).astype(jnp.float32)
    w3 = w3_oihw[:, :, 0, 0].astype(jnp.float32)                              # (Cout, P)

    def padc(v):  # pad per-channel BN params up to Cout rows
        return jnp.pad(v.astype(jnp.float32), (0, Cout - v.shape[0]))

    zeros = jnp.zeros((Cout,), jnp.float32)
    bn = jnp.stack([padc(g1), padc(b1), padc(g2), padc(b2),
                    g3.astype(jnp.float32), b3.astype(jnp.float32),
                    zeros, zeros], axis=1)                                    # (Cout, 8)

    masks = jnp.asarray(_conv2_halo_masks(N, H, W))                           # (9, NHW)

    kernel = functools.partial(bottleneck_kernel, img_w=W)
    out_t = pl.pallas_call(
        kernel,
        out_shape=jax.ShapeDtypeStruct((Cout, NHW), jnp.float32),
        grid=(1,),
        in_specs=[
            pl.BlockSpec((Cin, NHW), lambda i: (0, 0)),
            pl.BlockSpec((P, Cin), lambda i: (0, 0)),
            pl.BlockSpec((P, 9 * P), lambda i: (0, 0)),
            pl.BlockSpec((Cout, P), lambda i: (0, 0)),
            pl.BlockSpec((Cout, 8), lambda i: (0, 0)),
            pl.BlockSpec((9, NHW), lambda i: (0, 0)),
        ],
        out_specs=pl.BlockSpec((Cout, NHW), lambda i: (0, 0)),
        compiler_params=pltpu.CompilerParams(dimension_semantics=("arbitrary",)),
    )(x_t, w1, w2, w3, bn, masks)

    out = out_t.reshape(Cout, N, H, W)
    return jnp.transpose(out, (1, 0, 2, 3))                                   # -> NCHW


def bottleneck_reference(x, w1, w2, w3, g1, b1, g2, b2, g3, b3):
    """Pure-JAX reference mirroring the PyTorch forward (training-mode BN, f32)."""
    def conv(y, w, pad):
        return jax.lax.conv_general_dilated(
            y, w, window_strides=(1, 1), padding=((pad, pad), (pad, pad)),
            dimension_numbers=("NCHW", "OIHW", "NCHW"),
            precision=jax.lax.Precision.HIGHEST)

    def bn(y, g, b):
        m = jnp.mean(y, axis=(0, 2, 3), keepdims=True)
        v = jnp.mean((y - m) ** 2, axis=(0, 2, 3), keepdims=True)
        return (y - m) * jax.lax.rsqrt(v + 1e-5) * g.reshape(1, -1, 1, 1) + b.reshape(1, -1, 1, 1)

    out = jax.nn.relu(bn(conv(x, w1, 0), g1, b1))
    out = jax.nn.relu(bn(conv(out, w2, 1), g2, b2))
    out = bn(conv(out, w3, 0), g3, b3)
    return jax.nn.relu(out + x)


if __name__ == "__main__":
    # Bottleneck(inplanes=32, planes=8, stride=1, downsample=None, dilation=1)
    planes = 8
    inplanes = planes * 4
    N, H, W = 2, 16, 16

    key = jax.random.PRNGKey(0)
    kx, kw1, kw2, kw3, kg1, kb1, kg2, kb2, kg3, kb3 = jax.random.split(key, 10)

    x = jax.random.normal(kx, (N, inplanes, H, W), jnp.float32)                    # NCHW
    w1 = 0.1 * jax.random.normal(kw1, (planes, inplanes, 1, 1), jnp.float32)       # conv1
    w2 = 0.1 * jax.random.normal(kw2, (planes, planes, 3, 3), jnp.float32)         # conv2
    w3 = 0.1 * jax.random.normal(kw3, (inplanes, planes, 1, 1), jnp.float32)       # conv3
    g1 = 1.0 + 0.1 * jax.random.normal(kg1, (planes,), jnp.float32)
    b1 = 0.1 * jax.random.normal(kb1, (planes,), jnp.float32)
    g2 = 1.0 + 0.1 * jax.random.normal(kg2, (planes,), jnp.float32)
    b2 = 0.1 * jax.random.normal(kb2, (planes,), jnp.float32)
    g3 = 1.0 + 0.1 * jax.random.normal(kg3, (inplanes,), jnp.float32)
    b3 = 0.1 * jax.random.normal(kb3, (inplanes,), jnp.float32)

    out = bottleneck_forward(x, w1, w2, w3, g1, b1, g2, b2, g3, b3)
    out = jax.block_until_ready(out)

    ref = jax.block_until_ready(bottleneck_reference(x, w1, w2, w3, g1, b1, g2, b2, g3, b3))
    if not np.allclose(np.asarray(out), np.asarray(ref), rtol=1e-2, atol=1e-2):
        err = float(np.max(np.abs(np.asarray(out) - np.asarray(ref))))
        raise AssertionError(f"Pallas Bottleneck does not match reference (max abs err {err:.3e})")

    print("KERNEL_OK")
</pallas_src>

<mosaic_0001>
module attributes {stable_mosaic.version = 11 : i64} {
  func.func @bottleneck_kernel(%arg0: i32, %arg1: memref<32x512xf32, #tpu.memory_space<vmem>>, %arg2: memref<8x32xf32, #tpu.memory_space<vmem>>, %arg3: memref<8x72xf32, #tpu.memory_space<vmem>>, %arg4: memref<32x8xf32, #tpu.memory_space<vmem>>, %arg5: memref<32x8xf32, #tpu.memory_space<vmem>>, %arg6: memref<9x512xf32, #tpu.memory_space<vmem>>, %arg7: memref<32x512xf32, #tpu.memory_space<vmem>>) attributes {dimension_semantics = [#tpu.dimension_semantics<arbitrary>], iteration_bounds = array<i64: 1>, scalar_prefetch = 0 : i64, scratch_operands = 0 : i64, tpu.core_type = #tpu.core_type<tc>, window_params = [{pipeline_mode = #tpu.pipeline_mode<synchronous>, transform_indices = @transform_0, window_bounds = array<i64: 32, 512>}, {pipeline_mode = #tpu.pipeline_mode<synchronous>, transform_indices = @transform_1, window_bounds = array<i64: 8, 32>}, {pipeline_mode = #tpu.pipeline_mode<synchronous>, transform_indices = @transform_2, window_bounds = array<i64: 8, 72>}, {pipeline_mode = #tpu.pipeline_mode<synchronous>, transform_indices = @transform_3, window_bounds = array<i64: 32, 8>}, {pipeline_mode = #tpu.pipeline_mode<synchronous>, transform_indices = @transform_4, window_bounds = array<i64: 32, 8>}, {pipeline_mode = #tpu.pipeline_mode<synchronous>, transform_indices = @transform_5, window_bounds = array<i64: 9, 512>}, {pipeline_mode = #tpu.pipeline_mode<synchronous>, transform_indices = @transform_6, window_bounds = array<i64: 32, 512>}]} {
    %c0 = arith.constant 0 : index
    %c0_0 = arith.constant 0 : index
    %0 = vector.load %arg5[%c0, %c0_0] : memref<32x8xf32, #tpu.memory_space<vmem>>, vector<32x8xf32>
    %c0_1 = arith.constant 0 : index
    %c0_2 = arith.constant 0 : index
    %1 = vector.load %arg6[%c0_1, %c0_2] : memref<9x512xf32, #tpu.memory_space<vmem>>, vector<9x512xf32>
    %c0_3 = arith.constant 0 : index
    %c0_4 = arith.constant 0 : index
    %2 = vector.load %arg1[%c0_3, %c0_4] : memref<32x512xf32, #tpu.memory_space<vmem>>, vector<32x512xf32>
    %c0_5 = arith.constant 0 : index
    %c0_6 = arith.constant 0 : index
    %3 = vector.load %arg2[%c0_5, %c0_6] : memref<8x32xf32, #tpu.memory_space<vmem>>, vector<8x32xf32>
    %cst = arith.constant dense<0.000000e+00> : vector<8x512xf32>
    %4 = tpu.matmul %3, %2, %cst {dimension_numbers = #tpu.dot_dimension_numbers<[1], [0], [0], [1], [0, 0, 1, 1], [], []>, precision = #tpu.contract_precision<fp32>} : vector<8x32xf32>, vector<32x512xf32>, vector<8x512xf32> -> vector<8x512xf32>
    %5 = vector.extract_strided_slice %0 {offsets = [0, 0], sizes = [8, 1], strides = [1, 1]} : vector<32x8xf32> to vector<8x1xf32>
    %6 = vector.extract_strided_slice %0 {offsets = [0, 1], sizes = [8, 1], strides = [1, 1]} : vector<32x8xf32> to vector<8x1xf32>
    %cst_7 = arith.constant dense<0.000000e+00> : vector<8xf32>
    %7 = vector.multi_reduction <add>, %4, %cst_7 [1] : vector<8x512xf32> to vector<8xf32>
    %8 = vector.shape_cast %7 : vector<8xf32> to vector<8x1xf32>
    %9 = arith.mulf %4, %4 : vector<8x512xf32>
    %cst_8 = arith.constant dense<0.000000e+00> : vector<8xf32>
    %10 = vector.multi_reduction <add>, %9, %cst_8 [1] : vector<8x512xf32> to vector<8xf32>
    %11 = vector.shape_cast %10 : vector<8xf32> to vector<8x1xf32>
    %cst_9 = arith.constant 0.001953125 : f32
    %12 = vector.broadcast %cst_9 : f32 to vector<8x1xf32>
    %13 = arith.mulf %8, %12 : vector<8x1xf32>
    %cst_10 = arith.constant 0.001953125 : f32
    %14 = vector.broadcast %cst_10 : f32 to vector<8x1xf32>
    %15 = arith.mulf %11, %14 : vector<8x1xf32>
    %16 = arith.mulf %13, %13 : vector<8x1xf32>
    %17 = arith.subf %15, %16 : vector<8x1xf32>
    %18 = vector.broadcast %13 : vector<8x1xf32> to vector<8x512xf32>
    %19 = arith.subf %4, %18 : vector<8x512xf32>
    %cst_11 = arith.constant 9.99999974E-6 : f32
    %20 = vector.broadcast %cst_11 : f32 to vector<8x1xf32>
    %21 = arith.addf %17, %20 : vector<8x1xf32>
    %22 = math.rsqrt %21 : vector<8x1xf32>
    %23 = vector.broadcast %22 : vector<8x1xf32> to vector<8x512xf32>
    %24 = arith.mulf %19, %23 : vector<8x512xf32>
    %25 = vector.broadcast %5 : vector<8x1xf32> to vector<8x512xf32>
    %26 = arith.mulf %24, %25 : vector<8x512xf32>
    %27 = vector.broadcast %6 : vector<8x1xf32> to vector<8x512xf32>
    %28 = arith.addf %26, %27 : vector<8x512xf32>
    %cst_12 = arith.constant 0.000000e+00 : f32
    %29 = vector.broadcast %cst_12 : f32 to vector<8x512xf32>
    %30 = arith.maximumf %28, %29 : vector<8x512xf32>
    %31 = vector.extract_strided_slice %30 {offsets = [0, 495], sizes = [8, 17], strides = [1, 1]} : vector<8x512xf32> to vector<8x17xf32>
    %32 = vector.extract_strided_slice %30 {offsets = [0, 0], sizes = [8, 495], strides = [1, 1]} : vector<8x512xf32> to vector<8x495xf32>
    %33 = tpu.concatenate %31, %32 in 1 : vector<8x17xf32>, vector<8x495xf32> -> vector<8x512xf32>
    %34 = vector.extract_strided_slice %1 {offsets = [0, 0], sizes = [1, 512], strides = [1, 1]} : vector<9x512xf32> to vector<1x512xf32>
    %35 = vector.broadcast %34 : vector<1x512xf32> to vector<8x512xf32>
    %36 = arith.mulf %33, %35 : vector<8x512xf32>
    %37 = vector.extract_strided_slice %30 {offsets = [0, 496], sizes = [8, 16], strides = [1, 1]} : vector<8x512xf32> to vector<8x16xf32>
    %38 = vector.extract_strided_slice %30 {offsets = [0, 0], sizes = [8, 496], strides = [1, 1]} : vector<8x512xf32> to vector<8x496xf32>
    %39 = tpu.concatenate %37, %38 in 1 : vector<8x16xf32>, vector<8x496xf32> -> vector<8x512xf32>
    %40 = vector.extract_strided_slice %1 {offsets = [1, 0], sizes = [1, 512], strides = [1, 1]} : vector<9x512xf32> to vector<1x512xf32>
    %41 = vector.broadcast %40 : vector<1x512xf32> to vector<8x512xf32>
    %42 = arith.mulf %39, %41 : vector<8x512xf32>
    %43 = vector.extract_strided_slice %30 {offsets = [0, 497], sizes = [8, 15], strides = [1, 1]} : vector<8x512xf32> to vector<8x15xf32>
    %44 = vector.extract_strided_slice %30 {offsets = [0, 0], sizes = [8, 497], strides = [1, 1]} : vector<8x512xf32> to vector<8x497xf32>
    %45 = tpu.concatenate %43, %44 in 1 : vector<8x15xf32>, vector<8x497xf32> -> vector<8x512xf32>
    %46 = vector.extract_strided_slice %1 {offsets = [2, 0], sizes = [1, 512], strides = [1, 1]} : vector<9x512xf32> to vector<1x512xf32>
    %47 = vector.broadcast %46 : vector<1x512xf32> to vector<8x512xf32>
    %48 = arith.mulf %45, %47 : vector<8x512xf32>
    %49 = vector.extract_strided_slice %30 {offsets = [0, 511], sizes = [8, 1], strides = [1, 1]} : vector<8x512xf32> to vector<8x1xf32>
    %50 = vector.extract_strided_slice %30 {offsets = [0, 0], sizes = [8, 511], strides = [1, 1]} : vector<8x512xf32> to vector<8x511xf32>
    %51 = tpu.concatenate %49, %50 in 1 : vector<8x1xf32>, vector<8x511xf32> -> vector<8x512xf32>
    %52 = vector.extract_strided_slice %1 {offsets = [3, 0], sizes = [1, 512], strides = [1, 1]} : vector<9x512xf32> to vector<1x512xf32>
    %53 = vector.broadcast %52 : vector<1x512xf32> to vector<8x512xf32>
    %54 = arith.mulf %51, %53 : vector<8x512xf32>
    %55 = vector.extract_strided_slice %30 {offsets = [0, 1], sizes = [8, 511], strides = [1, 1]} : vector<8x512xf32> to vector<8x511xf32>
    %56 = vector.extract_strided_slice %30 {offsets = [0, 0], sizes = [8, 1], strides = [1, 1]} : vector<8x512xf32> to vector<8x1xf32>
    %57 = tpu.concatenate %55, %56 in 1 : vector<8x511xf32>, vector<8x1xf32> -> vector<8x512xf32>
    %58 = vector.extract_strided_slice %1 {offsets = [5, 0], sizes = [1, 512], strides = [1, 1]} : vector<9x512xf32> to vector<1x512xf32>
    %59 = vector.broadcast %58 : vector<1x512xf32> to vector<8x512xf32>
    %60 = arith.mulf %57, %59 : vector<8x512xf32>
    %61 = vector.extract_strided_slice %30 {offsets = [0, 15], sizes = [8, 497], strides = [1, 1]} : vector<8x512xf32> to vector<8x497xf32>
    %62 = vector.extract_strided_slice %30 {offsets = [0, 0], sizes = [8, 15], strides = [1, 1]} : vector<8x512xf32> to vector<8x15xf32>
    %63 = tpu.concatenate %61, %62 in 1 : vector<8x497xf32>, vector<8x15xf32> -> vector<8x512xf32>
    %64 = vector.extract_strided_slice %1 {offsets = [6, 0], sizes = [1, 512], strides = [1, 1]} : vector<9x512xf32> to vector<1x512xf32>
    %65 = vector.broadcast %64 : vector<1x512xf32> to vector<8x512xf32>
    %66 = arith.mulf %63, %65 : vector<8x512xf32>
    %67 = vector.extract_strided_slice %30 {offsets = [0, 16], sizes = [8, 496], strides = [1, 1]} : vector<8x512xf32> to vector<8x496xf32>
    %68 = vector.extract_strided_slice %30 {offsets = [0, 0], sizes = [8, 16], strides = [1, 1]} : vector<8x512xf32> to vector<8x16xf32>
    %69 = tpu.concatenate %67, %68 in 1 : vector<8x496xf32>, vector<8x16xf32> -> vector<8x512xf32>
    %70 = vector.extract_strided_slice %1 {offsets = [7, 0], sizes = [1, 512], strides = [1, 1]} : vector<9x512xf32> to vector<1x512xf32>
    %71 = vector.broadcast %70 : vector<1x512xf32> to vector<8x512xf32>
    %72 = arith.mulf %69, %71 : vector<8x512xf32>
    %73 = vector.extract_strided_slice %30 {offsets = [0, 17], sizes = [8, 495], strides = [1, 1]} : vector<8x512xf32> to vector<8x495xf32>
    %74 = vector.extract_strided_slice %30 {offsets = [0, 0], sizes = [8, 17], strides = [1, 1]} : vector<8x512xf32> to vector<8x17xf32>
    %75 = tpu.concatenate %73, %74 in 1 : vector<8x495xf32>, vector<8x17xf32> -> vector<8x512xf32>
    %76 = vector.extract_strided_slice %1 {offsets = [8, 0], sizes = [1, 512], strides = [1, 1]} : vector<9x512xf32> to vector<1x512xf32>
    %77 = vector.broadcast %76 : vector<1x512xf32> to vector<8x512xf32>
    %78 = arith.mulf %75, %77 : vector<8x512xf32>
    %79 = tpu.concatenate %36, %42, %48, %54, %30, %60, %66, %72, %78 in 0 : vector<8x512xf32>, vector<8x512xf32>, vector<8x512xf32>, vector<8x512xf32>, vector<8x512xf32>, vector<8x512xf32>, vector<8x512xf32>, vector<8x512xf32>, vector<8x512xf32> -> vector<72x512xf32>
    %c0_13 = arith.constant 0 : index
    %c0_14 = arith.constant 0 : index
    %80 = vector.load %arg3[%c0_13, %c0_14] : memref<8x72xf32, #tpu.memory_space<vmem>>, vector<8x72xf32>
    %cst_15 = arith.constant dense<0.000000e+00> : vector<8x512xf32>
    %81 = tpu.matmul %80, %79, %cst_15 {dimension_numbers = #tpu.dot_dimension_numbers<[1], [0], [0], [1], [0, 0, 1, 1], [], []>, precision = #tpu.contract_precision<fp32>} : vector<8x72xf32>, vector<72x512xf32>, vector<8x512xf32> -> vector<8x512xf32>
    %82 = vector.extract_strided_slice %0 {offsets = [0, 2], sizes = [8, 1], strides = [1, 1]} : vector<32x8xf32> to vector<8x1xf32>
    %83 = vector.extract_strided_slice %0 {offsets = [0, 3], sizes = [8, 1], strides = [1, 1]} : vector<32x8xf32> to vector<8x1xf32>
    %cst_16 = arith.constant dense<0.000000e+00> : vector<8xf32>
    %84 = vector.multi_reduction <add>, %81, %cst_16 [1] : vector<8x512xf32> to vector<8xf32>
    %85 = vector.shape_cast %84 : vector<8xf32> to vector<8x1xf32>
    %86 = arith.mulf %81, %81 : vector<8x512xf32>
    %cst_17 = arith.constant dense<0.000000e+00> : vector<8xf32>
    %87 = vector.multi_reduction <add>, %86, %cst_17 [1] : vector<8x512xf32> to vector<8xf32>
    %88 = vector.shape_cast %87 : vector<8xf32> to vector<8x1xf32>
    %cst_18 = arith.constant 0.001953125 : f32
    %89 = vector.broadcast %cst_18 : f32 to vector<8x1xf32>
    %90 = arith.mulf %85, %89 : vector<8x1xf32>
    %cst_19 = arith.constant 0.001953125 : f32
    %91 = vector.broadcast %cst_19 : f32 to vector<8x1xf32>
    %92 = arith.mulf %88, %91 : vector<8x1xf32>
    %93 = arith.mulf %90, %90 : vector<8x1xf32>
    %94 = arith.subf %92, %93 : vector<8x1xf32>
    %95 = vector.broadcast %90 : vector<8x1xf32> to vector<8x512xf32>
    %96 = arith.subf %81, %95 : vector<8x512xf32>
    %cst_20 = arith.constant 9.99999974E-6 : f32
    %97 = vector.broadcast %cst_20 : f32 to vector<8x1xf32>
    %98 = arith.addf %94, %97 : vector<8x1xf32>
    %99 = math.rsqrt %98 : vector<8x1xf32>
    %100 = vector.broadcast %99 : vector<8x1xf32> to vector<8x512xf32>
    %101 = arith.mulf %96, %100 : vector<8x512xf32>
    %102 = vector.broadcast %82 : vector<8x1xf32> to vector<8x512xf32>
    %103 = arith.mulf %101, %102 : vector<8x512xf32>
    %104 = vector.broadcast %83 : vector<8x1xf32> to vector<8x512xf32>
    %105 = arith.addf %103, %104 : vector<8x512xf32>
    %cst_21 = arith.constant 0.000000e+00 : f32
    %106 = vector.broadcast %cst_21 : f32 to vector<8x512xf32>
    %107 = arith.maximumf %105, %106 : vector<8x512xf32>
    %c0_22 = arith.constant 0 : index
    %c0_23 = arith.constant 0 : index
    %108 = vector.load %arg4[%c0_22, %c0_23] : memref<32x8xf32, #tpu.memory_space<vmem>>, vector<32x8xf32>
    %cst_24 = arith.constant dense<0.000000e+00> : vector<32x512xf32>
    %109 = tpu.matmul %108, %107, %cst_24 {dimension_numbers = #tpu.dot_dimension_numbers<[1], [0], [0], [1], [0, 0, 1, 1], [], []>, precision = #tpu.contract_precision<fp32>} : vector<32x8xf32>, vector<8x512xf32>, vector<32x512xf32> -> vector<32x512xf32>
    %110 = vector.extract_strided_slice %0 {offsets = [0, 4], sizes = [32, 1], strides = [1, 1]} : vector<32x8xf32> to vector<32x1xf32>
    %111 = vector.extract_strided_slice %0 {offsets = [0, 5], sizes = [32, 1], strides = [1, 1]} : vector<32x8xf32> to vector<32x1xf32>
    %cst_25 = arith.constant dense<0.000000e+00> : vector<32xf32>
    %112 = vector.multi_reduction <add>, %109, %cst_25 [1] : vector<32x512xf32> to vector<32xf32>
    %113 = vector.shape_cast %112 : vector<32xf32> to vector<32x1xf32>
    %114 = arith.mulf %109, %109 : vector<32x512xf32>
    %cst_26 = arith.constant dense<0.000000e+00> : vector<32xf32>
    %115 = vector.multi_reduction <add>, %114, %cst_26 [1] : vector<32x512xf32> to vector<32xf32>
    %116 = vector.shape_cast %115 : vector<32xf32> to vector<32x1xf32>
    %cst_27 = arith.constant 0.001953125 : f32
    %117 = vector.broadcast %cst_27 : f32 to vector<32x1xf32>
    %118 = arith.mulf %113, %117 : vector<32x1xf32>
    %cst_28 = arith.constant 0.001953125 : f32
    %119 = vector.broadcast %cst_28 : f32 to vector<32x1xf32>
    %120 = arith.mulf %116, %119 : vector<32x1xf32>
    %121 = arith.mulf %118, %118 : vector<32x1xf32>
    %122 = arith.subf %120, %121 : vector<32x1xf32>
    %123 = vector.broadcast %118 : vector<32x1xf32> to vector<32x512xf32>
    %124 = arith.subf %109, %123 : vector<32x512xf32>
    %cst_29 = arith.constant 9.99999974E-6 : f32
    %125 = vector.broadcast %cst_29 : f32 to vector<32x1xf32>
    %126 = arith.addf %122, %125 : vector<32x1xf32>
    %127 = math.rsqrt %126 : vector<32x1xf32>
    %128 = vector.broadcast %127 : vector<32x1xf32> to vector<32x512xf32>
    %129 = arith.mulf %124, %128 : vector<32x512xf32>
    %130 = vector.broadcast %110 : vector<32x1xf32> to vector<32x512xf32>
    %131 = arith.mulf %129, %130 : vector<32x512xf32>
    %132 = vector.broadcast %111 : vector<32x1xf32> to vector<32x512xf32>
    %133 = arith.addf %131, %132 : vector<32x512xf32>
    %134 = arith.addf %133, %2 : vector<32x512xf32>
    %cst_30 = arith.constant 0.000000e+00 : f32
    %135 = vector.broadcast %cst_30 : f32 to vector<32x512xf32>
    %136 = arith.maximumf %134, %135 : vector<32x512xf32>
    %c0_31 = arith.constant 0 : index
    %c0_32 = arith.constant 0 : index
    %137 = vector.load %arg7[%c0_31, %c0_32] : memref<32x512xf32, #tpu.memory_space<vmem>>, vector<32x512xf32>
    tpu.vector_store %arg7[%c0_31, %c0_32], %136 {strides = array<i32>} : memref<32x512xf32, #tpu.memory_space<vmem>>, vector<32x512xf32>,
    return
  }
  func.func @transform_0(%arg0: i32) -> (i32, i32) {
    %c0_i32 = arith.constant 0 : i32
    %c0_i32_0 = arith.constant 0 : i32
    %c0_i32_1 = arith.constant 0 : i32
    return %c0_i32, %c0_i32_0 : i32, i32
  }
  func.func @transform_1(%arg0: i32) -> (i32, i32) {
    %c0_i32 = arith.constant 0 : i32
    %c0_i32_0 = arith.constant 0 : i32
    %c0_i32_1 = arith.constant 0 : i32
    return %c0_i32, %c0_i32_0 : i32, i32
  }
  func.func @transform_2(%arg0: i32) -> (i32, i32) {
    %c0_i32 = arith.constant 0 : i32
    %c0_i32_0 = arith.constant 0 : i32
    %c0_i32_1 = arith.constant 0 : i32
    return %c0_i32, %c0_i32_0 : i32, i32
  }
  func.func @transform_3(%arg0: i32) -> (i32, i32) {
    %c0_i32 = arith.constant 0 : i32
    %c0_i32_0 = arith.constant 0 : i32
    %c0_i32_1 = arith.constant 0 : i32
    return %c0_i32, %c0_i32_0 : i32, i32
  }
  func.func @transform_4(%arg0: i32) -> (i32, i32) {
    %c0_i32 = arith.constant 0 : i32
    %c0_i32_0 = arith.constant 0 : i32
    %c0_i32_1 = arith.constant 0 : i32
    return %c0_i32, %c0_i32_0 : i32, i32
  }
  func.func @transform_5(%arg0: i32) -> (i32, i32) {
    %c0_i32 = arith.constant 0 : i32
    %c0_i32_0 = arith.constant 0 : i32
    %c0_i32_1 = arith.constant 0 : i32
    return %c0_i32, %c0_i32_0 : i32, i32
  }
  func.func @transform_6(%arg0: i32) -> (i32, i32) {
    %c0_i32 = arith.constant 0 : i32
    %c0_i32_0 = arith.constant 0 : i32
    %c0_i32_1 = arith.constant 0 : i32
    return %c0_i32, %c0_i32_0 : i32, i32
  }
}

</mosaic_0001>

<llo_original>
// kernel: tpu_custom_call.1
$region0: #{tpu_custom_call.1}
  #allocation0 [shape = 'u32[]', space=smem, size = 0x4, offset = 0x4, fixed_abs, tag = 'smem constant byte address 0x4 - core index']
  #allocation1 [shape = 'u32[72,128]{1,0:T(1,128)}', space=vmem, size = 0x9000, scoped, tag = 'internal scratch']
  %s0 = inlined_call_operand.hbm [shape: f32[32,512], index: 0, kind: input, shape index: {}]
  %s1 = inlined_call_operand.vmem [shape: f32[8,32], index: 1, kind: input, shape index: {}]
  %s2 = inlined_call_operand.hbm [shape: f32[8,72], index: 2, kind: input, shape index: {}]
  %s3 = inlined_call_operand.vmem [shape: f32[32,8], index: 3, kind: input, shape index: {}]
  %s4 = inlined_call_operand.vmem [shape: f32[32,8], index: 4, kind: input, shape index: {}]
  %s5 = inlined_call_operand.vmem [shape: f32[9,512], index: 5, kind: input, shape index: {}]
  %s6 = inlined_call_operand.hbm [shape: f32[32,512], index: 6, kind: output, shape index: {}]
  %s7 = sld [smem:[#allocation0]]
  $region42: #{tpu_custom_call.1} parent=0
    _
  %s9 = ssub.s32 1, %s7
  %s10 = scalar_select 0, %s9, %s7
  $region1: #{tpu_custom_call.1} parent=0
    #allocation2 [shape = 'u8[65536]{0}', space=vmem, size = 0x10000, scoped, tag = 'input window, operand 0, single buffered']
    #allocation3 [shape = 's32[1]{0}', space=sflag, size = 0x4, scoped, tag = 'scoped memory for tpu_custom_call.1']
    #allocation4 [shape = 's32[1]{0}', space=sflag, size = 0x4, scoped, tag = 'scoped memory for tpu_custom_call.1']
    #allocation5 [shape = 'u8[4096]{0}', space=vmem, size = 0x1000, scoped, tag = 'input window, operand 2, single buffered']
    #allocation6 [shape = 's32[1]{0}', space=sflag, size = 0x4, scoped, tag = 'scoped memory for tpu_custom_call.1']
    #allocation7 [shape = 'u8[65536]{0}', space=vmem, size = 0x10000, scoped, tag = 'output window, operand 0, single buffered']
    %11 = vsyncpa [#allocation3], 0
    %12 = vsyncpa [#allocation6], 0
    %13 = vsyncpa [#allocation4], 0
    // Predicated region
    $region2: #{tpu_custom_call.1} parent=1 // pred_check
      _
    $region3: #{tpu_custom_call.1} parent=1 // pred_check_branch
      %15 = sbr.rel (0) target = $region5
    $region4: #{tpu_custom_call.1} parent=1 // pred_region
      %17 = vsyncadd [#allocation3], 0
      %s18 = sshll.u32 %s0, 4
      %s19 = int_to_ptr.hbm [resolvable:$true] %s18
      %s20 = sshll.u32 [#allocation2], 4
      %s21 = int_to_ptr.vmem [resolvable:$true] %s20
      %26 = dma.hbm_to_vmem [thread:$0]  %s19, 2048, %s21, [#allocation3], 512, 512, 32
    $region5: #{tpu_custom_call.1} parent=1 // pred_fallthru
      _
    // Predicated region
    $region6: #{tpu_custom_call.1} parent=1 // pred_check
      _
    $region7: #{tpu_custom_call.1} parent=1 // pred_check_branch
      %28 = sbr.rel (0) target = $region9
    $region8: #{tpu_custom_call.1} parent=1 // pred_region
      _
    $region9: #{tpu_custom_call.1} parent=1 // pred_fallthru
      _
    // Predicated region
    $region10: #{tpu_custom_call.1} parent=1 // pred_check
      _
    $region11: #{tpu_custom_call.1} parent=1 // pred_check_branch
      %30 = sbr.rel (0) target = $region13
    $region12: #{tpu_custom_call.1} parent=1 // pred_region
      %32 = vsyncadd [#allocation6], 0
      %s34 = sshll.u32 %s2, 4
      %s35 = int_to_ptr.hbm [resolvable:$true] %s34
      %s36 = sshll.u32 [#allocation5], 4
      %s37 = int_to_ptr.vmem [resolvable:$true] %s36
      %39 = dma.hbm_to_vmem [thread:$0]  %s35, 128, %s37, [#allocation6]
    $region13: #{tpu_custom_call.1} parent=1 // pred_fallthru
      _
    // Predicated region
    $region14: #{tpu_custom_call.1} parent=1 // pred_check
      _
    $region15: #{tpu_custom_call.1} parent=1 // pred_check_branch
      %41 = sbr.rel (0) target = $region17
    $region16: #{tpu_custom_call.1} parent=1 // pred_region
      _
    $region17: #{tpu_custom_call.1} parent=1 // pred_fallthru
      _
    // Predicated region
    $region18: #{tpu_custom_call.1} parent=1 // pred_check
      _
    $region19: #{tpu_custom_call.1} parent=1 // pred_check_branch
      %43 = sbr.rel (0) target = $region21
    $region20: #{tpu_custom_call.1} parent=1 // pred_region
      _
    $region21: #{tpu_custom_call.1} parent=1 // pred_fallthru
      _
    // Predicated region
    $region22: #{tpu_custom_call.1} parent=1 // pred_check
      _
    $region23: #{tpu_custom_call.1} parent=1 // pred_check_branch
      %45 = sbr.rel (0) target = $region25
    $region24: #{tpu_custom_call.1} parent=1 // pred_region
      _
    $region25: #{tpu_custom_call.1} parent=1 // pred_fallthru
      _
    // Predicated region
    $region26: #{tpu_custom_call.1} parent=1 // pred_check
      _
    $region27: #{tpu_custom_call.1} parent=1 // pred_check_branch
      %47 = sbr.rel (0) target = $region29
    $region28: #{tpu_custom_call.1} parent=1 // pred_region
      %49 = dma.done [#allocation3], 2048
    $region29: #{tpu_custom_call.1} parent=1 // pred_fallthru
      _
    // Predicated region
    $region30: #{tpu_custom_call.1} parent=1 // pred_check
      _
    $region31: #{tpu_custom_call.1} parent=1 // pred_check_branch
      %51 = sbr.rel (0) target = $region33
    $region32: #{tpu_custom_call.1} parent=1 // pred_region
      %53 = dma.done [#allocation6], 128
    $region33: #{tpu_custom_call.1} parent=1 // pred_fallthru
      _
    %v54 = vld [vmem:[%s4] sm:$0xff]
    %v55 = vld [vmem:[%s4 + $0x8] sm:$0xff]
    %v56 = vld [vmem:[%s4 + $0x10] sm:$0xff]
    %v57 = vld [vmem:[%s4 + $0x18] sm:$0xff]
    %v58 = vld [vmem:[%s5] sm:$0xff]
    %v59 = vld [vmem:[%s5 + $0x8] sm:$0xff]
    %v60 = vld [vmem:[%s5 + $0x10] sm:$0xff]
    %v61 = vld [vmem:[%s5 + $0x18] sm:$0xff]
    %v62 = vld [vmem:[%s5 + $0x20] sm:$0x1]
    %v63 = vld [vmem:[%s5 + $0x28] sm:$0x1]
    %v64 = vld [vmem:[%s5 + $0x30] sm:$0x1]
    %v65 = vld [vmem:[%s5 + $0x38] sm:$0x1]
    %v66 = vld [vmem:[#allocation2] sm:$0xff]
    %v67 = vld [vmem:[#allocation2 + $0x8] sm:$0xff]
    %v68 = vld [vmem:[#allocation2 + $0x10] sm:$0xff]
    %v69 = vld [vmem:[#allocation2 + $0x18] sm:$0xff]
    %v70 = vld [vmem:[#allocation2 + $0x20] sm:$0xff]
    %v71 = vld [vmem:[#allocation2 + $0x28] sm:$0xff]
    %v72 = vld [vmem:[#allocation2 + $0x30] sm:$0xff]
    %v73 = vld [vmem:[#allocation2 + $0x38] sm:$0xff]
    %v74 = vld [vmem:[#allocation2 + $0x40] sm:$0xff]
    %v75 = vld [vmem:[#allocation2 + $0x48] sm:$0xff]
    %v76 = vld [vmem:[#allocation2 + $0x50] sm:$0xff]
    %v77 = vld [vmem:[#allocation2 + $0x58] sm:$0xff]
    %v78 = vld [vmem:[#allocation2 + $0x60] sm:$0xff]
    %v79 = vld [vmem:[#allocation2 + $0x68] sm:$0xff]
    %v80 = vld [vmem:[#allocation2 + $0x70] sm:$0xff]
    %v81 = vld [vmem:[#allocation2 + $0x78] sm:$0xff]
    %v82 = vld [vmem:[%s1] sm:$0xff]
    %vm83 = vcmask 261120
    %v85 = vsel %vm83, %v82, 0
    %87 = vmatpush.msra.mxu0 0.0
    %88 = vmatpush.msra.mxu0 0.0
    %89 = vmatpush.msra.mxu0 0.0
    %90 = vmatpush.msra.mxu0 0.0
    %91 = vmatpush.msra.mxu0 0.0
    %92 = vmatpush.msra.mxu0 0.0
    %93 = vmatpush.msra.mxu0 0.0
    %94 = vmatpush.msra.mxu0 0.0
    %95 = vmatpush.msra.mxu0 0.0
    %96 = vmatpush.msra.mxu0 0.0
    %97 = vmatpush.msra.mxu0 0.0
    %98 = vmatpush.msra.mxu0 0.0
    %v99 = vand.u32 %v78, 4294901760
    %100 = vmatpush.msra.mxu0 %v99
    %v101 = vand.u32 %v74, 4294901760
    %102 = vmatpush.msra.mxu0 %v101
    %v103 = vand.u32 %v70, 4294901760
    %104 = vmatpush.msra.mxu0 %v103
    %v105 = vand.u32 %v66, 4294901760
    %106 = vmatpush.msra.mxu0 %v105
    %v107 = vand.u32 %v85, 4294901760
    %v108 = vsub.f32 %v85, %v107
    %v109 = vand.u32 %v108, 4294901760
    %v110 = vsub.f32 %v108, %v109
    %v111 = vand.u32 %v110, 4294901760
    %112 = vmatmul.f32.gmra.mxu0 %v111
    %v113 = vpop.f32.mrf.mxu0
    %v114 = vadd.f32 0.0, %v113
    %115 = vdwg.mxu0
    %116 = vmatpush.msra.mxu0 0.0
    %117 = vmatpush.msra.mxu0 0.0
    %118 = vmatpush.msra.mxu0 0.0
    %119 = vmatpush.msra.mxu0 0.0
    %120 = vmatpush.msra.mxu0 0.0
    %121 = vmatpush.msra.mxu0 0.0
    %122 = vmatpush.msra.mxu0 0.0
    %123 = vmatpush.msra.mxu0 0.0
    %124 = vmatpush.msra.mxu0 0.0
    %125 = vmatpush.msra.mxu0 0.0
    %126 = vmatpush.msra.mxu0 0.0
    %127 = vmatpush.msra.mxu0 0.0
    %v128 = vand.u32 %v78, 4294901760
    %v129 = vsub.f32 %v78, %v128
    %v130 = vand.u32 %v129, 4294901760
    %v131 = vsub.f32 %v129, %v130
    %v132 = vand.u32 %v131, 4294901760
    %133 = vmatpush.msra.mxu0 %v132
    %v134 = vand.u32 %v74, 4294901760
    %v135 = vsub.f32 %v74, %v134
    %v136 = vand.u32 %v135, 4294901760
    %v137 = vsub.f32 %v135, %v136
    %v138 = vand.u32 %v137, 4294901760
    %139 = vmatpush.msra.mxu0 %v138
    %v140 = vand.u32 %v70, 4294901760
    %v141 = vsub.f32 %v70, %v140
    %v142 = vand.u32 %v141, 4294901760
    %v143 = vsub.f32 %v141, %v142
    %v144 = vand.u32 %v143, 4294901760
    %145 = vmatpush.msra.mxu0 %v144
    %v146 = vand.u32 %v66, 4294901760
    %v147 = vsub.f32 %v66, %v146
    %v148 = vand.u32 %v147, 4294901760
    %v149 = vsub.f32 %v147, %v148
    %v150 = vand.u32 %v149, 4294901760
    %151 = vmatpush.msra.mxu0 %v150
    %v152 = vand.u32 %v85, 4294901760
    %153 = vmatmul.f32.gmra.mxu0 %v152
    %v154 = vpop.f32.mrf.mxu0
    %v155 = vadd.f32 %v114, %v154
    %156 = vdwg.mxu0
    %157 = vmatpush.msra.mxu0 0.0
    %158 = vmatpush.msra.mxu0 0.0
    %159 = vmatpush.msra.mxu0 0.0
    %160 = vmatpush.msra.mxu0 0.0
    %161 = vmatpush.msra.mxu0 0.0
    %162 = vmatpush.msra.mxu0 0.0
    %163 = vmatpush.msra.mxu0 0.0
    %164 = vmatpush.msra.mxu0 0.0
    %165 = vmatpush.msra.mxu0 0.0
    %166 = vmatpush.msra.mxu0 0.0
    %167 = vmatpush.msra.mxu0 0.0
    %168 = vmatpush.msra.mxu0 0.0
    %v169 = vand.u32 %v78, 4294901760
    %v170 = vsub.f32 %v78, %v169
    %171 = vmatpush.msra.mxu0 %v170
    %v172 = vand.u32 %v74, 4294901760
    %v173 = vsub.f32 %v74, %v172
    %174 = vmatpush.msra.mxu0 %v173
    %v175 = vand.u32 %v70, 4294901760
    %v176 = vsub.f32 %v70, %v175
    %177 = vmatpush.msra.mxu0 %v176
    %v178 = vand.u32 %v66, 4294901760
    %v179 = vsub.f32 %v66, %v178
    %180 = vmatpush.msra.mxu0 %v179
    %v181 = vand.u32 %v85, 4294901760
    %v182 = vsub.f32 %v85, %v181
    %183 = vmatmul.f32.gmra.mxu0 %v182
    %v184 = vpop.f32.mrf.mxu0
    %v185 = vadd.f32 %v155, %v184
    %186 = vdwg.mxu0
    %187 = vmatpush.msra.mxu0 0.0
    %188 = vmatpush.msra.mxu0 0.0
    %189 = vmatpush.msra.mxu0 0.0
    %190 = vmatpush.msra.mxu0 0.0
    %191 = vmatpush.msra.mxu0 0.0
    %192 = vmatpush.msra.mxu0 0.0
    %193 = vmatpush.msra.mxu0 0.0
    %194 = vmatpush.msra.mxu0 0.0
    %195 = vmatpush.msra.mxu0 0.0
    %196 = vmatpush.msra.mxu0 0.0
    %197 = vmatpush.msra.mxu0 0.0
    %198 = vmatpush.msra.mxu0 0.0
    %v199 = vand.u32 %v78, 4294901760
    %200 = vmatpush.msra.mxu0 %v199
    %v201 = vand.u32 %v74, 4294901760
    %202 = vmatpush.msra.mxu0 %v201
    %v203 = vand.u32 %v70, 4294901760
    %204 = vmatpush.msra.mxu0 %v203
    %v205 = vand.u32 %v66, 4294901760
    %206 = vmatpush.msra.mxu0 %v205
    %v207 = vand.u32 %v85, 4294901760
    %v208 = vsub.f32 %v85, %v207
    %v209 = vand.u32 %v208, 4294901760
    %210 = vmatmul.f32.gmra.mxu0 %v209
    %v211 = vpop.f32.mrf.mxu0
    %v212 = vadd.f32 %v185, %v211
    %213 = vdwg.mxu0
    %214 = vmatpush.msra.mxu0 0.0
    %215 = vmatpush.msra.mxu0 0.0
    %216 = vmatpush.msra.mxu0 0.0
    %217 = vmatpush.msra.mxu0 0.0
    %218 = vmatpush.msra.mxu0 0.0
    %219 = vmatpush.msra.mxu0 0.0
    %220 = vmatpush.msra.mxu0 0.0
    %221 = vmatpush.msra.mxu0 0.0
    %222 = vmatpush.msra.mxu0 0.0
    %223 = vmatpush.msra.mxu0 0.0
    %224 = vmatpush.msra.mxu0 0.0
    %225 = vmatpush.msra.mxu0 0.0
    %v226 = vand.u32 %v78, 4294901760
    %v227 = vsub.f32 %v78, %v226
    %v228 = vand.u32 %v227, 4294901760
    %229 = vmatpush.msra.mxu0 %v228
    %v230 = vand.u32 %v74, 4294901760
    %v231 = vsub.f32 %v74, %v230
    %v232 = vand.u32 %v231, 4294901760
    %233 = vmatpush.msra.mxu0 %v232
    %v234 = vand.u32 %v70, 4294901760
    %v235 = vsub.f32 %v70, %v234
    %v236 = vand.u32 %v235, 4294901760
    %237 = vmatpush.msra.mxu0 %v236
    %v238 = vand.u32 %v66, 4294901760
    %v239 = vsub.f32 %v66, %v238
    %v240 = vand.u32 %v239, 4294901760
    %241 = vmatpush.msra.mxu0 %v240
    %v242 = vand.u32 %v85, 4294901760
    %243 = vmatmul.f32.gmra.mxu0 %v242
    %v244 = vpop.f32.mrf.mxu0
    %v245 = vadd.f32 %v212, %v244
    %246 = vdwg.mxu0
    %247 = vmatpush.msra.mxu0 0.0
    %248 = vmatpush.msra.mxu0 0.0
    %249 = vmatpush.msra.mxu0 0.0
    %250 = vmatpush.msra.mxu0 0.0
    %251 = vmatpush.msra.mxu0 0.0
    %252 = vmatpush.msra.mxu0 0.0
    %253 = vmatpush.msra.mxu0 0.0
    %254 = vmatpush.msra.mxu0 0.0
    %255 = vmatpush.msra.mxu0 0.0
    %256 = vmatpush.msra.mxu0 0.0
    %257 = vmatpush.msra.mxu0 0.0
    %258 = vmatpush.msra.mxu0 0.0
    %v259 = vand.u32 %v78, 4294901760
    %260 = vmatpush.msra.mxu0 %v259
    %v261 = vand.u32 %v74, 4294901760
    %262 = vmatpush.msra.mxu0 %v261
    %v263 = vand.u32 %v70, 4294901760
    %264 = vmatpush.msra.mxu0 %v263
    %v265 = vand.u32 %v66, 4294901760
    %266 = vmatpush.msra.mxu0 %v265
    %v267 = vand.u32 %v85, 4294901760
    %268 = vmatmul.f32.gmra.mxu0 %v267
    %v269 = vpop.f32.mrf.mxu0
    %v270 = vadd.f32 %v245, %v269
    %271 = vdwg.mxu0
    %272 = vmatpush.msra.mxu0 0.0
    %273 = vmatpush.msra.mxu0 0.0
    %274 = vmatpush.msra.mxu0 0.0
    %275 = vmatpush.msra.mxu0 0.0
    %276 = vmatpush.msra.mxu0 0.0
    %277 = vmatpush.msra.mxu0 0.0
    %278 = vmatpush.msra.mxu0 0.0
    %279 = vmatpush.msra.mxu0 0.0
    %280 = vmatpush.msra.mxu0 0.0
    %281 = vmatpush.msra.mxu0 0.0
    %282 = vmatpush.msra.mxu0 0.0
    %283 = vmatpush.msra.mxu0 0.0
    %v284 = vand.u32 %v79, 4294901760
    %285 = vmatpush.msra.mxu0 %v284
    %v286 = vand.u32 %v75, 4294901760
    %287 = vmatpush.msra.mxu0 %v286
    %v288 = vand.u32 %v71, 4294901760
    %289 = vmatpush.msra.mxu0 %v288
    %v290 = vand.u32 %v67, 4294901760
    %291 = vmatpush.msra.mxu0 %v290
    %v292 = vand.u32 %v85, 4294901760
    %v293 = vsub.f32 %v85, %v292
    %v294 = vand.u32 %v293, 4294901760
    %v295 = vsub.f32 %v293, %v294
    %v296 = vand.u32 %v295, 4294901760
    %297 = vmatmul.f32.gmra.mxu0 %v296
    %v298 = vpop.f32.mrf.mxu0
    %v299 = vadd.f32 0.0, %v298
    %300 = vdwg.mxu0
    %301 = vmatpush.msra.mxu0 0.0
    %302 = vmatpush.msra.mxu0 0.0
    %303 = vmatpush.msra.mxu0 0.0
    %304 = vmatpush.msra.mxu0 0.0
    %305 = vmatpush.msra.mxu0 0.0
    %306 = vmatpush.msra.mxu0 0.0
    %307 = vmatpush.msra.mxu0 0.0
    %308 = vmatpush.msra.mxu0 0.0
    %309 = vmatpush.msra.mxu0 0.0
    %310 = vmatpush.msra.mxu0 0.0
    %311 = vmatpush.msra.mxu0 0.0
    %312 = vmatpush.msra.mxu0 0.0
    %v313 = vand.u32 %v79, 4294901760
    %v314 = vsub.f32 %v79, %v313
    %v315 = vand.u32 %v314, 4294901760
    %v316 = vsub.f32 %v314, %v315
    %v317 = vand.u32 %v316, 4294901760
    %318 = vmatpush.msra.mxu0 %v317
    %v319 = vand.u32 %v75, 4294901760
    %v320 = vsub.f32 %v75, %v319
    %v321 = vand.u32 %v320, 4294901760
    %v322 = vsub.f32 %v320, %v321
    %v323 = vand.u32 %v322, 4294901760
    %324 = vmatpush.msra.mxu0 %v323
    %v325 = vand.u32 %v71, 4294901760
    %v326 = vsub.f32 %v71, %v325
    %v327 = vand.u32 %v326, 4294901760
    %v328 = vsub.f32 %v326, %v327
    %v329 = vand.u32 %v328, 4294901760
    %330 = vmatpush.msra.mxu0 %v329
    %v331 = vand.u32 %v67, 4294901760
    %v332 = vsub.f32 %v67, %v331
    %v333 = vand.u32 %v332, 4294901760
    %v334 = vsub.f32 %v332, %v333
    %v335 = vand.u32 %v334, 4294901760
    %336 = vmatpush.msra.mxu0 %v335
    %v337 = vand.u32 %v85, 4294901760
    %338 = vmatmul.f32.gmra.mxu0 %v337
    %v339 = vpop.f32.mrf.mxu0
    %v340 = vadd.f32 %v299, %v339
    %341 = vdwg.mxu0
    %342 = vmatpush.msra.mxu0 0.0
    %343 = vmatpush.msra.mxu0 0.0
    %344 = vmatpush.msra.mxu0 0.0
    %345 = vmatpush.msra.mxu0 0.0
    %346 = vmatpush.msra.mxu0 0.0
    %347 = vmatpush.msra.mxu0 0.0
    %348 = vmatpush.msra.mxu0 0.0
    %349 = vmatpush.msra.mxu0 0.0
    %350 = vmatpush.msra.mxu0 0.0
    %351 = vmatpush.msra.mxu0 0.0
    %352 = vmatpush.msra.mxu0 0.0
    %353 = vmatpush.msra.mxu0 0.0
    %v354 = vand.u32 %v79, 4294901760
    %v355 = vsub.f32 %v79, %v354
    %356 = vmatpush.msra.mxu0 %v355
    %v357 = vand.u32 %v75, 4294901760
    %v358 = vsub.f32 %v75, %v357
    %359 = vmatpush.msra.mxu0 %v358
    %v360 = vand.u32 %v71, 4294901760
    %v361 = vsub.f32 %v71, %v360
    %362 = vmatpush.msra.mxu0 %v361
    %v363 = vand.u32 %v67, 4294901760
    %v364 = vsub.f32 %v67, %v363
    %365 = vmatpush.msra.mxu0 %v364
    %v366 = vand.u32 %v85, 4294901760
    %v367 = vsub.f32 %v85, %v366
    %368 = vmatmul.f32.gmra.mxu0 %v367
    %v369 = vpop.f32.mrf.mxu0
    %v370 = vadd.f32 %v340, %v369
    %371 = vdwg.mxu0
    %372 = vmatpush.msra.mxu0 0.0
    %373 = vmatpush.msra.mxu0 0.0
    %374 = vmatpush.msra.mxu0 0.0
    %375 = vmatpush.msra.mxu0 0.0
    %376 = vmatpush.msra.mxu0 0.0
    %377 = vmatpush.msra.mxu0 0.0
    %378 = vmatpush.msra.mxu0 0.0
    %379 = vmatpush.msra.mxu0 0.0
    %380 = vmatpush.msra.mxu0 0.0
    %381 = vmatpush.msra.mxu0 0.0
    %382 = vmatpush.msra.mxu0 0.0
    %383 = vmatpush.msra.mxu0 0.0
    %v384 = vand.u32 %v79, 4294901760
    %385 = vmatpush.msra.mxu0 %v384
    %v386 = vand.u32 %v75, 4294901760
    %387 = vmatpush.msra.mxu0 %v386
    %v388 = vand.u32 %v71, 4294901760
    %389 = vmatpush.msra.mxu0 %v388
    %v390 = vand.u32 %v67, 4294901760
    %391 = vmatpush.msra.mxu0 %v390
    %v392 = vand.u32 %v85, 4294901760
    %v393 = vsub.f32 %v85, %v392
    %v394 = vand.u32 %v393, 4294901760
    %395 = vmatmul.f32.gmra.mxu0 %v394
    %v396 = vpop.f32.mrf.mxu0
    %v397 = vadd.f32 %v370, %v396
    %398 = vdwg.mxu0
    %399 = vmatpush.msra.mxu0 0.0
    %400 = vmatpush.msra.mxu0 0.0
    %401 = vmatpush.msra.mxu0 0.0
    %402 = vmatpush.msra.mxu0 0.0
    %403 = vmatpush.msra.mxu0 0.0
    %404 = vmatpush.msra.mxu0 0.0
    %405 = vmatpush.msra.mxu0 0.0
    %406 = vmatpush.msra.mxu0 0.0
    %407 = vmatpush.msra.mxu0 0.0
    %408 = vmatpush.msra.mxu0 0.0
    %409 = vmatpush.msra.mxu0 0.0
    %410 = vmatpush.msra.mxu0 0.0
    %v411 = vand.u32 %v79, 4294901760
    %v412 = vsub.f32 %v79, %v411
    %v413 = vand.u32 %v412, 4294901760
    %414 = vmatpush.msra.mxu0 %v413
    %v415 = vand.u32 %v75, 4294901760
    %v416 = vsub.f32 %v75, %v415
    %v417 = vand.u32 %v416, 4294901760
    %418 = vmatpush.msra.mxu0 %v417
    %v419 = vand.u32 %v71, 4294901760
    %v420 = vsub.f32 %v71, %v419
    %v421 = vand.u32 %v420, 4294901760
    %422 = vmatpush.msra.mxu0 %v421
    %v423 = vand.u32 %v67, 4294901760
    %v424 = vsub.f32 %v67, %v423
    %v425 = vand.u32 %v424, 4294901760
    %426 = vmatpush.msra.mxu0 %v425
    %v427 = vand.u32 %v85, 4294901760
    %428 = vmatmul.f32.gmra.mxu0 %v427
    %v429 = vpop.f32.mrf.mxu0
    %v430 = vadd.f32 %v397, %v429
    %431 = vdwg.mxu0
    %432 = vmatpush.msra.mxu0 0.0
    %433 = vmatpush.msra.mxu0 0.0
    %434 = vmatpush.msra.mxu0 0.0
    %435 = vmatpush.msra.mxu0 0.0
    %436 = vmatpush.msra.mxu0 0.0
    %437 = vmatpush.msra.mxu0 0.0
    %438 = vmatpush.msra.mxu0 0.0
    %439 = vmatpush.msra.mxu0 0.0
    %440 = vmatpush.msra.mxu0 0.0
    %441 = vmatpush.msra.mxu0 0.0
    %442 = vmatpush.msra.mxu0 0.0
    %443 = vmatpush.msra.mxu0 0.0
    %v444 = vand.u32 %v79, 4294901760
    %445 = vmatpush.msra.mxu0 %v444
    %v446 = vand.u32 %v75, 4294901760
    %447 = vmatpush.msra.mxu0 %v446
    %v448 = vand.u32 %v71, 4294901760
    %449 = vmatpush.msra.mxu0 %v448
    %v450 = vand.u32 %v67, 4294901760
    %451 = vmatpush.msra.mxu0 %v450
    %v452 = vand.u32 %v85, 4294901760
    %453 = vmatmul.f32.gmra.mxu0 %v452
    %v454 = vpop.f32.mrf.mxu0
    %v455 = vadd.f32 %v430, %v454
    %456 = vdwg.mxu0
    %457 = vmatpush.msra.mxu0 0.0
    %458 = vmatpush.msra.mxu0 0.0
    %459 = vmatpush.msra.mxu0 0.0
    %460 = vmatpush.msra.mxu0 0.0
    %461 = vmatpush.msra.mxu0 0.0
    %462 = vmatpush.msra.mxu0 0.0
    %463 = vmatpush.msra.mxu0 0.0
    %464 = vmatpush.msra.mxu0 0.0
    %465 = vmatpush.msra.mxu0 0.0
    %466 = vmatpush.msra.mxu0 0.0
    %467 = vmatpush.msra.mxu0 0.0
    %468 = vmatpush.msra.mxu0 0.0
    %v469 = vand.u32 %v80, 4294901760
    %470 = vmatpush.msra.mxu0 %v469
    %v471 = vand.u32 %v76, 4294901760
    %472 = vmatpush.msra.mxu0 %v471
    %v473 = vand.u32 %v72, 4294901760
    %474 = vmatpush.msra.mxu0 %v473
    %v475 = vand.u32 %v68, 4294901760
    %476 = vmatpush.msra.mxu0 %v475
    %v477 = vand.u32 %v85, 4294901760
    %v478 = vsub.f32 %v85, %v477
    %v479 = vand.u32 %v478, 4294901760
    %v480 = vsub.f32 %v478, %v479
    %v481 = vand.u32 %v480, 4294901760
    %482 = vmatmul.f32.gmra.mxu0 %v481
    %v483 = vpop.f32.mrf.mxu0
    %v484 = vadd.f32 0.0, %v483
    %485 = vdwg.mxu0
    %486 = vmatpush.msra.mxu0 0.0
    %487 = vmatpush.msra.mxu0 0.0
    %488 = vmatpush.msra.mxu0 0.0
    %489 = vmatpush.msra.mxu0 0.0
    %490 = vmatpush.msra.mxu0 0.0
    %491 = vmatpush.msra.mxu0 0.0
    %492 = vmatpush.msra.mxu0 0.0
    %493 = vmatpush.msra.mxu0 0.0
    %494 = vmatpush.msra.mxu0 0.0
    %495 = vmatpush.msra.mxu0 0.0
    %496 = vmatpush.msra.mxu0 0.0
    %497 = vmatpush.msra.mxu0 0.0
    %v498 = vand.u32 %v80, 4294901760
    %v499 = vsub.f32 %v80, %v498
    %v500 = vand.u32 %v499, 4294901760
    %v501 = vsub.f32 %v499, %v500
    %v502 = vand.u32 %v501, 4294901760
    %503 = vmatpush.msra.mxu0 %v502
    %v504 = vand.u32 %v76, 4294901760
    %v505 = vsub.f32 %v76, %v504
    %v506 = vand.u32 %v505, 4294901760
    %v507 = vsub.f32 %v505, %v506
    %v508 = vand.u32 %v507, 4294901760
    %509 = vmatpush.msra.mxu0 %v508
    %v510 = vand.u32 %v72, 4294901760
    %v511 = vsub.f32 %v72, %v510
    %v512 = vand.u32 %v511, 4294901760
    %v513 = vsub.f32 %v511, %v512
    %v514 = vand.u32 %v513, 4294901760
    %515 = vmatpush.msra.mxu0 %v514
    %v516 = vand.u32 %v68, 4294901760
    %v517 = vsub.f32 %v68, %v516
    %v518 = vand.u32 %v517, 4294901760
    %v519 = vsub.f32 %v517, %v518
    %v520 = vand.u32 %v519, 4294901760
    %521 = vmatpush.msra.mxu0 %v520
    %v522 = vand.u32 %v85, 4294901760
    %523 = vmatmul.f32.gmra.mxu0 %v522
    %v524 = vpop.f32.mrf.mxu0
    %v525 = vadd.f32 %v484, %v524
    %526 = vdwg.mxu0
    %527 = vmatpush.msra.mxu0 0.0
    %528 = vmatpush.msra.mxu0 0.0
    %529 = vmatpush.msra.mxu0 0.0
    %530 = vmatpush.msra.mxu0 0.0
    %531 = vmatpush.msra.mxu0 0.0
    %532 = vmatpush.msra.mxu0 0.0
    %533 = vmatpush.msra.mxu0 0.0
    %534 = vmatpush.msra.mxu0 0.0
    %535 = vmatpush.msra.mxu0 0.0
    %536 = vmatpush.msra.mxu0 0.0
    %537 = vmatpush.msra.mxu0 0.0
    %538 = vmatpush.msra.mxu0 0.0
    %v539 = vand.u32 %v80, 4294901760
    %v540 = vsub.f32 %v80, %v539
    %541 = vmatpush.msra.mxu0 %v540
    %v542 = vand.u32 %v76, 4294901760
    %v543 = vsub.f32 %v76, %v542
    %544 = vmatpush.msra.mxu0 %v543
    %v545 = vand.u32 %v72, 4294901760
    %v546 = vsub.f32 %v72, %v545
    %547 = vmatpush.msra.mxu0 %v546
    %v548 = vand.u32 %v68, 4294901760
    %v549 = vsub.f32 %v68, %v548
    %550 = vmatpush.msra.mxu0 %v549
    %v551 = vand.u32 %v85, 4294901760
    %v552 = vsub.f32 %v85, %v551
    %553 = vmatmul.f32.gmra.mxu0 %v552
    %v554 = vpop.f32.mrf.mxu0
    %v555 = vadd.f32 %v525, %v554
    %556 = vdwg.mxu0
    %557 = vmatpush.msra.mxu0 0.0
    %558 = vmatpush.msra.mxu0 0.0
    %559 = vmatpush.msra.mxu0 0.0
    %560 = vmatpush.msra.mxu0 0.0
    %561 = vmatpush.msra.mxu0 0.0
    %562 = vmatpush.msra.mxu0 0.0
    %563 = vmatpush.msra.mxu0 0.0
    %564 = vmatpush.msra.mxu0 0.0
    %565 = vmatpush.msra.mxu0 0.0
    %566 = vmatpush.msra.mxu0 0.0
    %567 = vmatpush.msra.mxu0 0.0
    %568 = vmatpush.msra.mxu0 0.0
    %v569 = vand.u32 %v80, 4294901760
    %570 = vmatpush.msra.mxu0 %v569
    %v571 = vand.u32 %v76, 4294901760
    %572 = vmatpush.msra.mxu0 %v571
    %v573 = vand.u32 %v72, 4294901760
    %574 = vmatpush.msra.mxu0 %v573
    %v575 = vand.u32 %v68, 4294901760
    %576 = vmatpush.msra.mxu0 %v575
    %v577 = vand.u32 %v85, 4294901760
    %v578 = vsub.f32 %v85, %v577
    %v579 = vand.u32 %v578, 4294901760
    %580 = vmatmul.f32.gmra.mxu0 %v579
    %v581 = vpop.f32.mrf.mxu0
    %v582 = vadd.f32 %v555, %v581
    %583 = vdwg.mxu0
    %584 = vmatpush.msra.mxu0 0.0
    %585 = vmatpush.msra.mxu0 0.0
    %586 = vmatpush.msra.mxu0 0.0
    %587 = vmatpush.msra.mxu0 0.0
    %588 = vmatpush.msra.mxu0 0.0
    %589 = vmatpush.msra.mxu0 0.0
    %590 = vmatpush.msra.mxu0 0.0
    %591 = vmatpush.msra.mxu0 0.0
    %592 = vmatpush.msra.mxu0 0.0
    %593 = vmatpush.msra.mxu0 0.0
    %594 = vmatpush.msra.mxu0 0.0
    %595 = vmatpush.msra.mxu0 0.0
    %v596 = vand.u32 %v80, 4294901760
    %v597 = vsub.f32 %v80, %v596
    %v598 = vand.u32 %v597, 4294901760
    %599 = vmatpush.msra.mxu0 %v598
    %v600 = vand.u32 %v76, 4294901760
    %v601 = vsub.f32 %v76, %v600
    %v602 = vand.u32 %v601, 4294901760
    %603 = vmatpush.msra.mxu0 %v602
    %v604 = vand.u32 %v72, 4294901760
    %v605 = vsub.f32 %v72, %v604
    %v606 = vand.u32 %v605, 4294901760
    %607 = vmatpush.msra.mxu0 %v606
    %v608 = vand.u32 %v68, 4294901760
    %v609 = vsub.f32 %v68, %v608
    %v610 = vand.u32 %v609, 4294901760
    %611 = vmatpush.msra.mxu0 %v610
    %v612 = vand.u32 %v85, 4294901760
    %613 = vmatmul.f32.gmra.mxu0 %v612
    %v614 = vpop.f32.mrf.mxu0
    %v615 = vadd.f32 %v582, %v614
    %616 = vdwg.mxu0
    %617 = vmatpush.msra.mxu0 0.0
    %618 = vmatpush.msra.mxu0 0.0
    %619 = vmatpush.msra.mxu0 0.0
    %620 = vmatpush.msra.mxu0 0.0
    %621 = vmatpush.msra.mxu0 0.0
    %622 = vmatpush.msra.mxu0 0.0
    %623 = vmatpush.msra.mxu0 0.0
    %624 = vmatpush.msra.mxu0 0.0
    %625 = vmatpush.msra.mxu0 0.0
    %626 = vmatpush.msra.mxu0 0.0
    %627 = vmatpush.msra.mxu0 0.0
    %628 = vmatpush.msra.mxu0 0.0
    %v629 = vand.u32 %v80, 4294901760
    %630 = vmatpush.msra.mxu0 %v629
    %v631 = vand.u32 %v76, 4294901760
    %632 = vmatpush.msra.mxu0 %v631
    %v633 = vand.u32 %v72, 4294901760
    %634 = vmatpush.msra.mxu0 %v633
    %v635 = vand.u32 %v68, 4294901760
    %636 = vmatpush.msra.mxu0 %v635
    %v637 = vand.u32 %v85, 4294901760
    %638 = vmatmul.f32.gmra.mxu0 %v637
    %v639 = vpop.f32.mrf.mxu0
    %v640 = vadd.f32 %v615, %v639
    %641 = vdwg.mxu0
    %642 = vmatpush.msra.mxu0 0.0
    %643 = vmatpush.msra.mxu0 0.0
    %644 = vmatpush.msra.mxu0 0.0
    %645 = vmatpush.msra.mxu0 0.0
    %646 = vmatpush.msra.mxu0 0.0
    %647 = vmatpush.msra.mxu0 0.0
    %648 = vmatpush.msra.mxu0 0.0
    %649 = vmatpush.msra.mxu0 0.0
    %650 = vmatpush.msra.mxu0 0.0
    %651 = vmatpush.msra.mxu0 0.0
    %652 = vmatpush.msra.mxu0 0.0
    %653 = vmatpush.msra.mxu0 0.0
    %v654 = vand.u32 %v81, 4294901760
    %655 = vmatpush.msra.mxu0 %v654
    %v656 = vand.u32 %v77, 4294901760
    %657 = vmatpush.msra.mxu0 %v656
    %v658 = vand.u32 %v73, 4294901760
    %659 = vmatpush.msra.mxu0 %v658
    %v660 = vand.u32 %v69, 4294901760
    %661 = vmatpush.msra.mxu0 %v660
    %v662 = vand.u32 %v85, 4294901760
    %v663 = vsub.f32 %v85, %v662
    %v664 = vand.u32 %v663, 4294901760
    %v665 = vsub.f32 %v663, %v664
    %v666 = vand.u32 %v665, 4294901760
    %667 = vmatmul.f32.gmra.mxu0 %v666
    %v668 = vpop.f32.mrf.mxu0
    %v669 = vadd.f32 0.0, %v668
    %670 = vdwg.mxu0
    %671 = vmatpush.msra.mxu0 0.0
    %672 = vmatpush.msra.mxu0 0.0
    %673 = vmatpush.msra.mxu0 0.0
    %674 = vmatpush.msra.mxu0 0.0
    %675 = vmatpush.msra.mxu0 0.0
    %676 = vmatpush.msra.mxu0 0.0
    %677 = vmatpush.msra.mxu0 0.0
    %678 = vmatpush.msra.mxu0 0.0
    %679 = vmatpush.msra.mxu0 0.0
    %680 = vmatpush.msra.mxu0 0.0
    %681 = vmatpush.msra.mxu0 0.0
    %682 = vmatpush.msra.mxu0 0.0
    %v683 = vand.u32 %v81, 4294901760
    %v684 = vsub.f32 %v81, %v683
    %v685 = vand.u32 %v684, 4294901760
    %v686 = vsub.f32 %v684, %v685
    %v687 = vand.u32 %v686, 4294901760
    %688 = vmatpush.msra.mxu0 %v687
    %v689 = vand.u32 %v77, 4294901760
    %v690 = vsub.f32 %v77, %v689
    %v691 = vand.u32 %v690, 4294901760
    %v692 = vsub.f32 %v690, %v691
    %v693 = vand.u32 %v692, 4294901760
    %694 = vmatpush.msra.mxu0 %v693
    %v695 = vand.u32 %v73, 4294901760
    %v696 = vsub.f32 %v73, %v695
    %v697 = vand.u32 %v696, 4294901760
    %v698 = vsub.f32 %v696, %v697
    %v699 = vand.u32 %v698, 4294901760
    %700 = vmatpush.msra.mxu0 %v699
    %v701 = vand.u32 %v69, 4294901760
    %v702 = vsub.f32 %v69, %v701
    %v703 = vand.u32 %v702, 4294901760
    %v704 = vsub.f32 %v702, %v703
    %v705 = vand.u32 %v704, 4294901760
    %706 = vmatpush.msra.mxu0 %v705
    %v707 = vand.u32 %v85, 4294901760
    %708 = vmatmul.f32.gmra.mxu0 %v707
    %v709 = vpop.f32.mrf.mxu0
    %v710 = vadd.f32 %v669, %v709
    %711 = vdwg.mxu0
    %712 = vmatpush.msra.mxu0 0.0
    %713 = vmatpush.msra.mxu0 0.0
    %714 = vmatpush.msra.mxu0 0.0
    %715 = vmatpush.msra.mxu0 0.0
    %716 = vmatpush.msra.mxu0 0.0
    %717 = vmatpush.msra.mxu0 0.0
    %718 = vmatpush.msra.mxu0 0.0
    %719 = vmatpush.msra.mxu0 0.0
    %720 = vmatpush.msra.mxu0 0.0
    %721 = vmatpush.msra.mxu0 0.0
    %722 = vmatpush.msra.mxu0 0.0
    %723 = vmatpush.msra.mxu0 0.0
    %v724 = vand.u32 %v81, 4294901760
    %v725 = vsub.f32 %v81, %v724
    %726 = vmatpush.msra.mxu0 %v725
    %v727 = vand.u32 %v77, 4294901760
    %v728 = vsub.f32 %v77, %v727
    %729 = vmatpush.msra.mxu0 %v728
    %v730 = vand.u32 %v73, 4294901760
    %v731 = vsub.f32 %v73, %v730
    %732 = vmatpush.msra.mxu0 %v731
    %v733 = vand.u32 %v69, 4294901760
    %v734 = vsub.f32 %v69, %v733
    %735 = vmatpush.msra.mxu0 %v734
    %v736 = vand.u32 %v85, 4294901760
    %v737 = vsub.f32 %v85, %v736
    %738 = vmatmul.f32.gmra.mxu0 %v737
    %v739 = vpop.f32.mrf.mxu0
    %v740 = vadd.f32 %v710, %v739
    %741 = vdwg.mxu0
    %742 = vmatpush.msra.mxu0 0.0
    %743 = vmatpush.msra.mxu0 0.0
    %744 = vmatpush.msra.mxu0 0.0
    %745 = vmatpush.msra.mxu0 0.0
    %746 = vmatpush.msra.mxu0 0.0
    %747 = vmatpush.msra.mxu0 0.0
    %748 = vmatpush.msra.mxu0 0.0
    %749 = vmatpush.msra.mxu0 0.0
    %750 = vmatpush.msra.mxu0 0.0
    %751 = vmatpush.msra.mxu0 0.0
    %752 = vmatpush.msra.mxu0 0.0
    %753 = vmatpush.msra.mxu0 0.0
    %v754 = vand.u32 %v81, 4294901760
    %755 = vmatpush.msra.mxu0 %v754
    %v756 = vand.u32 %v77, 4294901760
    %757 = vmatpush.msra.mxu0 %v756
    %v758 = vand.u32 %v73, 4294901760
    %759 = vmatpush.msra.mxu0 %v758
    %v760 = vand.u32 %v69, 4294901760
    %761 = vmatpush.msra.mxu0 %v760
    %v762 = vand.u32 %v85, 4294901760
    %v763 = vsub.f32 %v85, %v762
    %v764 = vand.u32 %v763, 4294901760
    %765 = vmatmul.f32.gmra.mxu0 %v764
    %v766 = vpop.f32.mrf.mxu0
    %v767 = vadd.f32 %v740, %v766
    %768 = vdwg.mxu0
    %769 = vmatpush.msra.mxu0 0.0
    %770 = vmatpush.msra.mxu0 0.0
    %771 = vmatpush.msra.mxu0 0.0
    %772 = vmatpush.msra.mxu0 0.0
    %773 = vmatpush.msra.mxu0 0.0
    %774 = vmatpush.msra.mxu0 0.0
    %775 = vmatpush.msra.mxu0 0.0
    %776 = vmatpush.msra.mxu0 0.0
    %777 = vmatpush.msra.mxu0 0.0
    %778 = vmatpush.msra.mxu0 0.0
    %779 = vmatpush.msra.mxu0 0.0
    %780 = vmatpush.msra.mxu0 0.0
    %v781 = vand.u32 %v81, 4294901760
    %v782 = vsub.f32 %v81, %v781
    %v783 = vand.u32 %v782, 4294901760
    %784 = vmatpush.msra.mxu0 %v783
    %v785 = vand.u32 %v77, 4294901760
    %v786 = vsub.f32 %v77, %v785
    %v787 = vand.u32 %v786, 4294901760
    %788 = vmatpush.msra.mxu0 %v787
    %v789 = vand.u32 %v73, 4294901760
    %v790 = vsub.f32 %v73, %v789
    %v791 = vand.u32 %v790, 4294901760
    %792 = vmatpush.msra.mxu0 %v791
    %v793 = vand.u32 %v69, 4294901760
    %v794 = vsub.f32 %v69, %v793
    %v795 = vand.u32 %v794, 4294901760
    %796 = vmatpush.msra.mxu0 %v795
    %v797 = vand.u32 %v85, 4294901760
    %798 = vmatmul.f32.gmra.mxu0 %v797
    %v799 = vpop.f32.mrf.mxu0
    %v800 = vadd.f32 %v767, %v799
    %801 = vdwg.mxu0
    %802 = vmatpush.msra.mxu0 0.0
    %803 = vmatpush.msra.mxu0 0.0
    %804 = vmatpush.msra.mxu0 0.0
    %805 = vmatpush.msra.mxu0 0.0
    %806 = vmatpush.msra.mxu0 0.0
    %807 = vmatpush.msra.mxu0 0.0
    %808 = vmatpush.msra.mxu0 0.0
    %809 = vmatpush.msra.mxu0 0.0
    %810 = vmatpush.msra.mxu0 0.0
    %811 = vmatpush.msra.mxu0 0.0
    %812 = vmatpush.msra.mxu0 0.0
    %813 = vmatpush.msra.mxu0 0.0
    %v814 = vand.u32 %v81, 4294901760
    %815 = vmatpush.msra.mxu0 %v814
    %v816 = vand.u32 %v77, 4294901760
    %817 = vmatpush.msra.mxu0 %v816
    %v818 = vand.u32 %v73, 4294901760
    %819 = vmatpush.msra.mxu0 %v818
    %v820 = vand.u32 %v69, 4294901760
    %821 = vmatpush.msra.mxu0 %v820
    %v822 = vand.u32 %v85, 4294901760
    %823 = vmatmul.f32.gmra.mxu0 %v822
    %v824 = vpop.f32.mrf.mxu0
    %v825 = vadd.f32 %v800, %v824
    %826 = vdwg.mxu0
    %v827 = vadd.f32 %v270, %v455
    %v828 = vadd.f32 %v827, %v640
    %v829 = vadd.f32 %v828, %v825
    %830 = vadd.xlane.f32.xlu0 %v829
    %v831 = vpop.xlane.xlu0 %830
    %v832 = vmul.f32 %v270, %v270
    %v833 = vmul.f32 %v455, %v455
    %v834 = vmul.f32 %v640, %v640
    %v835 = vmul.f32 %v825, %v825
    %v836 = vadd.f32 %v832, %v833
    %v837 = vadd.f32 %v836, %v834
    %v838 = vadd.f32 %v837, %v835
    %839 = vadd.xlane.f32.xlu0 %v838
    %v840 = vpop.xlane.xlu0 %839
    %v841 = vmul.f32 %v831, 0.001953125
    %v842 = vmul.f32 %v840, 0.001953125
    %v843 = vmul.f32 %v841, %v841
    %v844 = vsub.f32 %v842, %v843
    %v845 = vsub.f32 %v270, %v841
    %v846 = vsub.f32 %v455, %v841
    %v847 = vsub.f32 %v640, %v841
    %v848 = vsub.f32 %v825, %v841
    %v849 = vadd.f32 %v844, 1e-05
    %v850 = vrsqrt.pop %v849
    %v851 = vmul.f32 %v850, %v849
    %v852 = vmul.f32 %v851, %v850
    %v853 = vmul.f32 0.5, %v852
    %v854 = vsub.f32 1.5, %v853
    %v855 = vmul.f32 %v850, %v854
    %vm856 = vweird.f32 %v849
    %vm857 = vweird.f32 %v850
    %vm858 = vmor %vm856, %vm857
    %v859 = vsel %vm858, %v850, %v855
    %v860 = vmul.f32 %v845, %v859
    %v861 = vmul.f32 %v846, %v859
    %v862 = vmul.f32 %v847, %v859
    %v863 = vmul.f32 %v848, %v859
    %865 = vset.pattern.permute.xlu0 0
    %866 = vperm.xlu0 %865, %v54
    %v867 = vpop.permute.xlu0 %866
    %v869 = vmul.f32 %v860, %v867
    %v870 = vmul.f32 %v861, %v867
    %v871 = vmul.f32 %v862, %v867
    %v872 = vmul.f32 %v863, %v867
    %873 = vset.pattern.permute.xlu0 1
    %874 = vperm.xlu0 %873, %v54
    %v875 = vpop.permute.xlu0 %874
    %v877 = vadd.f32 %v869, %v875
    %v878 = vadd.f32 %v870, %v875
    %v879 = vadd.f32 %v871, %v875
    %v880 = vadd.f32 %v872, %v875
    %v881 = vmax.f32 %v877, 0.0
    %v882 = vmax.f32 %v878, 0.0
    %v883 = vmax.f32 %v879, 0.0
    %v884 = vmax.f32 %v880, 0.0
    %886 = vrot.lane.b32.xlu0 %v884, 17
    %v887 = vpop.permute.xlu0 %886
    %892 = vrot.lane.b32.xlu0 %v881, 17
    %v893 = vpop.permute.xlu0 %892
    %894 = vrot.lane.b32.xlu0 %v882, 17
    %v895 = vpop.permute.xlu0 %894
    %896 = vrot.lane.b32.xlu0 %v883, 17
    %v897 = vpop.permute.xlu0 %896
    %vm898 = vcmask 138240
    %v899 = vsel %vm898, %v893, %v895
    %v900 = vsel %vm898, %v895, %v897
    %v901 = vsel %vm898, %v897, %v887
    %v906 = vsel %vm898, %v887, %v893
    %v907 = vperm.slane %v58, 0
    %v908 = vperm.slane %v59, 0
    %v909 = vperm.slane %v60, 0
    %v910 = vperm.slane %v61, 0
    %v911 = vmul.f32 %v906, %v907
    %v912 = vmul.f32 %v899, %v908
    %v913 = vmul.f32 %v900, %v909
    %v914 = vmul.f32 %v901, %v910
    %915 = vrot.lane.b32.xlu0 %v884, 16
    %v916 = vpop.permute.xlu0 %915
    %918 = vrot.lane.b32.xlu0 %v881, 16
    %v919 = vpop.permute.xlu0 %918
    %920 = vrot.lane.b32.xlu0 %v882, 16
    %v921 = vpop.permute.xlu0 %920
    %922 = vrot.lane.b32.xlu0 %v883, 16
    %v923 = vpop.permute.xlu0 %922
    %vm924 = vcmask 130048
    %v925 = vsel %vm924, %v919, %v921
    %v926 = vsel %vm924, %v921, %v923
    %v927 = vsel %vm924, %v923, %v916
    %v932 = vsel %vm924, %v916, %v919
    %v933 = vperm.slane %v58, 1
    %v934 = vperm.slane %v59, 1
    %v935 = vperm.slane %v60, 1
    %v936 = vperm.slane %v61, 1
    %v937 = vmul.f32 %v932, %v933
    %v938 = vmul.f32 %v925, %v934
    %v939 = vmul.f32 %v926, %v935
    %v940 = vmul.f32 %v927, %v936
    %941 = vrot.lane.b32.xlu0 %v884, 15
    %v942 = vpop.permute.xlu0 %941
    %944 = vrot.lane.b32.xlu0 %v881, 15
    %v945 = vpop.permute.xlu0 %944
    %946 = vrot.lane.b32.xlu0 %v882, 15
    %v947 = vpop.permute.xlu0 %946
    %948 = vrot.lane.b32.xlu0 %v883, 15
    %v949 = vpop.permute.xlu0 %948
    %vm950 = vcmask 121856
    %v951 = vsel %vm950, %v945, %v947
    %v952 = vsel %vm950, %v947, %v949
    %v953 = vsel %vm950, %v949, %v942
    %v958 = vsel %vm950, %v942, %v945
    %v959 = vperm.slane %v58, 2
    %v960 = vperm.slane %v59, 2
    %v961 = vperm.slane %v60, 2
    %v962 = vperm.slane %v61, 2
    %v963 = vmul.f32 %v958, %v959
    %v964 = vmul.f32 %v951, %v960
    %v965 = vmul.f32 %v952, %v961
    %v966 = vmul.f32 %v953, %v962
    %967 = vrot.lane.b32.xlu0 %v884, 1
    %v968 = vpop.permute.xlu0 %967
    %970 = vrot.lane.b32.xlu0 %v881, 1
    %v971 = vpop.permute.xlu0 %970
    %972 = vrot.lane.b32.xlu0 %v882, 1
    %v973 = vpop.permute.xlu0 %972
    %974 = vrot.lane.b32.xlu0 %v883, 1
    %v975 = vpop.permute.xlu0 %974
    %vm976 = vcmask 7168
    %v977 = vsel %vm976, %v971, %v973
    %v978 = vsel %vm976, %v973, %v975
    %v979 = vsel %vm976, %v975, %v968
    %v984 = vsel %vm976, %v968, %v971
    %v985 = vperm.slane %v58, 3
    %v986 = vperm.slane %v59, 3
    %v987 = vperm.slane %v60, 3
    %v988 = vperm.slane %v61, 3
    %v989 = vmul.f32 %v984, %v985
    %v990 = vmul.f32 %v977, %v986
    %v991 = vmul.f32 %v978, %v987
    %v992 = vmul.f32 %v979, %v988
    %993 = vrot.lane.b32.xlu0 %v881, 127
    %v994 = vpop.permute.xlu0 %993
    %995 = vrot.lane.b32.xlu0 %v882, 127
    %v996 = vpop.permute.xlu0 %995
    %997 = vrot.lane.b32.xlu0 %v883, 127
    %v998 = vpop.permute.xlu0 %997
    %999 = vrot.lane.b32.xlu0 %v884, 127
    %v1000 = vpop.permute.xlu0 %999
    %vm1001 = vcmask 1039360
    %v1002 = vsel %vm1001, %v994, %v996
    %v1003 = vsel %vm1001, %v996, %v998
    %v1004 = vsel %vm1001, %v998, %v1000
    %v1010 = vsel %vm1001, %v1000, %v994
    %v1011 = vperm.slane %v58, 5
    %v1012 = vperm.slane %v59, 5
    %v1013 = vperm.slane %v60, 5
    %v1014 = vperm.slane %v61, 5
    %v1015 = vmul.f32 %v1002, %v1011
    %v1016 = vmul.f32 %v1003, %v1012
    %v1017 = vmul.f32 %v1004, %v1013
    %v1018 = vmul.f32 %v1010, %v1014
    %1019 = vrot.lane.b32.xlu0 %v881, 113
    %v1020 = vpop.permute.xlu0 %1019
    %1021 = vrot.lane.b32.xlu0 %v882, 113
    %v1022 = vpop.permute.xlu0 %1021
    %1023 = vrot.lane.b32.xlu0 %v883, 113
    %v1024 = vpop.permute.xlu0 %1023
    %1025 = vrot.lane.b32.xlu0 %v884, 113
    %v1026 = vpop.permute.xlu0 %1025
    %vm1027 = vcmask 924672
    %v1028 = vsel %vm1027, %v1020, %v1022
    %v1029 = vsel %vm1027, %v1022, %v1024
    %v1030 = vsel %vm1027, %v1024, %v1026
    %v1036 = vsel %vm1027, %v1026, %v1020
    %v1037 = vperm.slane %v58, 6
    %v1038 = vperm.slane %v59, 6
    %v1039 = vperm.slane %v60, 6
    %v1040 = vperm.slane %v61, 6
    %v1041 = vmul.f32 %v1028, %v1037
    %v1042 = vmul.f32 %v1029, %v1038
    %v1043 = vmul.f32 %v1030, %v1039
    %v1044 = vmul.f32 %v1036, %v1040
    %1045 = vrot.lane.b32.xlu0 %v881, 112
    %v1046 = vpop.permute.xlu0 %1045
    %1047 = vrot.lane.b32.xlu0 %v882, 112
    %v1048 = vpop.permute.xlu0 %1047
    %1049 = vrot.lane.b32.xlu0 %v883, 112
    %v1050 = vpop.permute.xlu0 %1049
    %1051 = vrot.lane.b32.xlu0 %v884, 112
    %v1052 = vpop.permute.xlu0 %1051
    %vm1053 = vcmask 916480
    %v1054 = vsel %vm1053, %v1046, %v1048
    %v1055 = vsel %vm1053, %v1048, %v1050
    %v1056 = vsel %vm1053, %v1050, %v1052
    %v1062 = vsel %vm1053, %v1052, %v1046
    %v1063 = vperm.slane %v58, 7
    %v1064 = vperm.slane %v59, 7
    %v1065 = vperm.slane %v60, 7
    %v1066 = vperm.slane %v61, 7
    %v1067 = vmul.f32 %v1054, %v1063
    %v1068 = vmul.f32 %v1055, %v1064
    %v1069 = vmul.f32 %v1056, %v1065
    %v1070 = vmul.f32 %v1062, %v1066
    %1071 = vrot.lane.b32.xlu0 %v881, 111
    %v1072 = vpop.permute.xlu0 %1071
    %1073 = vrot.lane.b32.xlu0 %v882, 111
    %v1074 = vpop.permute.xlu0 %1073
    %1075 = vrot.lane.b32.xlu0 %v883, 111
    %v1076 = vpop.permute.xlu0 %1075
    %1077 = vrot.lane.b32.xlu0 %v884, 111
    %v1078 = vpop.permute.xlu0 %1077
    %vm1079 = vcmask 908288
    %v1080 = vsel %vm1079, %v1072, %v1074
    %v1081 = vsel %vm1079, %v1074, %v1076
    %v1082 = vsel %vm1079, %v1076, %v1078
    %v1088 = vsel %vm1079, %v1078, %v1072
    %v1089 = vperm.slane %v62, 0
    %v1090 = vperm.slane %v63, 0
    %v1091 = vperm.slane %v64, 0
    %v1092 = vperm.slane %v65, 0
    %v1093 = vmul.f32 %v1080, %v1089
    %v1094 = vmul.f32 %v1081, %v1090
    %v1095 = vmul.f32 %v1082, %v1091
    %v1096 = vmul.f32 %v1088, %v1092
    %v1097 = vld [vmem:[#allocation5] sm:$0xff]
    %vm1098 = vcmask 588800
    %v1100 = vsel %vm1098, %v1097, 0
    %1102 = vmatpush.msra.mxu0 0.0
    %1103 = vmatpush.msra.mxu0 0.0
    %1104 = vmatpush.msra.mxu0 0.0
    %1105 = vmatpush.msra.mxu0 0.0
    %1106 = vmatpush.msra.mxu0 0.0
    %1107 = vmatpush.msra.mxu0 0.0
    %1108 = vmatpush.msra.mxu0 0.0
    %v1109 = vand.u32 %v1093, 4294901760
    %1110 = vmatpush.msra.mxu0 %v1109
    %v1111 = vand.u32 %v1067, 4294901760
    %1112 = vmatpush.msra.mxu0 %v1111
    %v1113 = vand.u32 %v1041, 4294901760
    %1114 = vmatpush.msra.mxu0 %v1113
    %v1115 = vand.u32 %v1015, 4294901760
    %1116 = vmatpush.msra.mxu0 %v1115
    %v1117 = vand.u32 %v881, 4294901760
    %1118 = vmatpush.msra.mxu0 %v1117
    %v1119 = vand.u32 %v989, 4294901760
    %1120 = vmatpush.msra.mxu0 %v1119
    %v1121 = vand.u32 %v963, 4294901760
    %1122 = vmatpush.msra.mxu0 %v1121
    %v1123 = vand.u32 %v937, 4294901760
    %1124 = vmatpush.msra.mxu0 %v1123
    %v1125 = vand.u32 %v911, 4294901760
    %1126 = vmatpush.msra.mxu0 %v1125
    %v1127 = vand.u32 %v1100, 4294901760
    %v1128 = vsub.f32 %v1100, %v1127
    %v1129 = vand.u32 %v1128, 4294901760
    %v1130 = vsub.f32 %v1128, %v1129
    %v1131 = vand.u32 %v1130, 4294901760
    %1132 = vmatmul.f32.gmra.mxu0 %v1131
    %v1133 = vpop.f32.mrf.mxu0
    %v1134 = vadd.f32 0.0, %v1133
    %1135 = vdwg.mxu0
    %1136 = vmatpush.msra.mxu0 0.0
    %1137 = vmatpush.msra.mxu0 0.0
    %1138 = vmatpush.msra.mxu0 0.0
    %1139 = vmatpush.msra.mxu0 0.0
    %1140 = vmatpush.msra.mxu0 0.0
    %1141 = vmatpush.msra.mxu0 0.0
    %1142 = vmatpush.msra.mxu0 0.0
    %v1143 = vand.u32 %v1093, 4294901760
    %v1144 = vsub.f32 %v1093, %v1143
    %v1145 = vand.u32 %v1144, 4294901760
    %v1146 = vsub.f32 %v1144, %v1145
    %v1147 = vand.u32 %v1146, 4294901760
    %1148 = vmatpush.msra.mxu0 %v1147
    %v1149 = vand.u32 %v1067, 4294901760
    %v1150 = vsub.f32 %v1067, %v1149
    %v1151 = vand.u32 %v1150, 4294901760
    %v1152 = vsub.f32 %v1150, %v1151
    %v1153 = vand.u32 %v1152, 4294901760
    %1154 = vmatpush.msra.mxu0 %v1153
    %v1155 = vand.u32 %v1041, 4294901760
    %v1156 = vsub.f32 %v1041, %v1155
    %v1157 = vand.u32 %v1156, 4294901760
    %v1158 = vsub.f32 %v1156, %v1157
    %v1159 = vand.u32 %v1158, 4294901760
    %1160 = vmatpush.msra.mxu0 %v1159
    %v1161 = vand.u32 %v1015, 4294901760
    %v1162 = vsub.f32 %v1015, %v1161
    %v1163 = vand.u32 %v1162, 4294901760
    %v1164 = vsub.f32 %v1162, %v1163
    %v1165 = vand.u32 %v1164, 4294901760
    %1166 = vmatpush.msra.mxu0 %v1165
    %v1167 = vand.u32 %v881, 4294901760
    %v1168 = vsub.f32 %v881, %v1167
    %v1169 = vand.u32 %v1168, 4294901760
    %v1170 = vsub.f32 %v1168, %v1169
    %v1171 = vand.u32 %v1170, 4294901760
    %1172 = vmatpush.msra.mxu0 %v1171
    %v1173 = vand.u32 %v989, 4294901760
    %v1174 = vsub.f32 %v989, %v1173
    %v1175 = vand.u32 %v1174, 4294901760
    %v1176 = vsub.f32 %v1174, %v1175
    %v1177 = vand.u32 %v1176, 4294901760
    %1178 = vmatpush.msra.mxu0 %v1177
    %v1179 = vand.u32 %v963, 4294901760
    %v1180 = vsub.f32 %v963, %v1179
    %v1181 = vand.u32 %v1180, 4294901760
    %v1182 = vsub.f32 %v1180, %v1181
    %v1183 = vand.u32 %v1182, 4294901760
    %1184 = vmatpush.msra.mxu0 %v1183
    %v1185 = vand.u32 %v937, 4294901760
    %v1186 = vsub.f32 %v937, %v1185
    %v1187 = vand.u32 %v1186, 4294901760
    %v1188 = vsub.f32 %v1186, %v1187
    %v1189 = vand.u32 %v1188, 4294901760
    %1190 = vmatpush.msra.mxu0 %v1189
    %v1191 = vand.u32 %v911, 4294901760
    %v1192 = vsub.f32 %v911, %v1191
    %v1193 = vand.u32 %v1192, 4294901760
    %v1194 = vsub.f32 %v1192, %v1193
    %v1195 = vand.u32 %v1194, 4294901760
    %1196 = vmatpush.msra.mxu0 %v1195
    %v1197 = vand.u32 %v1100, 4294901760
    %1198 = vmatmul.f32.gmra.mxu0 %v1197
    %v1199 = vpop.f32.mrf.mxu0
    %v1200 = vadd.f32 %v1134, %v1199
    %1201 = vdwg.mxu0
    %1202 = vmatpush.msra.mxu0 0.0
    %1203 = vmatpush.msra.mxu0 0.0
    %1204 = vmatpush.msra.mxu0 0.0
    %1205 = vmatpush.msra.mxu0 0.0
    %1206 = vmatpush.msra.mxu0 0.0
    %1207 = vmatpush.msra.mxu0 0.0
    %1208 = vmatpush.msra.mxu0 0.0
    %v1209 = vand.u32 %v1093, 4294901760
    %v1210 = vsub.f32 %v1093, %v1209
    %1211 = vmatpush.msra.mxu0 %v1210
    %v1212 = vand.u32 %v1067, 4294901760
    %v1213 = vsub.f32 %v1067, %v1212
    %1214 = vmatpush.msra.mxu0 %v1213
    %v1215 = vand.u32 %v1041, 4294901760
    %v1216 = vsub.f32 %v1041, %v1215
    %1217 = vmatpush.msra.mxu0 %v1216
    %v1218 = vand.u32 %v1015, 4294901760
    %v1219 = vsub.f32 %v1015, %v1218
    %1220 = vmatpush.msra.mxu0 %v1219
    %v1221 = vand.u32 %v881, 4294901760
    %v1222 = vsub.f32 %v881, %v1221
    %1223 = vmatpush.msra.mxu0 %v1222
    %v1224 = vand.u32 %v989, 4294901760
    %v1225 = vsub.f32 %v989, %v1224
    %1226 = vmatpush.msra.mxu0 %v1225
    %v1227 = vand.u32 %v963, 4294901760
    %v1228 = vsub.f32 %v963, %v1227
    %1229 = vmatpush.msra.mxu0 %v1228
    %v1230 = vand.u32 %v937, 4294901760
    %v1231 = vsub.f32 %v937, %v1230
    %1232 = vmatpush.msra.mxu0 %v1231
    %v1233 = vand.u32 %v911, 4294901760
    %v1234 = vsub.f32 %v911, %v1233
    %1235 = vmatpush.msra.mxu0 %v1234
    %v1236 = vand.u32 %v1100, 4294901760
    %v1237 = vsub.f32 %v1100, %v1236
    %1238 = vmatmul.f32.gmra.mxu0 %v1237
    %v1239 = vpop.f32.mrf.mxu0
    %v1240 = vadd.f32 %v1200, %v1239
    %1241 = vdwg.mxu0
    %1242 = vmatpush.msra.mxu0 0.0
    %1243 = vmatpush.msra.mxu0 0.0
    %1244 = vmatpush.msra.mxu0 0.0
    %1245 = vmatpush.msra.mxu0 0.0
    %1246 = vmatpush.msra.mxu0 0.0
    %1247 = vmatpush.msra.mxu0 0.0
    %1248 = vmatpush.msra.mxu0 0.0
    %v1249 = vand.u32 %v1093, 4294901760
    %1250 = vmatpush.msra.mxu0 %v1249
    %v1251 = vand.u32 %v1067, 4294901760
    %1252 = vmatpush.msra.mxu0 %v1251
    %v1253 = vand.u32 %v1041, 4294901760
    %1254 = vmatpush.msra.mxu0 %v1253
    %v1255 = vand.u32 %v1015, 4294901760
    %1256 = vmatpush.msra.mxu0 %v1255
    %v1257 = vand.u32 %v881, 4294901760
    %1258 = vmatpush.msra.mxu0 %v1257
    %v1259 = vand.u32 %v989, 4294901760
    %1260 = vmatpush.msra.mxu0 %v1259
    %v1261 = vand.u32 %v963, 4294901760
    %1262 = vmatpush.msra.mxu0 %v1261
    %v1263 = vand.u32 %v937, 4294901760
    %1264 = vmatpush.msra.mxu0 %v1263
    %v1265 = vand.u32 %v911, 4294901760
    %1266 = vmatpush.msra.mxu0 %v1265
    %v1267 = vand.u32 %v1100, 4294901760
    %v1268 = vsub.f32 %v1100, %v1267
    %v1269 = vand.u32 %v1268, 4294901760
    %1270 = vmatmul.f32.gmra.mxu0 %v1269
    %v1271 = vpop.f32.mrf.mxu0
    %v1272 = vadd.f32 %v1240, %v1271
    %1273 = vdwg.mxu0
    %1274 = vmatpush.msra.mxu0 0.0
    %1275 = vmatpush.msra.mxu0 0.0
    %1276 = vmatpush.msra.mxu0 0.0
    %1277 = vmatpush.msra.mxu0 0.0
    %1278 = vmatpush.msra.mxu0 0.0
    %1279 = vmatpush.msra.mxu0 0.0
    %1280 = vmatpush.msra.mxu0 0.0
    %v1281 = vand.u32 %v1093, 4294901760
    %v1282 = vsub.f32 %v1093, %v1281
    %v1283 = vand.u32 %v1282, 4294901760
    %1284 = vmatpush.msra.mxu0 %v1283
    %v1285 = vand.u32 %v1067, 4294901760
    %v1286 = vsub.f32 %v1067, %v1285
    %v1287 = vand.u32 %v1286, 4294901760
    %1288 = vmatpush.msra.mxu0 %v1287
    %v1289 = vand.u32 %v1041, 4294901760
    %v1290 = vsub.f32 %v1041, %v1289
    %v1291 = vand.u32 %v1290, 4294901760
    %1292 = vmatpush.msra.mxu0 %v1291
    %v1293 = vand.u32 %v1015, 4294901760
    %v1294 = vsub.f32 %v1015, %v1293
    %v1295 = vand.u32 %v1294, 4294901760
    %1296 = vmatpush.msra.mxu0 %v1295
    %v1297 = vand.u32 %v881, 4294901760
    %v1298 = vsub.f32 %v881, %v1297
    %v1299 = vand.u32 %v1298, 4294901760
    %1300 = vmatpush.msra.mxu0 %v1299
    %v1301 = vand.u32 %v989, 4294901760
    %v1302 = vsub.f32 %v989, %v1301
    %v1303 = vand.u32 %v1302, 4294901760
    %1304 = vmatpush.msra.mxu0 %v1303
    %v1305 = vand.u32 %v963, 4294901760
    %v1306 = vsub.f32 %v963, %v1305
    %v1307 = vand.u32 %v1306, 4294901760
    %1308 = vmatpush.msra.mxu0 %v1307
    %v1309 = vand.u32 %v937, 4294901760
    %v1310 = vsub.f32 %v937, %v1309
    %v1311 = vand.u32 %v1310, 4294901760
    %1312 = vmatpush.msra.mxu0 %v1311
    %v1313 = vand.u32 %v911, 4294901760
    %v1314 = vsub.f32 %v911, %v1313
    %v1315 = vand.u32 %v1314, 4294901760
    %1316 = vmatpush.msra.mxu0 %v1315
    %v1317 = vand.u32 %v1100, 4294901760
    %1318 = vmatmul.f32.gmra.mxu0 %v1317
    %v1319 = vpop.f32.mrf.mxu0
    %v1320 = vadd.f32 %v1272, %v1319
    %1321 = vdwg.mxu0
    %1322 = vmatpush.msra.mxu0 0.0
    %1323 = vmatpush.msra.mxu0 0.0
    %1324 = vmatpush.msra.mxu0 0.0
    %1325 = vmatpush.msra.mxu0 0.0
    %1326 = vmatpush.msra.mxu0 0.0
    %1327 = vmatpush.msra.mxu0 0.0
    %1328 = vmatpush.msra.mxu0 0.0
    %v1329 = vand.u32 %v1093, 4294901760
    %1330 = vmatpush.msra.mxu0 %v1329
    %v1331 = vand.u32 %v1067, 4294901760
    %1332 = vmatpush.msra.mxu0 %v1331
    %v1333 = vand.u32 %v1041, 4294901760
    %1334 = vmatpush.msra.mxu0 %v1333
    %v1335 = vand.u32 %v1015, 4294901760
    %1336 = vmatpush.msra.mxu0 %v1335
    %v1337 = vand.u32 %v881, 4294901760
    %1338 = vmatpush.msra.mxu0 %v1337
    %v1339 = vand.u32 %v989, 4294901760
    %1340 = vmatpush.msra.mxu0 %v1339
    %v1341 = vand.u32 %v963, 4294901760
    %1342 = vmatpush.msra.mxu0 %v1341
    %v1343 = vand.u32 %v937, 4294901760
    %1344 = vmatpush.msra.mxu0 %v1343
    %v1345 = vand.u32 %v911, 4294901760
    %1346 = vmatpush.msra.mxu0 %v1345
    %v1347 = vand.u32 %v1100, 4294901760
    %1348 = vmatmul.f32.gmra.mxu0 %v1347
    %v1349 = vpop.f32.mrf.mxu0
    %v1350 = vadd.f32 %v1320, %v1349
    %1351 = vdwg.mxu0
    %1352 = vmatpush.msra.mxu0 0.0
    %1353 = vmatpush.msra.mxu0 0.0
    %1354 = vmatpush.msra.mxu0 0.0
    %1355 = vmatpush.msra.mxu0 0.0
    %1356 = vmatpush.msra.mxu0 0.0
    %1357 = vmatpush.msra.mxu0 0.0
    %1358 = vmatpush.msra.mxu0 0.0
    %v1359 = vand.u32 %v1094, 4294901760
    %1360 = vmatpush.msra.mxu0 %v1359
    %v1361 = vand.u32 %v1068, 4294901760
    %1362 = vmatpush.msra.mxu0 %v1361
    %v1363 = vand.u32 %v1042, 4294901760
    %1364 = vmatpush.msra.mxu0 %v1363
    %v1365 = vand.u32 %v1016, 4294901760
    %1366 = vmatpush.msra.mxu0 %v1365
    %v1367 = vand.u32 %v882, 4294901760
    %1368 = vmatpush.msra.mxu0 %v1367
    %v1369 = vand.u32 %v990, 4294901760
    %1370 = vmatpush.msra.mxu0 %v1369
    %v1371 = vand.u32 %v964, 4294901760
    %1372 = vmatpush.msra.mxu0 %v1371
    %v1373 = vand.u32 %v938, 4294901760
    %1374 = vmatpush.msra.mxu0 %v1373
    %v1375 = vand.u32 %v912, 4294901760
    %1376 = vmatpush.msra.mxu0 %v1375
    %v1377 = vand.u32 %v1100, 4294901760
    %v1378 = vsub.f32 %v1100, %v1377
    %v1379 = vand.u32 %v1378, 4294901760
    %v1380 = vsub.f32 %v1378, %v1379
    %v1381 = vand.u32 %v1380, 4294901760
    %1382 = vmatmul.f32.gmra.mxu0 %v1381
    %v1383 = vpop.f32.mrf.mxu0
    %v1384 = vadd.f32 0.0, %v1383
    %1385 = vdwg.mxu0
    %1386 = vmatpush.msra.mxu0 0.0
    %1387 = vmatpush.msra.mxu0 0.0
    %1388 = vmatpush.msra.mxu0 0.0
    %1389 = vmatpush.msra.mxu0 0.0
    %1390 = vmatpush.msra.mxu0 0.0
    %1391 = vmatpush.msra.mxu0 0.0
    %1392 = vmatpush.msra.mxu0 0.0
    %v1393 = vand.u32 %v1094, 4294901760
    %v1394 = vsub.f32 %v1094, %v1393
    %v1395 = vand.u32 %v1394, 4294901760
    %v1396 = vsub.f32 %v1394, %v1395
    %v1397 = vand.u32 %v1396, 4294901760
    %1398 = vmatpush.msra.mxu0 %v1397
    %v1399 = vand.u32 %v1068, 4294901760
    %v1400 = vsub.f32 %v1068, %v1399
    %v1401 = vand.u32 %v1400, 4294901760
    %v1402 = vsub.f32 %v1400, %v1401
    %v1403 = vand.u32 %v1402, 4294901760
    %1404 = vmatpush.msra.mxu0 %v1403
    %v1405 = vand.u32 %v1042, 4294901760
    %v1406 = vsub.f32 %v1042, %v1405
    %v1407 = vand.u32 %v1406, 4294901760
    %v1408 = vsub.f32 %v1406, %v1407
    %v1409 = vand.u32 %v1408, 4294901760
    %1410 = vmatpush.msra.mxu0 %v1409
    %v1411 = vand.u32 %v1016, 4294901760
    %v1412 = vsub.f32 %v1016, %v1411
    %v1413 = vand.u32 %v1412, 4294901760
    %v1414 = vsub.f32 %v1412, %v1413
    %v1415 = vand.u32 %v1414, 4294901760
    %1416 = vmatpush.msra.mxu0 %v1415
    %v1417 = vand.u32 %v882, 4294901760
    %v1418 = vsub.f32 %v882, %v1417
    %v1419 = vand.u32 %v1418, 4294901760
    %v1420 = vsub.f32 %v1418, %v1419
    %v1421 = vand.u32 %v1420, 4294901760
    %1422 = vmatpush.msra.mxu0 %v1421
    %v1423 = vand.u32 %v990, 4294901760
    %v1424 = vsub.f32 %v990, %v1423
    %v1425 = vand.u32 %v1424, 4294901760
    %v1426 = vsub.f32 %v1424, %v1425
    %v1427 = vand.u32 %v1426, 4294901760
    %1428 = vmatpush.msra.mxu0 %v1427
    %v1429 = vand.u32 %v964, 4294901760
    %v1430 = vsub.f32 %v964, %v1429
    %v1431 = vand.u32 %v1430, 4294901760
    %v1432 = vsub.f32 %v1430, %v1431
    %v1433 = vand.u32 %v1432, 4294901760
    %1434 = vmatpush.msra.mxu0 %v1433
    %v1435 = vand.u32 %v938, 4294901760
    %v1436 = vsub.f32 %v938, %v1435
    %v1437 = vand.u32 %v1436, 4294901760
    %v1438 = vsub.f32 %v1436, %v1437
    %v1439 = vand.u32 %v1438, 4294901760
    %1440 = vmatpush.msra.mxu0 %v1439
    %v1441 = vand.u32 %v912, 4294901760
    %v1442 = vsub.f32 %v912, %v1441
    %v1443 = vand.u32 %v1442, 4294901760
    %v1444 = vsub.f32 %v1442, %v1443
    %v1445 = vand.u32 %v1444, 4294901760
    %1446 = vmatpush.msra.mxu0 %v1445
    %v1447 = vand.u32 %v1100, 4294901760
    %1448 = vmatmul.f32.gmra.mxu0 %v1447
    %v1449 = vpop.f32.mrf.mxu0
    %v1450 = vadd.f32 %v1384, %v1449
    %1451 = vdwg.mxu0
    %1452 = vmatpush.msra.mxu0 0.0
    %1453 = vmatpush.msra.mxu0 0.0
    %1454 = vmatpush.msra.mxu0 0.0
    %1455 = vmatpush.msra.mxu0 0.0
    %1456 = vmatpush.msra.mxu0 0.0
    %1457 = vmatpush.msra.mxu0 0.0
    %1458 = vmatpush.msra.mxu0 0.0
    %v1459 = vand.u32 %v1094, 4294901760
    %v1460 = vsub.f32 %v1094, %v1459
    %1461 = vmatpush.msra.mxu0 %v1460
    %v1462 = vand.u32 %v1068, 4294901760
    %v1463 = vsub.f32 %v1068, %v1462
    %1464 = vmatpush.msra.mxu0 %v1463
    %v1465 = vand.u32 %v1042, 4294901760
    %v1466 = vsub.f32 %v1042, %v1465
    %1467 = vmatpush.msra.mxu0 %v1466
    %v1468 = vand.u32 %v1016, 4294901760
    %v1469 = vsub.f32 %v1016, %v1468
    %1470 = vmatpush.msra.mxu0 %v1469
    %v1471 = vand.u32 %v882, 4294901760
    %v1472 = vsub.f32 %v882, %v1471
    %1473 = vmatpush.msra.mxu0 %v1472
    %v1474 = vand.u32 %v990, 4294901760
    %v1475 = vsub.f32 %v990, %v1474
    %1476 = vmatpush.msra.mxu0 %v1475
    %v1477 = vand.u32 %v964, 4294901760
    %v1478 = vsub.f32 %v964, %v1477
    %1479 = vmatpush.msra.mxu0 %v1478
    %v1480 = vand.u32 %v938, 4294901760
    %v1481 = vsub.f32 %v938, %v1480
    %1482 = vmatpush.msra.mxu0 %v1481
    %v1483 = vand.u32 %v912, 4294901760
    %v1484 = vsub.f32 %v912, %v1483
    %1485 = vmatpush.msra.mxu0 %v1484
    %v1486 = vand.u32 %v1100, 4294901760
    %v1487 = vsub.f32 %v1100, %v1486
    %1488 = vmatmul.f32.gmra.mxu0 %v1487
    %v1489 = vpop.f32.mrf.mxu0
    %v1490 = vadd.f32 %v1450, %v1489
    %1491 = vdwg.mxu0
    %1492 = vmatpush.msra.mxu0 0.0
    %1493 = vmatpush.msra.mxu0 0.0
    %1494 = vmatpush.msra.mxu0 0.0
    %1495 = vmatpush.msra.mxu0 0.0
    %1496 = vmatpush.msra.mxu0 0.0
    %1497 = vmatpush.msra.mxu0 0.0
    %1498 = vmatpush.msra.mxu0 0.0
    %v1499 = vand.u32 %v1094, 4294901760
    %1500 = vmatpush.msra.mxu0 %v1499
    %v1501 = vand.u32 %v1068, 4294901760
    %1502 = vmatpush.msra.mxu0 %v1501
    %v1503 = vand.u32 %v1042, 4294901760
    %1504 = vmatpush.msra.mxu0 %v1503
    %v1505 = vand.u32 %v1016, 4294901760
    %1506 = vmatpush.msra.mxu0 %v1505
    %v1507 = vand.u32 %v882, 4294901760
    %1508 = vmatpush.msra.mxu0 %v1507
    %v1509 = vand.u32 %v990, 4294901760
    %1510 = vmatpush.msra.mxu0 %v1509
    %v1511 = vand.u32 %v964, 4294901760
    %1512 = vmatpush.msra.mxu0 %v1511
    %v1513 = vand.u32 %v938, 4294901760
    %1514 = vmatpush.msra.mxu0 %v1513
    %v1515 = vand.u32 %v912, 4294901760
    %1516 = vmatpush.msra.mxu0 %v1515
    %v1517 = vand.u32 %v1100, 4294901760
    %v1518 = vsub.f32 %v1100, %v1517
    %v1519 = vand.u32 %v1518, 4294901760
    %1520 = vmatmul.f32.gmra.mxu0 %v1519
    %v1521 = vpop.f32.mrf.mxu0
    %v1522 = vadd.f32 %v1490, %v1521
    %1523 = vdwg.mxu0
    %1524 = vmatpush.msra.mxu0 0.0
    %1525 = vmatpush.msra.mxu0 0.0
    %1526 = vmatpush.msra.mxu0 0.0
    %1527 = vmatpush.msra.mxu0 0.0
    %1528 = vmatpush.msra.mxu0 0.0
    %1529 = vmatpush.msra.mxu0 0.0
    %1530 = vmatpush.msra.mxu0 0.0
    %v1531 = vand.u32 %v1094, 4294901760
    %v1532 = vsub.f32 %v1094, %v1531
    %v1533 = vand.u32 %v1532, 4294901760
    %1534 = vmatpush.msra.mxu0 %v1533
    %v1535 = vand.u32 %v1068, 4294901760
    %v1536 = vsub.f32 %v1068, %v1535
    %v1537 = vand.u32 %v1536, 4294901760
    %1538 = vmatpush.msra.mxu0 %v1537
    %v1539 = vand.u32 %v1042, 4294901760
    %v1540 = vsub.f32 %v1042, %v1539
    %v1541 = vand.u32 %v1540, 4294901760
    %1542 = vmatpush.msra.mxu0 %v1541
    %v1543 = vand.u32 %v1016, 4294901760
    %v1544 = vsub.f32 %v1016, %v1543
    %v1545 = vand.u32 %v1544, 4294901760
    %1546 = vmatpush.msra.mxu0 %v1545
    %v1547 = vand.u32 %v882, 4294901760
    %v1548 = vsub.f32 %v882, %v1547
    %v1549 = vand.u32 %v1548, 4294901760
    %1550 = vmatpush.msra.mxu0 %v1549
    %v1551 = vand.u32 %v990, 4294901760
    %v1552 = vsub.f32 %v990, %v1551
    %v1553 = vand.u32 %v1552, 4294901760
    %1554 = vmatpush.msra.mxu0 %v1553
    %v1555 = vand.u32 %v964, 4294901760
    %v1556 = vsub.f32 %v964, %v1555
    %v1557 = vand.u32 %v1556, 4294901760
    %1558 = vmatpush.msra.mxu0 %v1557
    %v1559 = vand.u32 %v938, 4294901760
    %v1560 = vsub.f32 %v938, %v1559
    %v1561 = vand.u32 %v1560, 4294901760
    %1562 = vmatpush.msra.mxu0 %v1561
    %v1563 = vand.u32 %v912, 4294901760
    %v1564 = vsub.f32 %v912, %v1563
    %v1565 = vand.u32 %v1564, 4294901760
    %1566 = vmatpush.msra.mxu0 %v1565
    %v1567 = vand.u32 %v1100, 4294901760
    %1568 = vmatmul.f32.gmra.mxu0 %v1567
    %v1569 = vpop.f32.mrf.mxu0
    %v1570 = vadd.f32 %v1522, %v1569
    %1571 = vdwg.mxu0
    %1572 = vmatpush.msra.mxu0 0.0
    %1573 = vmatpush.msra.mxu0 0.0
    %1574 = vmatpush.msra.mxu0 0.0
    %1575 = vmatpush.msra.mxu0 0.0
    %1576 = vmatpush.msra.mxu0 0.0
    %1577 = vmatpush.msra.mxu0 0.0
    %1578 = vmatpush.msra.mxu0 0.0
    %v1579 = vand.u32 %v1094, 4294901760
    %1580 = vmatpush.msra.mxu0 %v1579
    %v1581 = vand.u32 %v1068, 4294901760
    %1582 = vmatpush.msra.mxu0 %v1581
    %v1583 = vand.u32 %v1042, 4294901760
    %1584 = vmatpush.msra.mxu0 %v1583
    %v1585 = vand.u32 %v1016, 4294901760
    %1586 = vmatpush.msra.mxu0 %v1585
    %v1587 = vand.u32 %v882, 4294901760
    %1588 = vmatpush.msra.mxu0 %v1587
    %v1589 = vand.u32 %v990, 4294901760
    %1590 = vmatpush.msra.mxu0 %v1589
    %v1591 = vand.u32 %v964, 4294901760
    %1592 = vmatpush.msra.mxu0 %v1591
    %v1593 = vand.u32 %v938, 4294901760
    %1594 = vmatpush.msra.mxu0 %v1593
    %v1595 = vand.u32 %v912, 4294901760
    %1596 = vmatpush.msra.mxu0 %v1595
    %v1597 = vand.u32 %v1100, 4294901760
    %1598 = vmatmul.f32.gmra.mxu0 %v1597
    %v1599 = vpop.f32.mrf.mxu0
    %v1600 = vadd.f32 %v1570, %v1599
    %1601 = vdwg.mxu0
    %1602 = vmatpush.msra.mxu0 0.0
    %1603 = vmatpush.msra.mxu0 0.0
    %1604 = vmatpush.msra.mxu0 0.0
    %1605 = vmatpush.msra.mxu0 0.0
    %1606 = vmatpush.msra.mxu0 0.0
    %1607 = vmatpush.msra.mxu0 0.0
    %1608 = vmatpush.msra.mxu0 0.0
    %v1609 = vand.u32 %v1095, 4294901760
    %1610 = vmatpush.msra.mxu0 %v1609
    %v1611 = vand.u32 %v1069, 4294901760
    %1612 = vmatpush.msra.mxu0 %v1611
    %v1613 = vand.u32 %v1043, 4294901760
    %1614 = vmatpush.msra.mxu0 %v1613
    %v1615 = vand.u32 %v1017, 4294901760
    %1616 = vmatpush.msra.mxu0 %v1615
    %v1617 = vand.u32 %v883, 4294901760
    %1618 = vmatpush.msra.mxu0 %v1617
    %v1619 = vand.u32 %v991, 4294901760
    %1620 = vmatpush.msra.mxu0 %v1619
    %v1621 = vand.u32 %v965, 4294901760
    %1622 = vmatpush.msra.mxu0 %v1621
    %v1623 = vand.u32 %v939, 4294901760
    %1624 = vmatpush.msra.mxu0 %v1623
    %v1625 = vand.u32 %v913, 4294901760
    %1626 = vmatpush.msra.mxu0 %v1625
    %v1627 = vand.u32 %v1100, 4294901760
    %v1628 = vsub.f32 %v1100, %v1627
    %v1629 = vand.u32 %v1628, 4294901760
    %v1630 = vsub.f32 %v1628, %v1629
    %v1631 = vand.u32 %v1630, 4294901760
    %1632 = vmatmul.f32.gmra.mxu0 %v1631
    %v1633 = vpop.f32.mrf.mxu0
    %v1634 = vadd.f32 0.0, %v1633
    %1635 = vdwg.mxu0
    %1636 = vmatpush.msra.mxu0 0.0
    %1637 = vmatpush.msra.mxu0 0.0
    %1638 = vmatpush.msra.mxu0 0.0
    %1639 = vmatpush.msra.mxu0 0.0
    %1640 = vmatpush.msra.mxu0 0.0
    %1641 = vmatpush.msra.mxu0 0.0
    %1642 = vmatpush.msra.mxu0 0.0
    %v1643 = vand.u32 %v1095, 4294901760
    %v1644 = vsub.f32 %v1095, %v1643
    %v1645 = vand.u32 %v1644, 4294901760
    %v1646 = vsub.f32 %v1644, %v1645
    %v1647 = vand.u32 %v1646, 4294901760
    %1648 = vmatpush.msra.mxu0 %v1647
    %v1649 = vand.u32 %v1069, 4294901760
    %v1650 = vsub.f32 %v1069, %v1649
    %v1651 = vand.u32 %v1650, 4294901760
    %v1652 = vsub.f32 %v1650, %v1651
    %v1653 = vand.u32 %v1652, 4294901760
    %1654 = vmatpush.msra.mxu0 %v1653
    %v1655 = vand.u32 %v1043, 4294901760
    %v1656 = vsub.f32 %v1043, %v1655
    %v1657 = vand.u32 %v1656, 4294901760
    %v1658 = vsub.f32 %v1656, %v1657
    %v1659 = vand.u32 %v1658, 4294901760
    %1660 = vmatpush.msra.mxu0 %v1659
    %v1661 = vand.u32 %v1017, 4294901760
    %v1662 = vsub.f32 %v1017, %v1661
    %v1663 = vand.u32 %v1662, 4294901760
    %v1664 = vsub.f32 %v1662, %v1663
    %v1665 = vand.u32 %v1664, 4294901760
    %1666 = vmatpush.msra.mxu0 %v1665
    %v1667 = vand.u32 %v883, 4294901760
    %v1668 = vsub.f32 %v883, %v1667
    %v1669 = vand.u32 %v1668, 4294901760
    %v1670 = vsub.f32 %v1668, %v1669
    %v1671 = vand.u32 %v1670, 4294901760
    %1672 = vmatpush.msra.mxu0 %v1671
    %v1673 = vand.u32 %v991, 4294901760
    %v1674 = vsub.f32 %v991, %v1673
    %v1675 = vand.u32 %v1674, 4294901760
    %v1676 = vsub.f32 %v1674, %v1675
    %v1677 = vand.u32 %v1676, 4294901760
    %1678 = vmatpush.msra.mxu0 %v1677
    %v1679 = vand.u32 %v965, 4294901760
    %v1680 = vsub.f32 %v965, %v1679
    %v1681 = vand.u32 %v1680, 4294901760
    %v1682 = vsub.f32 %v1680, %v1681
    %v1683 = vand.u32 %v1682, 4294901760
    %1684 = vmatpush.msra.mxu0 %v1683
    %v1685 = vand.u32 %v939, 4294901760
    %v1686 = vsub.f32 %v939, %v1685
    %v1687 = vand.u32 %v1686, 4294901760
    %v1688 = vsub.f32 %v1686, %v1687
    %v1689 = vand.u32 %v1688, 4294901760
    %1690 = vmatpush.msra.mxu0 %v1689
    %v1691 = vand.u32 %v913, 4294901760
    %v1692 = vsub.f32 %v913, %v1691
    %v1693 = vand.u32 %v1692, 4294901760
    %v1694 = vsub.f32 %v1692, %v1693
    %v1695 = vand.u32 %v1694, 4294901760
    %1696 = vmatpush.msra.mxu0 %v1695
    %v1697 = vand.u32 %v1100, 4294901760
    %1698 = vmatmul.f32.gmra.mxu0 %v1697
    %v1699 = vpop.f32.mrf.mxu0
    %v1700 = vadd.f32 %v1634, %v1699
    %1701 = vdwg.mxu0
    %1702 = vmatpush.msra.mxu0 0.0
    %1703 = vmatpush.msra.mxu0 0.0
    %1704 = vmatpush.msra.mxu0 0.0
    %1705 = vmatpush.msra.mxu0 0.0
    %1706 = vmatpush.msra.mxu0 0.0
    %1707 = vmatpush.msra.mxu0 0.0
    %1708 = vmatpush.msra.mxu0 0.0
    %v1709 = vand.u32 %v1095, 4294901760
    %v1710 = vsub.f32 %v1095, %v1709
    %1711 = vmatpush.msra.mxu0 %v1710
    %v1712 = vand.u32 %v1069, 4294901760
    %v1713 = vsub.f32 %v1069, %v1712
    %1714 = vmatpush.msra.mxu0 %v1713
    %v1715 = vand.u32 %v1043, 4294901760
    %v1716 = vsub.f32 %v1043, %v1715
    %1717 = vmatpush.msra.mxu0 %v1716
    %v1718 = vand.u32 %v1017, 4294901760
    %v1719 = vsub.f32 %v1017, %v1718
    %1720 = vmatpush.msra.mxu0 %v1719
    %v1721 = vand.u32 %v883, 4294901760
    %v1722 = vsub.f32 %v883, %v1721
    %1723 = vmatpush.msra.mxu0 %v1722
    %v1724 = vand.u32 %v991, 4294901760
    %v1725 = vsub.f32 %v991, %v1724
    %1726 = vmatpush.msra.mxu0 %v1725
    %v1727 = vand.u32 %v965, 4294901760
    %v1728 = vsub.f32 %v965, %v1727
    %1729 = vmatpush.msra.mxu0 %v1728
    %v1730 = vand.u32 %v939, 4294901760
    %v1731 = vsub.f32 %v939, %v1730
    %1732 = vmatpush.msra.mxu0 %v1731
    %v1733 = vand.u32 %v913, 4294901760
    %v1734 = vsub.f32 %v913, %v1733
    %1735 = vmatpush.msra.mxu0 %v1734
    %v1736 = vand.u32 %v1100, 4294901760
    %v1737 = vsub.f32 %v1100, %v1736
    %1738 = vmatmul.f32.gmra.mxu0 %v1737
    %v1739 = vpop.f32.mrf.mxu0
    %v1740 = vadd.f32 %v1700, %v1739
    %1741 = vdwg.mxu0
    %1742 = vmatpush.msra.mxu0 0.0
    %1743 = vmatpush.msra.mxu0 0.0
    %1744 = vmatpush.msra.mxu0 0.0
    %1745 = vmatpush.msra.mxu0 0.0
    %1746 = vmatpush.msra.mxu0 0.0
    %1747 = vmatpush.msra.mxu0 0.0
    %1748 = vmatpush.msra.mxu0 0.0
    %v1749 = vand.u32 %v1095, 4294901760
    %1750 = vmatpush.msra.mxu0 %v1749
    %v1751 = vand.u32 %v1069, 4294901760
    %1752 = vmatpush.msra.mxu0 %v1751
    %v1753 = vand.u32 %v1043, 4294901760
    %1754 = vmatpush.msra.mxu0 %v1753
    %v1755 = vand.u32 %v1017, 4294901760
    %1756 = vmatpush.msra.mxu0 %v1755
    %v1757 = vand.u32 %v883, 4294901760
    %1758 = vmatpush.msra.mxu0 %v1757
    %v1759 = vand.u32 %v991, 4294901760
    %1760 = vmatpush.msra.mxu0 %v1759
    %v1761 = vand.u32 %v965, 4294901760
    %1762 = vmatpush.msra.mxu0 %v1761
    %v1763 = vand.u32 %v939, 4294901760
    %1764 = vmatpush.msra.mxu0 %v1763
    %v1765 = vand.u32 %v913, 4294901760
    %1766 = vmatpush.msra.mxu0 %v1765
    %v1767 = vand.u32 %v1100, 4294901760
    %v1768 = vsub.f32 %v1100, %v1767
    %v1769 = vand.u32 %v1768, 4294901760
    %1770 = vmatmul.f32.gmra.mxu0 %v1769
    %v1771 = vpop.f32.mrf.mxu0
    %v1772 = vadd.f32 %v1740, %v1771
    %1773 = vdwg.mxu0
    %1774 = vmatpush.msra.mxu0 0.0
    %1775 = vmatpush.msra.mxu0 0.0
    %1776 = vmatpush.msra.mxu0 0.0
    %1777 = vmatpush.msra.mxu0 0.0
    %1778 = vmatpush.msra.mxu0 0.0
    %1779 = vmatpush.msra.mxu0 0.0
    %1780 = vmatpush.msra.mxu0 0.0
    %v1781 = vand.u32 %v1095, 4294901760
    %v1782 = vsub.f32 %v1095, %v1781
    %v1783 = vand.u32 %v1782, 4294901760
    %1784 = vmatpush.msra.mxu0 %v1783
    %v1785 = vand.u32 %v1069, 4294901760
    %v1786 = vsub.f32 %v1069, %v1785
    %v1787 = vand.u32 %v1786, 4294901760
    %1788 = vmatpush.msra.mxu0 %v1787
    %v1789 = vand.u32 %v1043, 4294901760
    %v1790 = vsub.f32 %v1043, %v1789
    %v1791 = vand.u32 %v1790, 4294901760
    %1792 = vmatpush.msra.mxu0 %v1791
    %v1793 = vand.u32 %v1017, 4294901760
    %v1794 = vsub.f32 %v1017, %v1793
    %v1795 = vand.u32 %v1794, 4294901760
    %1796 = vmatpush.msra.mxu0 %v1795
    %v1797 = vand.u32 %v883, 4294901760
    %v1798 = vsub.f32 %v883, %v1797
    %v1799 = vand.u32 %v1798, 4294901760
    %1800 = vmatpush.msra.mxu0 %v1799
    %v1801 = vand.u32 %v991, 4294901760
    %v1802 = vsub.f32 %v991, %v1801
    %v1803 = vand.u32 %v1802, 4294901760
    %1804 = vmatpush.msra.mxu0 %v1803
    %v1805 = vand.u32 %v965, 4294901760
    %v1806 = vsub.f32 %v965, %v1805
    %v1807 = vand.u32 %v1806, 4294901760
    %1808 = vmatpush.msra.mxu0 %v1807
    %v1809 = vand.u32 %v939, 4294901760
    %v1810 = vsub.f32 %v939, %v1809
    %v1811 = vand.u32 %v1810, 4294901760
    %1812 = vmatpush.msra.mxu0 %v1811
    %v1813 = vand.u32 %v913, 4294901760
    %v1814 = vsub.f32 %v913, %v1813
    %v1815 = vand.u32 %v1814, 4294901760
    %1816 = vmatpush.msra.mxu0 %v1815
    %v1817 = vand.u32 %v1100, 4294901760
    %1818 = vmatmul.f32.gmra.mxu0 %v1817
    %v1819 = vpop.f32.mrf.mxu0
    %v1820 = vadd.f32 %v1772, %v1819
    %1821 = vdwg.mxu0
    %1822 = vmatpush.msra.mxu0 0.0
    %1823 = vmatpush.msra.mxu0 0.0
    %1824 = vmatpush.msra.mxu0 0.0
    %1825 = vmatpush.msra.mxu0 0.0
    %1826 = vmatpush.msra.mxu0 0.0
    %1827 = vmatpush.msra.mxu0 0.0
    %1828 = vmatpush.msra.mxu0 0.0
    %v1829 = vand.u32 %v1095, 4294901760
    %1830 = vmatpush.msra.mxu0 %v1829
    %v1831 = vand.u32 %v1069, 4294901760
    %1832 = vmatpush.msra.mxu0 %v1831
    %v1833 = vand.u32 %v1043, 4294901760
    %1834 = vmatpush.msra.mxu0 %v1833
    %v1835 = vand.u32 %v1017, 4294901760
    %1836 = vmatpush.msra.mxu0 %v1835
    %v1837 = vand.u32 %v883, 4294901760
    %1838 = vmatpush.msra.mxu0 %v1837
    %v1839 = vand.u32 %v991, 4294901760
    %1840 = vmatpush.msra.mxu0 %v1839
    %v1841 = vand.u32 %v965, 4294901760
    %1842 = vmatpush.msra.mxu0 %v1841
    %v1843 = vand.u32 %v939, 4294901760
    %1844 = vmatpush.msra.mxu0 %v1843
    %v1845 = vand.u32 %v913, 4294901760
    %1846 = vmatpush.msra.mxu0 %v1845
    %v1847 = vand.u32 %v1100, 4294901760
    %1848 = vmatmul.f32.gmra.mxu0 %v1847
    %v1849 = vpop.f32.mrf.mxu0
    %v1850 = vadd.f32 %v1820, %v1849
    %1851 = vdwg.mxu0
    %1852 = vmatpush.msra.mxu0 0.0
    %1853 = vmatpush.msra.mxu0 0.0
    %1854 = vmatpush.msra.mxu0 0.0
    %1855 = vmatpush.msra.mxu0 0.0
    %1856 = vmatpush.msra.mxu0 0.0
    %1857 = vmatpush.msra.mxu0 0.0
    %1858 = vmatpush.msra.mxu0 0.0
    %v1859 = vand.u32 %v1096, 4294901760
    %1860 = vmatpush.msra.mxu0 %v1859
    %v1861 = vand.u32 %v1070, 4294901760
    %1862 = vmatpush.msra.mxu0 %v1861
    %v1863 = vand.u32 %v1044, 4294901760
    %1864 = vmatpush.msra.mxu0 %v1863
    %v1865 = vand.u32 %v1018, 4294901760
    %1866 = vmatpush.msra.mxu0 %v1865
    %v1867 = vand.u32 %v884, 4294901760
    %1868 = vmatpush.msra.mxu0 %v1867
    %v1869 = vand.u32 %v992, 4294901760
    %1870 = vmatpush.msra.mxu0 %v1869
    %v1871 = vand.u32 %v966, 4294901760
    %1872 = vmatpush.msra.mxu0 %v1871
    %v1873 = vand.u32 %v940, 4294901760
    %1874 = vmatpush.msra.mxu0 %v1873
    %v1875 = vand.u32 %v914, 4294901760
    %1876 = vmatpush.msra.mxu0 %v1875
    %v1877 = vand.u32 %v1100, 4294901760
    %v1878 = vsub.f32 %v1100, %v1877
    %v1879 = vand.u32 %v1878, 4294901760
    %v1880 = vsub.f32 %v1878, %v1879
    %v1881 = vand.u32 %v1880, 4294901760
    %1882 = vmatmul.f32.gmra.mxu0 %v1881
    %v1883 = vpop.f32.mrf.mxu0
    %v1884 = vadd.f32 0.0, %v1883
    %1885 = vdwg.mxu0
    %1886 = vmatpush.msra.mxu0 0.0
    %1887 = vmatpush.msra.mxu0 0.0
    %1888 = vmatpush.msra.mxu0 0.0
    %1889 = vmatpush.msra.mxu0 0.0
    %1890 = vmatpush.msra.mxu0 0.0
    %1891 = vmatpush.msra.mxu0 0.0
    %1892 = vmatpush.msra.mxu0 0.0
    %v1893 = vand.u32 %v1096, 4294901760
    %v1894 = vsub.f32 %v1096, %v1893
    %v1895 = vand.u32 %v1894, 4294901760
    %v1896 = vsub.f32 %v1894, %v1895
    %v1897 = vand.u32 %v1896, 4294901760
    %1898 = vmatpush.msra.mxu0 %v1897
    %v1899 = vand.u32 %v1070, 4294901760
    %v1900 = vsub.f32 %v1070, %v1899
    %v1901 = vand.u32 %v1900, 4294901760
    %v1902 = vsub.f32 %v1900, %v1901
    %v1903 = vand.u32 %v1902, 4294901760
    %1904 = vmatpush.msra.mxu0 %v1903
    %v1905 = vand.u32 %v1044, 4294901760
    %v1906 = vsub.f32 %v1044, %v1905
    %v1907 = vand.u32 %v1906, 4294901760
    %v1908 = vsub.f32 %v1906, %v1907
    %v1909 = vand.u32 %v1908, 4294901760
    %1910 = vmatpush.msra.mxu0 %v1909
    %v1911 = vand.u32 %v1018, 4294901760
    %v1912 = vsub.f32 %v1018, %v1911
    %v1913 = vand.u32 %v1912, 4294901760
    %v1914 = vsub.f32 %v1912, %v1913
    %v1915 = vand.u32 %v1914, 4294901760
    %1916 = vmatpush.msra.mxu0 %v1915
    %v1917 = vand.u32 %v884, 4294901760
    %v1918 = vsub.f32 %v884, %v1917
    %v1919 = vand.u32 %v1918, 4294901760
    %v1920 = vsub.f32 %v1918, %v1919
    %v1921 = vand.u32 %v1920, 4294901760
    %1922 = vmatpush.msra.mxu0 %v1921
    %v1923 = vand.u32 %v992, 4294901760
    %v1924 = vsub.f32 %v992, %v1923
    %v1925 = vand.u32 %v1924, 4294901760
    %v1926 = vsub.f32 %v1924, %v1925
    %v1927 = vand.u32 %v1926, 4294901760
    %1928 = vmatpush.msra.mxu0 %v1927
    %v1929 = vand.u32 %v966, 4294901760
    %v1930 = vsub.f32 %v966, %v1929
    %v1931 = vand.u32 %v1930, 4294901760
    %v1932 = vsub.f32 %v1930, %v1931
    %v1933 = vand.u32 %v1932, 4294901760
    %1934 = vmatpush.msra.mxu0 %v1933
    %v1935 = vand.u32 %v940, 4294901760
    %v1936 = vsub.f32 %v940, %v1935
    %v1937 = vand.u32 %v1936, 4294901760
    %v1938 = vsub.f32 %v1936, %v1937
    %v1939 = vand.u32 %v1938, 4294901760
    %1940 = vmatpush.msra.mxu0 %v1939
    %v1941 = vand.u32 %v914, 4294901760
    %v1942 = vsub.f32 %v914, %v1941
    %v1943 = vand.u32 %v1942, 4294901760
    %v1944 = vsub.f32 %v1942, %v1943
    %v1945 = vand.u32 %v1944, 4294901760
    %1946 = vmatpush.msra.mxu0 %v1945
    %v1947 = vand.u32 %v1100, 4294901760
    %1948 = vmatmul.f32.gmra.mxu0 %v1947
    %v1949 = vpop.f32.mrf.mxu0
    %v1950 = vadd.f32 %v1884, %v1949
    %1951 = vdwg.mxu0
    %1952 = vmatpush.msra.mxu0 0.0
    %1953 = vmatpush.msra.mxu0 0.0
    %1954 = vmatpush.msra.mxu0 0.0
    %1955 = vmatpush.msra.mxu0 0.0
    %1956 = vmatpush.msra.mxu0 0.0
    %1957 = vmatpush.msra.mxu0 0.0
    %1958 = vmatpush.msra.mxu0 0.0
    %v1959 = vand.u32 %v1096, 4294901760
    %v1960 = vsub.f32 %v1096, %v1959
    %1961 = vmatpush.msra.mxu0 %v1960
    %v1962 = vand.u32 %v1070, 4294901760
    %v1963 = vsub.f32 %v1070, %v1962
    %1964 = vmatpush.msra.mxu0 %v1963
    %v1965 = vand.u32 %v1044, 4294901760
    %v1966 = vsub.f32 %v1044, %v1965
    %1967 = vmatpush.msra.mxu0 %v1966
    %v1968 = vand.u32 %v1018, 4294901760
    %v1969 = vsub.f32 %v1018, %v1968
    %1970 = vmatpush.msra.mxu0 %v1969
    %v1971 = vand.u32 %v884, 4294901760
    %v1972 = vsub.f32 %v884, %v1971
    %1973 = vmatpush.msra.mxu0 %v1972
    %v1974 = vand.u32 %v992, 4294901760
    %v1975 = vsub.f32 %v992, %v1974
    %1976 = vmatpush.msra.mxu0 %v1975
    %v1977 = vand.u32 %v966, 4294901760
    %v1978 = vsub.f32 %v966, %v1977
    %1979 = vmatpush.msra.mxu0 %v1978
    %v1980 = vand.u32 %v940, 4294901760
    %v1981 = vsub.f32 %v940, %v1980
    %1982 = vmatpush.msra.mxu0 %v1981
    %v1983 = vand.u32 %v914, 4294901760
    %v1984 = vsub.f32 %v914, %v1983
    %1985 = vmatpush.msra.mxu0 %v1984
    %v1986 = vand.u32 %v1100, 4294901760
    %v1987 = vsub.f32 %v1100, %v1986
    %1988 = vmatmul.f32.gmra.mxu0 %v1987
    %v1989 = vpop.f32.mrf.mxu0
    %v1990 = vadd.f32 %v1950, %v1989
    %1991 = vdwg.mxu0
    %1992 = vmatpush.msra.mxu0 0.0
    %1993 = vmatpush.msra.mxu0 0.0
    %1994 = vmatpush.msra.mxu0 0.0
    %1995 = vmatpush.msra.mxu0 0.0
    %1996 = vmatpush.msra.mxu0 0.0
    %1997 = vmatpush.msra.mxu0 0.0
    %1998 = vmatpush.msra.mxu0 0.0
    %v1999 = vand.u32 %v1096, 4294901760
    %2000 = vmatpush.msra.mxu0 %v1999
    %v2001 = vand.u32 %v1070, 4294901760
    %2002 = vmatpush.msra.mxu0 %v2001
    %v2003 = vand.u32 %v1044, 4294901760
    %2004 = vmatpush.msra.mxu0 %v2003
    %v2005 = vand.u32 %v1018, 4294901760
    %2006 = vmatpush.msra.mxu0 %v2005
    %v2007 = vand.u32 %v884, 4294901760
    %2008 = vmatpush.msra.mxu0 %v2007
    %v2009 = vand.u32 %v992, 4294901760
    %2010 = vmatpush.msra.mxu0 %v2009
    %v2011 = vand.u32 %v966, 4294901760
    %2012 = vmatpush.msra.mxu0 %v2011
    %v2013 = vand.u32 %v940, 4294901760
    %2014 = vmatpush.msra.mxu0 %v2013
    %v2015 = vand.u32 %v914, 4294901760
    %2016 = vmatpush.msra.mxu0 %v2015
    %v2017 = vand.u32 %v1100, 4294901760
    %v2018 = vsub.f32 %v1100, %v2017
    %v2019 = vand.u32 %v2018, 4294901760
    %2020 = vmatmul.f32.gmra.mxu0 %v2019
    %v2021 = vpop.f32.mrf.mxu0
    %v2022 = vadd.f32 %v1990, %v2021
    %2023 = vdwg.mxu0
    %2024 = vmatpush.msra.mxu0 0.0
    %2025 = vmatpush.msra.mxu0 0.0
    %2026 = vmatpush.msra.mxu0 0.0
    %2027 = vmatpush.msra.mxu0 0.0
    %2028 = vmatpush.msra.mxu0 0.0
    %2029 = vmatpush.msra.mxu0 0.0
    %2030 = vmatpush.msra.mxu0 0.0
    %v2031 = vand.u32 %v1096, 4294901760
    %v2032 = vsub.f32 %v1096, %v2031
    %v2033 = vand.u32 %v2032, 4294901760
    %2034 = vmatpush.msra.mxu0 %v2033
    %v2035 = vand.u32 %v1070, 4294901760
    %v2036 = vsub.f32 %v1070, %v2035
    %v2037 = vand.u32 %v2036, 4294901760
    %2038 = vmatpush.msra.mxu0 %v2037
    %v2039 = vand.u32 %v1044, 4294901760
    %v2040 = vsub.f32 %v1044, %v2039
    %v2041 = vand.u32 %v2040, 4294901760
    %2042 = vmatpush.msra.mxu0 %v2041
    %v2043 = vand.u32 %v1018, 4294901760
    %v2044 = vsub.f32 %v1018, %v2043
    %v2045 = vand.u32 %v2044, 4294901760
    %2046 = vmatpush.msra.mxu0 %v2045
    %v2047 = vand.u32 %v884, 4294901760
    %v2048 = vsub.f32 %v884, %v2047
    %v2049 = vand.u32 %v2048, 4294901760
    %2050 = vmatpush.msra.mxu0 %v2049
    %v2051 = vand.u32 %v992, 4294901760
    %v2052 = vsub.f32 %v992, %v2051
    %v2053 = vand.u32 %v2052, 4294901760
    %2054 = vmatpush.msra.mxu0 %v2053
    %v2055 = vand.u32 %v966, 4294901760
    %v2056 = vsub.f32 %v966, %v2055
    %v2057 = vand.u32 %v2056, 4294901760
    %2058 = vmatpush.msra.mxu0 %v2057
    %v2059 = vand.u32 %v940, 4294901760
    %v2060 = vsub.f32 %v940, %v2059
    %v2061 = vand.u32 %v2060, 4294901760
    %2062 = vmatpush.msra.mxu0 %v2061
    %v2063 = vand.u32 %v914, 4294901760
    %v2064 = vsub.f32 %v914, %v2063
    %v2065 = vand.u32 %v2064, 4294901760
    %2066 = vmatpush.msra.mxu0 %v2065
    %v2067 = vand.u32 %v1100, 4294901760
    %2068 = vmatmul.f32.gmra.mxu0 %v2067
    %v2069 = vpop.f32.mrf.mxu0
    %v2070 = vadd.f32 %v2022, %v2069
    %2071 = vdwg.mxu0
    %2072 = vmatpush.msra.mxu0 0.0
    %2073 = vmatpush.msra.mxu0 0.0
    %2074 = vmatpush.msra.mxu0 0.0
    %2075 = vmatpush.msra.mxu0 0.0
    %2076 = vmatpush.msra.mxu0 0.0
    %2077 = vmatpush.msra.mxu0 0.0
    %2078 = vmatpush.msra.mxu0 0.0
    %v2079 = vand.u32 %v1096, 4294901760
    %2080 = vmatpush.msra.mxu0 %v2079
    %v2081 = vand.u32 %v1070, 4294901760
    %2082 = vmatpush.msra.mxu0 %v2081
    %v2083 = vand.u32 %v1044, 4294901760
    %2084 = vmatpush.msra.mxu0 %v2083
    %v2085 = vand.u32 %v1018, 4294901760
    %2086 = vmatpush.msra.mxu0 %v2085
    %v2087 = vand.u32 %v884, 4294901760
    %2088 = vmatpush.msra.mxu0 %v2087
    %v2089 = vand.u32 %v992, 4294901760
    %2090 = vmatpush.msra.mxu0 %v2089
    %v2091 = vand.u32 %v966, 4294901760
    %2092 = vmatpush.msra.mxu0 %v2091
    %v2093 = vand.u32 %v940, 4294901760
    %2094 = vmatpush.msra.mxu0 %v2093
    %v2095 = vand.u32 %v914, 4294901760
    %2096 = vmatpush.msra.mxu0 %v2095
    %v2097 = vand.u32 %v1100, 4294901760
    %2098 = vmatmul.f32.gmra.mxu0 %v2097
    %v2099 = vpop.f32.mrf.mxu0
    %v2100 = vadd.f32 %v2070, %v2099
    %2101 = vdwg.mxu0
    %v2102 = vadd.f32 %v1350, %v1600
    %v2103 = vadd.f32 %v2102, %v1850
    %v2104 = vadd.f32 %v2103, %v2100
    %2105 = vadd.xlane.f32.xlu0 %v2104
    %v2106 = vpop.xlane.xlu0 %2105
    %v2107 = vmul.f32 %v1350, %v1350
    %v2108 = vmul.f32 %v1600, %v1600
    %v2109 = vmul.f32 %v1850, %v1850
    %v2110 = vmul.f32 %v2100, %v2100
    %v2111 = vadd.f32 %v2107, %v2108
    %v2112 = vadd.f32 %v2111, %v2109
    %v2113 = vadd.f32 %v2112, %v2110
    %2114 = vadd.xlane.f32.xlu0 %v2113
    %v2115 = vpop.xlane.xlu0 %2114
    %v2116 = vmul.f32 %v2106, 0.001953125
    %v2117 = vmul.f32 %v2115, 0.001953125
    %v2118 = vmul.f32 %v2116, %v2116
    %v2119 = vsub.f32 %v2117, %v2118
    %v2120 = vsub.f32 %v1350, %v2116
    %v2121 = vsub.f32 %v1600, %v2116
    %v2122 = vsub.f32 %v1850, %v2116
    %v2123 = vsub.f32 %v2100, %v2116
    %v2124 = vadd.f32 %v2119, 1e-05
    %v2125 = vrsqrt.pop %v2124
    %v2126 = vmul.f32 %v2125, %v2124
    %v2127 = vmul.f32 %v2126, %v2125
    %v2128 = vmul.f32 0.5, %v2127
    %v2129 = vsub.f32 1.5, %v2128
    %v2130 = vmul.f32 %v2125, %v2129
    %vm2131 = vweird.f32 %v2124
    %vm2132 = vweird.f32 %v2125
    %vm2133 = vmor %vm2131, %vm2132
    %v2134 = vsel %vm2133, %v2125, %v2130
    %v2135 = vmul.f32 %v2120, %v2134
    %v2136 = vmul.f32 %v2121, %v2134
    %v2137 = vmul.f32 %v2122, %v2134
    %v2138 = vmul.f32 %v2123, %v2134
    %2139 = vset.pattern.permute.xlu0 2
    %2140 = vperm.xlu0 %2139, %v54
    %v2141 = vpop.permute.xlu0 %2140
    %v2143 = vmul.f32 %v2135, %v2141
    %v2144 = vmul.f32 %v2136, %v2141
    %v2145 = vmul.f32 %v2137, %v2141
    %v2146 = vmul.f32 %v2138, %v2141
    %2147 = vset.pattern.permute.xlu0 3
    %2148 = vperm.xlu0 %2147, %v54
    %v2149 = vpop.permute.xlu0 %2148
    %v2151 = vadd.f32 %v2143, %v2149
    %v2152 = vadd.f32 %v2144, %v2149
    %v2153 = vadd.f32 %v2145, %v2149
    %v2154 = vadd.f32 %v2146, %v2149
    %v2155 = vmax.f32 %v2151, 0.0
    %v2156 = vmax.f32 %v2152, 0.0
    %v2157 = vmax.f32 %v2153, 0.0
    %v2158 = vmax.f32 %v2154, 0.0
    %v2159 = vld [vmem:[%s3] sm:$0xff]
    %v2160 = vld [vmem:[%s3 + $0x8] sm:$0xff]
    %v2161 = vld [vmem:[%s3 + $0x10] sm:$0xff]
    %v2162 = vld [vmem:[%s3 + $0x18] sm:$0xff]
    %vm2163 = vcmask 64512
    %v2165 = vsel %vm2163, %v2159, 0
    %v2168 = vsel %vm2163, %v2160, 0
    %v2171 = vsel %vm2163, %v2161, 0
    %v2174 = vsel %vm2163, %v2162, 0
    %2176 = vmatpush.msra.mxu0 0.0
    %2177 = vmatpush.msra.mxu0 0.0
    %2178 = vmatpush.msra.mxu0 0.0
    %2179 = vmatpush.msra.mxu0 0.0
    %2180 = vmatpush.msra.mxu0 0.0
    %2181 = vmatpush.msra.mxu0 0.0
    %2182 = vmatpush.msra.mxu0 0.0
    %2183 = vmatpush.msra.mxu0 0.0
    %2184 = vmatpush.msra.mxu0 0.0
    %2185 = vmatpush.msra.mxu0 0.0
    %2186 = vmatpush.msra.mxu0 0.0
    %2187 = vmatpush.msra.mxu0 0.0
    %2188 = vmatpush.msra.mxu0 0.0
    %2189 = vmatpush.msra.mxu0 0.0
    %2190 = vmatpush.msra.mxu0 0.0
    %v2191 = vand.u32 %v2155, 4294901760
    %2192 = vmatpush.msra.mxu0 %v2191
    %v2193 = vand.u32 %v2165, 4294901760
    %v2194 = vsub.f32 %v2165, %v2193
    %v2195 = vand.u32 %v2194, 4294901760
    %v2196 = vsub.f32 %v2194, %v2195
    %v2197 = vand.u32 %v2196, 4294901760
    %2198 = vmatmul.f32.gmra.mxu0 %v2197
    %v2199 = vpop.f32.mrf.mxu0
    %v2200 = vadd.f32 0.0, %v2199
    %v2201 = vand.u32 %v2168, 4294901760
    %v2202 = vsub.f32 %v2168, %v2201
    %v2203 = vand.u32 %v2202, 4294901760
    %v2204 = vsub.f32 %v2202, %v2203
    %v2205 = vand.u32 %v2204, 4294901760
    %2206 = vmatmul.f32.gmra.mxu0 %v2205
    %v2207 = vpop.f32.mrf.mxu0
    %v2208 = vadd.f32 0.0, %v2207
    %v2209 = vand.u32 %v2171, 4294901760
    %v2210 = vsub.f32 %v2171, %v2209
    %v2211 = vand.u32 %v2210, 4294901760
    %v2212 = vsub.f32 %v2210, %v2211
    %v2213 = vand.u32 %v2212, 4294901760
    %2214 = vmatmul.f32.gmra.mxu0 %v2213
    %v2215 = vpop.f32.mrf.mxu0
    %v2216 = vadd.f32 0.0, %v2215
    %v2217 = vand.u32 %v2174, 4294901760
    %v2218 = vsub.f32 %v2174, %v2217
    %v2219 = vand.u32 %v2218, 4294901760
    %v2220 = vsub.f32 %v2218, %v2219
    %v2221 = vand.u32 %v2220, 4294901760
    %2222 = vmatmul.f32.gmra.mxu0 %v2221
    %v2223 = vpop.f32.mrf.mxu0
    %v2224 = vadd.f32 0.0, %v2223
    %2225 = vdwg.mxu0
    %2226 = vmatpush.msra.mxu0 0.0
    %2227 = vmatpush.msra.mxu0 0.0
    %2228 = vmatpush.msra.mxu0 0.0
    %2229 = vmatpush.msra.mxu0 0.0
    %2230 = vmatpush.msra.mxu0 0.0
    %2231 = vmatpush.msra.mxu0 0.0
    %2232 = vmatpush.msra.mxu0 0.0
    %2233 = vmatpush.msra.mxu0 0.0
    %2234 = vmatpush.msra.mxu0 0.0
    %2235 = vmatpush.msra.mxu0 0.0
    %2236 = vmatpush.msra.mxu0 0.0
    %2237 = vmatpush.msra.mxu0 0.0
    %2238 = vmatpush.msra.mxu0 0.0
    %2239 = vmatpush.msra.mxu0 0.0
    %2240 = vmatpush.msra.mxu0 0.0
    %v2241 = vand.u32 %v2155, 4294901760
    %v2242 = vsub.f32 %v2155, %v2241
    %v2243 = vand.u32 %v2242, 4294901760
    %v2244 = vsub.f32 %v2242, %v2243
    %v2245 = vand.u32 %v2244, 4294901760
    %2246 = vmatpush.msra.mxu0 %v2245
    %v2247 = vand.u32 %v2165, 4294901760
    %2248 = vmatmul.f32.gmra.mxu0 %v2247
    %v2249 = vpop.f32.mrf.mxu0
    %v2250 = vadd.f32 %v2200, %v2249
    %v2251 = vand.u32 %v2168, 4294901760
    %2252 = vmatmul.f32.gmra.mxu0 %v2251
    %v2253 = vpop.f32.mrf.mxu0
    %v2254 = vadd.f32 %v2208, %v2253
    %v2255 = vand.u32 %v2171, 4294901760
    %2256 = vmatmul.f32.gmra.mxu0 %v2255
    %v2257 = vpop.f32.mrf.mxu0
    %v2258 = vadd.f32 %v2216, %v2257
    %v2259 = vand.u32 %v2174, 4294901760
    %2260 = vmatmul.f32.gmra.mxu0 %v2259
    %v2261 = vpop.f32.mrf.mxu0
    %v2262 = vadd.f32 %v2224, %v2261
    %2263 = vdwg.mxu0
    %2264 = vmatpush.msra.mxu0 0.0
    %2265 = vmatpush.msra.mxu0 0.0
    %2266 = vmatpush.msra.mxu0 0.0
    %2267 = vmatpush.msra.mxu0 0.0
    %2268 = vmatpush.msra.mxu0 0.0
    %2269 = vmatpush.msra.mxu0 0.0
    %2270 = vmatpush.msra.mxu0 0.0
    %2271 = vmatpush.msra.mxu0 0.0
    %2272 = vmatpush.msra.mxu0 0.0
    %2273 = vmatpush.msra.mxu0 0.0
    %2274 = vmatpush.msra.mxu0 0.0
    %2275 = vmatpush.msra.mxu0 0.0
    %2276 = vmatpush.msra.mxu0 0.0
    %2277 = vmatpush.msra.mxu0 0.0
    %2278 = vmatpush.msra.mxu0 0.0
    %v2279 = vand.u32 %v2155, 4294901760
    %v2280 = vsub.f32 %v2155, %v2279
    %2281 = vmatpush.msra.mxu0 %v2280
    %v2282 = vand.u32 %v2165, 4294901760
    %v2283 = vsub.f32 %v2165, %v2282
    %2284 = vmatmul.f32.gmra.mxu0 %v2283
    %v2285 = vpop.f32.mrf.mxu0
    %v2286 = vadd.f32 %v2250, %v2285
    %v2287 = vand.u32 %v2168, 4294901760
    %v2288 = vsub.f32 %v2168, %v2287
    %2289 = vmatmul.f32.gmra.mxu0 %v2288
    %v2290 = vpop.f32.mrf.mxu0
    %v2291 = vadd.f32 %v2254, %v2290
    %v2292 = vand.u32 %v2171, 4294901760
    %v2293 = vsub.f32 %v2171, %v2292
    %2294 = vmatmul.f32.gmra.mxu0 %v2293
    %v2295 = vpop.f32.mrf.mxu0
    %v2296 = vadd.f32 %v2258, %v2295
    %v2297 = vand.u32 %v2174, 4294901760
    %v2298 = vsub.f32 %v2174, %v2297
    %2299 = vmatmul.f32.gmra.mxu0 %v2298
    %v2300 = vpop.f32.mrf.mxu0
    %v2301 = vadd.f32 %v2262, %v2300
    %2302 = vdwg.mxu0
    %2303 = vmatpush.msra.mxu0 0.0
    %2304 = vmatpush.msra.mxu0 0.0
    %2305 = vmatpush.msra.mxu0 0.0
    %2306 = vmatpush.msra.mxu0 0.0
    %2307 = vmatpush.msra.mxu0 0.0
    %2308 = vmatpush.msra.mxu0 0.0
    %2309 = vmatpush.msra.mxu0 0.0
    %2310 = vmatpush.msra.mxu0 0.0
    %2311 = vmatpush.msra.mxu0 0.0
    %2312 = vmatpush.msra.mxu0 0.0
    %2313 = vmatpush.msra.mxu0 0.0
    %2314 = vmatpush.msra.mxu0 0.0
    %2315 = vmatpush.msra.mxu0 0.0
    %2316 = vmatpush.msra.mxu0 0.0
    %2317 = vmatpush.msra.mxu0 0.0
    %v2318 = vand.u32 %v2155, 4294901760
    %2319 = vmatpush.msra.mxu0 %v2318
    %v2320 = vand.u32 %v2165, 4294901760
    %v2321 = vsub.f32 %v2165, %v2320
    %v2322 = vand.u32 %v2321, 4294901760
    %2323 = vmatmul.f32.gmra.mxu0 %v2322
    %v2324 = vpop.f32.mrf.mxu0
    %v2325 = vadd.f32 %v2286, %v2324
    %v2326 = vand.u32 %v2168, 4294901760
    %v2327 = vsub.f32 %v2168, %v2326
    %v2328 = vand.u32 %v2327, 4294901760
    %2329 = vmatmul.f32.gmra.mxu0 %v2328
    %v2330 = vpop.f32.mrf.mxu0
    %v2331 = vadd.f32 %v2291, %v2330
    %v2332 = vand.u32 %v2171, 4294901760
    %v2333 = vsub.f32 %v2171, %v2332
    %v2334 = vand.u32 %v2333, 4294901760
    %2335 = vmatmul.f32.gmra.mxu0 %v2334
    %v2336 = vpop.f32.mrf.mxu0
    %v2337 = vadd.f32 %v2296, %v2336
    %v2338 = vand.u32 %v2174, 4294901760
    %v2339 = vsub.f32 %v2174, %v2338
    %v2340 = vand.u32 %v2339, 4294901760
    %2341 = vmatmul.f32.gmra.mxu0 %v2340
    %v2342 = vpop.f32.mrf.mxu0
    %v2343 = vadd.f32 %v2301, %v2342
    %2344 = vdwg.mxu0
    %2345 = vmatpush.msra.mxu0 0.0
    %2346 = vmatpush.msra.mxu0 0.0
    %2347 = vmatpush.msra.mxu0 0.0
    %2348 = vmatpush.msra.mxu0 0.0
    %2349 = vmatpush.msra.mxu0 0.0
    %2350 = vmatpush.msra.mxu0 0.0
    %2351 = vmatpush.msra.mxu0 0.0
    %2352 = vmatpush.msra.mxu0 0.0
    %2353 = vmatpush.msra.mxu0 0.0
    %2354 = vmatpush.msra.mxu0 0.0
    %2355 = vmatpush.msra.mxu0 0.0
    %2356 = vmatpush.msra.mxu0 0.0
    %2357 = vmatpush.msra.mxu0 0.0
    %2358 = vmatpush.msra.mxu0 0.0
    %2359 = vmatpush.msra.mxu0 0.0
    %v2360 = vand.u32 %v2155, 4294901760
    %v2361 = vsub.f32 %v2155, %v2360
    %v2362 = vand.u32 %v2361, 4294901760
    %2363 = vmatpush.msra.mxu0 %v2362
    %v2364 = vand.u32 %v2165, 4294901760
    %2365 = vmatmul.f32.gmra.mxu0 %v2364
    %v2366 = vpop.f32.mrf.mxu0
    %v2367 = vadd.f32 %v2325, %v2366
    %v2368 = vand.u32 %v2168, 4294901760
    %2369 = vmatmul.f32.gmra.mxu0 %v2368
    %v2370 = vpop.f32.mrf.mxu0
    %v2371 = vadd.f32 %v2331, %v2370
    %v2372 = vand.u32 %v2171, 4294901760
    %2373 = vmatmul.f32.gmra.mxu0 %v2372
    %v2374 = vpop.f32.mrf.mxu0
    %v2375 = vadd.f32 %v2337, %v2374
    %v2376 = vand.u32 %v2174, 4294901760
    %2377 = vmatmul.f32.gmra.mxu0 %v2376
    %v2378 = vpop.f32.mrf.mxu0
    %v2379 = vadd.f32 %v2343, %v2378
    %2380 = vdwg.mxu0
    %2381 = vmatpush.msra.mxu0 0.0
    %2382 = vmatpush.msra.mxu0 0.0
    %2383 = vmatpush.msra.mxu0 0.0
    %2384 = vmatpush.msra.mxu0 0.0
    %2385 = vmatpush.msra.mxu0 0.0
    %2386 = vmatpush.msra.mxu0 0.0
    %2387 = vmatpush.msra.mxu0 0.0
    %2388 = vmatpush.msra.mxu0 0.0
    %2389 = vmatpush.msra.mxu0 0.0
    %2390 = vmatpush.msra.mxu0 0.0
    %2391 = vmatpush.msra.mxu0 0.0
    %2392 = vmatpush.msra.mxu0 0.0
    %2393 = vmatpush.msra.mxu0 0.0
    %2394 = vmatpush.msra.mxu0 0.0
    %2395 = vmatpush.msra.mxu0 0.0
    %v2396 = vand.u32 %v2155, 4294901760
    %2397 = vmatpush.msra.mxu0 %v2396
    %v2398 = vand.u32 %v2165, 4294901760
    %2399 = vmatmul.f32.gmra.mxu0 %v2398
    %v2400 = vpop.f32.mrf.mxu0
    %v2401 = vadd.f32 %v2367, %v2400
    %v2402 = vand.u32 %v2168, 4294901760
    %2403 = vmatmul.f32.gmra.mxu0 %v2402
    %v2404 = vpop.f32.mrf.mxu0
    %v2405 = vadd.f32 %v2371, %v2404
    %v2406 = vand.u32 %v2171, 4294901760
    %2407 = vmatmul.f32.gmra.mxu0 %v2406
    %v2408 = vpop.f32.mrf.mxu0
    %v2409 = vadd.f32 %v2375, %v2408
    %v2410 = vand.u32 %v2174, 4294901760
    %2411 = vmatmul.f32.gmra.mxu0 %v2410
    %v2412 = vpop.f32.mrf.mxu0
    %v2413 = vadd.f32 %v2379, %v2412
    %2414 = vdwg.mxu0
    %2415 = vmatpush.msra.mxu0 0.0
    %2416 = vmatpush.msra.mxu0 0.0
    %2417 = vmatpush.msra.mxu0 0.0
    %2418 = vmatpush.msra.mxu0 0.0
    %2419 = vmatpush.msra.mxu0 0.0
    %2420 = vmatpush.msra.mxu0 0.0
    %2421 = vmatpush.msra.mxu0 0.0
    %2422 = vmatpush.msra.mxu0 0.0
    %2423 = vmatpush.msra.mxu0 0.0
    %2424 = vmatpush.msra.mxu0 0.0
    %2425 = vmatpush.msra.mxu0 0.0
    %2426 = vmatpush.msra.mxu0 0.0
    %2427 = vmatpush.msra.mxu0 0.0
    %2428 = vmatpush.msra.mxu0 0.0
    %2429 = vmatpush.msra.mxu0 0.0
    %v2430 = vand.u32 %v2156, 4294901760
    %2431 = vmatpush.msra.mxu0 %v2430
    %v2432 = vand.u32 %v2165, 4294901760
    %v2433 = vsub.f32 %v2165, %v2432
    %v2434 = vand.u32 %v2433, 4294901760
    %v2435 = vsub.f32 %v2433, %v2434
    %v2436 = vand.u32 %v2435, 4294901760
    %2437 = vmatmul.f32.gmra.mxu0 %v2436
    %v2438 = vpop.f32.mrf.mxu0
    %v2439 = vadd.f32 0.0, %v2438
    %v2440 = vand.u32 %v2168, 4294901760
    %v2441 = vsub.f32 %v2168, %v2440
    %v2442 = vand.u32 %v2441, 4294901760
    %v2443 = vsub.f32 %v2441, %v2442
    %v2444 = vand.u32 %v2443, 4294901760
    %2445 = vmatmul.f32.gmra.mxu0 %v2444
    %v2446 = vpop.f32.mrf.mxu0
    %v2447 = vadd.f32 0.0, %v2446
    %v2448 = vand.u32 %v2171, 4294901760
    %v2449 = vsub.f32 %v2171, %v2448
    %v2450 = vand.u32 %v2449, 4294901760
    %v2451 = vsub.f32 %v2449, %v2450
    %v2452 = vand.u32 %v2451, 4294901760
    %2453 = vmatmul.f32.gmra.mxu0 %v2452
    %v2454 = vpop.f32.mrf.mxu0
    %v2455 = vadd.f32 0.0, %v2454
    %v2456 = vand.u32 %v2174, 4294901760
    %v2457 = vsub.f32 %v2174, %v2456
    %v2458 = vand.u32 %v2457, 4294901760
    %v2459 = vsub.f32 %v2457, %v2458
    %v2460 = vand.u32 %v2459, 4294901760
    %2461 = vmatmul.f32.gmra.mxu0 %v2460
    %v2462 = vpop.f32.mrf.mxu0
    %v2463 = vadd.f32 0.0, %v2462
    %2464 = vdwg.mxu0
    %2465 = vmatpush.msra.mxu0 0.0
    %2466 = vmatpush.msra.mxu0 0.0
    %2467 = vmatpush.msra.mxu0 0.0
    %2468 = vmatpush.msra.mxu0 0.0
    %2469 = vmatpush.msra.mxu0 0.0
    %2470 = vmatpush.msra.mxu0 0.0
    %2471 = vmatpush.msra.mxu0 0.0
    %2472 = vmatpush.msra.mxu0 0.0
    %2473 = vmatpush.msra.mxu0 0.0
    %2474 = vmatpush.msra.mxu0 0.0
    %2475 = vmatpush.msra.mxu0 0.0
    %2476 = vmatpush.msra.mxu0 0.0
    %2477 = vmatpush.msra.mxu0 0.0
    %2478 = vmatpush.msra.mxu0 0.0
    %2479 = vmatpush.msra.mxu0 0.0
    %v2480 = vand.u32 %v2156, 4294901760
    %v2481 = vsub.f32 %v2156, %v2480
    %v2482 = vand.u32 %v2481, 4294901760
    %v2483 = vsub.f32 %v2481, %v2482
    %v2484 = vand.u32 %v2483, 4294901760
    %2485 = vmatpush.msra.mxu0 %v2484
    %v2486 = vand.u32 %v2165, 4294901760
    %2487 = vmatmul.f32.gmra.mxu0 %v2486
    %v2488 = vpop.f32.mrf.mxu0
    %v2489 = vadd.f32 %v2439, %v2488
    %v2490 = vand.u32 %v2168, 4294901760
    %2491 = vmatmul.f32.gmra.mxu0 %v2490
    %v2492 = vpop.f32.mrf.mxu0
    %v2493 = vadd.f32 %v2447, %v2492
    %v2494 = vand.u32 %v2171, 4294901760
    %2495 = vmatmul.f32.gmra.mxu0 %v2494
    %v2496 = vpop.f32.mrf.mxu0
    %v2497 = vadd.f32 %v2455, %v2496
    %v2498 = vand.u32 %v2174, 4294901760
    %2499 = vmatmul.f32.gmra.mxu0 %v2498
    %v2500 = vpop.f32.mrf.mxu0
    %v2501 = vadd.f32 %v2463, %v2500
    %2502 = vdwg.mxu0
    %2503 = vmatpush.msra.mxu0 0.0
    %2504 = vmatpush.msra.mxu0 0.0
    %2505 = vmatpush.msra.mxu0 0.0
    %2506 = vmatpush.msra.mxu0 0.0
    %2507 = vmatpush.msra.mxu0 0.0
    %2508 = vmatpush.msra.mxu0 0.0
    %2509 = vmatpush.msra.mxu0 0.0
    %2510 = vmatpush.msra.mxu0 0.0
    %2511 = vmatpush.msra.mxu0 0.0
    %2512 = vmatpush.msra.mxu0 0.0
    %2513 = vmatpush.msra.mxu0 0.0
    %2514 = vmatpush.msra.mxu0 0.0
    %2515 = vmatpush.msra.mxu0 0.0
    %2516 = vmatpush.msra.mxu0 0.0
    %2517 = vmatpush.msra.mxu0 0.0
    %v2518 = vand.u32 %v2156, 4294901760
    %v2519 = vsub.f32 %v2156, %v2518
    %2520 = vmatpush.msra.mxu0 %v2519
    %v2521 = vand.u32 %v2165, 4294901760
    %v2522 = vsub.f32 %v2165, %v2521
    %2523 = vmatmul.f32.gmra.mxu0 %v2522
    %v2524 = vpop.f32.mrf.mxu0
    %v2525 = vadd.f32 %v2489, %v2524
    %v2526 = vand.u32 %v2168, 4294901760
    %v2527 = vsub.f32 %v2168, %v2526
    %2528 = vmatmul.f32.gmra.mxu0 %v2527
    %v2529 = vpop.f32.mrf.mxu0
    %v2530 = vadd.f32 %v2493, %v2529
    %v2531 = vand.u32 %v2171, 4294901760
    %v2532 = vsub.f32 %v2171, %v2531
    %2533 = vmatmul.f32.gmra.mxu0 %v2532
    %v2534 = vpop.f32.mrf.mxu0
    %v2535 = vadd.f32 %v2497, %v2534
    %v2536 = vand.u32 %v2174, 4294901760
    %v2537 = vsub.f32 %v2174, %v2536
    %2538 = vmatmul.f32.gmra.mxu0 %v2537
    %v2539 = vpop.f32.mrf.mxu0
    %v2540 = vadd.f32 %v2501, %v2539
    %2541 = vdwg.mxu0
    %2542 = vmatpush.msra.mxu0 0.0
    %2543 = vmatpush.msra.mxu0 0.0
    %2544 = vmatpush.msra.mxu0 0.0
    %2545 = vmatpush.msra.mxu0 0.0
    %2546 = vmatpush.msra.mxu0 0.0
    %2547 = vmatpush.msra.mxu0 0.0
    %2548 = vmatpush.msra.mxu0 0.0
    %2549 = vmatpush.msra.mxu0 0.0
    %2550 = vmatpush.msra.mxu0 0.0
    %2551 = vmatpush.msra.mxu0 0.0
    %2552 = vmatpush.msra.mxu0 0.0
    %2553 = vmatpush.msra.mxu0 0.0
    %2554 = vmatpush.msra.mxu0 0.0
    %2555 = vmatpush.msra.mxu0 0.0
    %2556 = vmatpush.msra.mxu0 0.0
    %v2557 = vand.u32 %v2156, 4294901760
    %2558 = vmatpush.msra.mxu0 %v2557
    %v2559 = vand.u32 %v2165, 4294901760
    %v2560 = vsub.f32 %v2165, %v2559
    %v2561 = vand.u32 %v2560, 4294901760
    %2562 = vmatmul.f32.gmra.mxu0 %v2561
    %v2563 = vpop.f32.mrf.mxu0
    %v2564 = vadd.f32 %v2525, %v2563
    %v2565 = vand.u32 %v2168, 4294901760
    %v2566 = vsub.f32 %v2168, %v2565
    %v2567 = vand.u32 %v2566, 4294901760
    %2568 = vmatmul.f32.gmra.mxu0 %v2567
    %v2569 = vpop.f32.mrf.mxu0
    %v2570 = vadd.f32 %v2530, %v2569
    %v2571 = vand.u32 %v2171, 4294901760
    %v2572 = vsub.f32 %v2171, %v2571
    %v2573 = vand.u32 %v2572, 4294901760
    %2574 = vmatmul.f32.gmra.mxu0 %v2573
    %v2575 = vpop.f32.mrf.mxu0
    %v2576 = vadd.f32 %v2535, %v2575
    %v2577 = vand.u32 %v2174, 4294901760
    %v2578 = vsub.f32 %v2174, %v2577
    %v2579 = vand.u32 %v2578, 4294901760
    %2580 = vmatmul.f32.gmra.mxu0 %v2579
    %v2581 = vpop.f32.mrf.mxu0
    %v2582 = vadd.f32 %v2540, %v2581
    %2583 = vdwg.mxu0
    %2584 = vmatpush.msra.mxu0 0.0
    %2585 = vmatpush.msra.mxu0 0.0
    %2586 = vmatpush.msra.mxu0 0.0
    %2587 = vmatpush.msra.mxu0 0.0
    %2588 = vmatpush.msra.mxu0 0.0
    %2589 = vmatpush.msra.mxu0 0.0
    %2590 = vmatpush.msra.mxu0 0.0
    %2591 = vmatpush.msra.mxu0 0.0
    %2592 = vmatpush.msra.mxu0 0.0
    %2593 = vmatpush.msra.mxu0 0.0
    %2594 = vmatpush.msra.mxu0 0.0
    %2595 = vmatpush.msra.mxu0 0.0
    %2596 = vmatpush.msra.mxu0 0.0
    %2597 = vmatpush.msra.mxu0 0.0
    %2598 = vmatpush.msra.mxu0 0.0
    %v2599 = vand.u32 %v2156, 4294901760
    %v2600 = vsub.f32 %v2156, %v2599
    %v2601 = vand.u32 %v2600, 4294901760
    %2602 = vmatpush.msra.mxu0 %v2601
    %v2603 = vand.u32 %v2165, 4294901760
    %2604 = vmatmul.f32.gmra.mxu0 %v2603
    %v2605 = vpop.f32.mrf.mxu0
    %v2606 = vadd.f32 %v2564, %v2605
    %v2607 = vand.u32 %v2168, 4294901760
    %2608 = vmatmul.f32.gmra.mxu0 %v2607
    %v2609 = vpop.f32.mrf.mxu0
    %v2610 = vadd.f32 %v2570, %v2609
    %v2611 = vand.u32 %v2171, 4294901760
    %2612 = vmatmul.f32.gmra.mxu0 %v2611
    %v2613 = vpop.f32.mrf.mxu0
    %v2614 = vadd.f32 %v2576, %v2613
    %v2615 = vand.u32 %v2174, 4294901760
    %2616 = vmatmul.f32.gmra.mxu0 %v2615
    %v2617 = vpop.f32.mrf.mxu0
    %v2618 = vadd.f32 %v2582, %v2617
    %2619 = vdwg.mxu0
    %2620 = vmatpush.msra.mxu0 0.0
    %2621 = vmatpush.msra.mxu0 0.0
    %2622 = vmatpush.msra.mxu0 0.0
    %2623 = vmatpush.msra.mxu0 0.0
    %2624 = vmatpush.msra.mxu0 0.0
    %2625 = vmatpush.msra.mxu0 0.0
    %2626 = vmatpush.msra.mxu0 0.0
    %2627 = vmatpush.msra.mxu0 0.0
    %2628 = vmatpush.msra.mxu0 0.0
    %2629 = vmatpush.msra.mxu0 0.0
    %2630 = vmatpush.msra.mxu0 0.0
    %2631 = vmatpush.msra.mxu0 0.0
    %2632 = vmatpush.msra.mxu0 0.0
    %2633 = vmatpush.msra.mxu0 0.0
    %2634 = vmatpush.msra.mxu0 0.0
    %v2635 = vand.u32 %v2156, 4294901760
    %2636 = vmatpush.msra.mxu0 %v2635
    %v2637 = vand.u32 %v2165, 4294901760
    %2638 = vmatmul.f32.gmra.mxu0 %v2637
    %v2639 = vpop.f32.mrf.mxu0
    %v2640 = vadd.f32 %v2606, %v2639
    %v2641 = vand.u32 %v2168, 4294901760
    %2642 = vmatmul.f32.gmra.mxu0 %v2641
    %v2643 = vpop.f32.mrf.mxu0
    %v2644 = vadd.f32 %v2610, %v2643
    %v2645 = vand.u32 %v2171, 4294901760
    %2646 = vmatmul.f32.gmra.mxu0 %v2645
    %v2647 = vpop.f32.mrf.mxu0
    %v2648 = vadd.f32 %v2614, %v2647
    %v2649 = vand.u32 %v2174, 4294901760
    %2650 = vmatmul.f32.gmra.mxu0 %v2649
    %v2651 = vpop.f32.mrf.mxu0
    %v2652 = vadd.f32 %v2618, %v2651
    %2653 = vdwg.mxu0
    %2654 = vmatpush.msra.mxu0 0.0
    %2655 = vmatpush.msra.mxu0 0.0
    %2656 = vmatpush.msra.mxu0 0.0
    %2657 = vmatpush.msra.mxu0 0.0
    %2658 = vmatpush.msra.mxu0 0.0
    %2659 = vmatpush.msra.mxu0 0.0
    %2660 = vmatpush.msra.mxu0 0.0
    %2661 = vmatpush.msra.mxu0 0.0
    %2662 = vmatpush.msra.mxu0 0.0
    %2663 = vmatpush.msra.mxu0 0.0
    %2664 = vmatpush.msra.mxu0 0.0
    %2665 = vmatpush.msra.mxu0 0.0
    %2666 = vmatpush.msra.mxu0 0.0
    %2667 = vmatpush.msra.mxu0 0.0
    %2668 = vmatpush.msra.mxu0 0.0
    %v2669 = vand.u32 %v2157, 4294901760
    %2670 = vmatpush.msra.mxu0 %v2669
    %v2671 = vand.u32 %v2165, 4294901760
    %v2672 = vsub.f32 %v2165, %v2671
    %v2673 = vand.u32 %v2672, 4294901760
    %v2674 = vsub.f32 %v2672, %v2673
    %v2675 = vand.u32 %v2674, 4294901760
    %2676 = vmatmul.f32.gmra.mxu0 %v2675
    %v2677 = vpop.f32.mrf.mxu0
    %v2678 = vadd.f32 0.0, %v2677
    %v2679 = vand.u32 %v2168, 4294901760
    %v2680 = vsub.f32 %v2168, %v2679
    %v2681 = vand.u32 %v2680, 4294901760
    %v2682 = vsub.f32 %v2680, %v2681
    %v2683 = vand.u32 %v2682, 4294901760
    %2684 = vmatmul.f32.gmra.mxu0 %v2683
    %v2685 = vpop.f32.mrf.mxu0
    %v2686 = vadd.f32 0.0, %v2685
    %v2687 = vand.u32 %v2171, 4294901760
    %v2688 = vsub.f32 %v2171, %v2687
    %v2689 = vand.u32 %v2688, 4294901760
    %v2690 = vsub.f32 %v2688, %v2689
    %v2691 = vand.u32 %v2690, 4294901760
    %2692 = vmatmul.f32.gmra.mxu0 %v2691
    %v2693 = vpop.f32.mrf.mxu0
    %v2694 = vadd.f32 0.0, %v2693
    %v2695 = vand.u32 %v2174, 4294901760
    %v2696 = vsub.f32 %v2174, %v2695
    %v2697 = vand.u32 %v2696, 4294901760
    %v2698 = vsub.f32 %v2696, %v2697
    %v2699 = vand.u32 %v2698, 4294901760
    %2700 = vmatmul.f32.gmra.mxu0 %v2699
    %v2701 = vpop.f32.mrf.mxu0
    %v2702 = vadd.f32 0.0, %v2701
    %2703 = vdwg.mxu0
    %2704 = vmatpush.msra.mxu0 0.0
    %2705 = vmatpush.msra.mxu0 0.0
    %2706 = vmatpush.msra.mxu0 0.0
    %2707 = vmatpush.msra.mxu0 0.0
    %2708 = vmatpush.msra.mxu0 0.0
    %2709 = vmatpush.msra.mxu0 0.0
    %2710 = vmatpush.msra.mxu0 0.0
    %2711 = vmatpush.msra.mxu0 0.0
    %2712 = vmatpush.msra.mxu0 0.0
    %2713 = vmatpush.msra.mxu0 0.0
    %2714 = vmatpush.msra.mxu0 0.0
    %2715 = vmatpush.msra.mxu0 0.0
    %2716 = vmatpush.msra.mxu0 0.0
    %2717 = vmatpush.msra.mxu0 0.0
    %2718 = vmatpush.msra.mxu0 0.0
    %v2719 = vand.u32 %v2157, 4294901760
    %v2720 = vsub.f32 %v2157, %v2719
    %v2721 = vand.u32 %v2720, 4294901760
    %v2722 = vsub.f32 %v2720, %v2721
    %v2723 = vand.u32 %v2722, 4294901760
    %2724 = vmatpush.msra.mxu0 %v2723
    %v2725 = vand.u32 %v2165, 4294901760
    %2726 = vmatmul.f32.gmra.mxu0 %v2725
    %v2727 = vpop.f32.mrf.mxu0
    %v2728 = vadd.f32 %v2678, %v2727
    %v2729 = vand.u32 %v2168, 4294901760
    %2730 = vmatmul.f32.gmra.mxu0 %v2729
    %v2731 = vpop.f32.mrf.mxu0
    %v2732 = vadd.f32 %v2686, %v2731
    %v2733 = vand.u32 %v2171, 4294901760
    %2734 = vmatmul.f32.gmra.mxu0 %v2733
    %v2735 = vpop.f32.mrf.mxu0
    %v2736 = vadd.f32 %v2694, %v2735
    %v2737 = vand.u32 %v2174, 4294901760
    %2738 = vmatmul.f32.gmra.mxu0 %v2737
    %v2739 = vpop.f32.mrf.mxu0
    %v2740 = vadd.f32 %v2702, %v2739
    %2741 = vdwg.mxu0
    %2742 = vmatpush.msra.mxu0 0.0
    %2743 = vmatpush.msra.mxu0 0.0
    %2744 = vmatpush.msra.mxu0 0.0
    %2745 = vmatpush.msra.mxu0 0.0
    %2746 = vmatpush.msra.mxu0 0.0
    %2747 = vmatpush.msra.mxu0 0.0
    %2748 = vmatpush.msra.mxu0 0.0
    %2749 = vmatpush.msra.mxu0 0.0
    %2750 = vmatpush.msra.mxu0 0.0
    %2751 = vmatpush.msra.mxu0 0.0
    %2752 = vmatpush.msra.mxu0 0.0
    %2753 = vmatpush.msra.mxu0 0.0
    %2754 = vmatpush.msra.mxu0 0.0
    %2755 = vmatpush.msra.mxu0 0.0
    %2756 = vmatpush.msra.mxu0 0.0
    %v2757 = vand.u32 %v2157, 4294901760
    %v2758 = vsub.f32 %v2157, %v2757
    %2759 = vmatpush.msra.mxu0 %v2758
    %v2760 = vand.u32 %v2165, 4294901760
    %v2761 = vsub.f32 %v2165, %v2760
    %2762 = vmatmul.f32.gmra.mxu0 %v2761
    %v2763 = vpop.f32.mrf.mxu0
    %v2764 = vadd.f32 %v2728, %v2763
    %v2765 = vand.u32 %v2168, 4294901760
    %v2766 = vsub.f32 %v2168, %v2765
    %2767 = vmatmul.f32.gmra.mxu0 %v2766
    %v2768 = vpop.f32.mrf.mxu0
    %v2769 = vadd.f32 %v2732, %v2768
    %v2770 = vand.u32 %v2171, 4294901760
    %v2771 = vsub.f32 %v2171, %v2770
    %2772 = vmatmul.f32.gmra.mxu0 %v2771
    %v2773 = vpop.f32.mrf.mxu0
    %v2774 = vadd.f32 %v2736, %v2773
    %v2775 = vand.u32 %v2174, 4294901760
    %v2776 = vsub.f32 %v2174, %v2775
    %2777 = vmatmul.f32.gmra.mxu0 %v2776
    %v2778 = vpop.f32.mrf.mxu0
    %v2779 = vadd.f32 %v2740, %v2778
    %2780 = vdwg.mxu0
    %2781 = vmatpush.msra.mxu0 0.0
    %2782 = vmatpush.msra.mxu0 0.0
    %2783 = vmatpush.msra.mxu0 0.0
    %2784 = vmatpush.msra.mxu0 0.0
    %2785 = vmatpush.msra.mxu0 0.0
    %2786 = vmatpush.msra.mxu0 0.0
    %2787 = vmatpush.msra.mxu0 0.0
    %2788 = vmatpush.msra.mxu0 0.0
    %2789 = vmatpush.msra.mxu0 0.0
    %2790 = vmatpush.msra.mxu0 0.0
    %2791 = vmatpush.msra.mxu0 0.0
    %2792 = vmatpush.msra.mxu0 0.0
    %2793 = vmatpush.msra.mxu0 0.0
    %2794 = vmatpush.msra.mxu0 0.0
    %2795 = vmatpush.msra.mxu0 0.0
    %v2796 = vand.u32 %v2157, 4294901760
    %2797 = vmatpush.msra.mxu0 %v2796
    %v2798 = vand.u32 %v2165, 4294901760
    %v2799 = vsub.f32 %v2165, %v2798
    %v2800 = vand.u32 %v2799, 4294901760
    %2801 = vmatmul.f32.gmra.mxu0 %v2800
    %v2802 = vpop.f32.mrf.mxu0
    %v2803 = vadd.f32 %v2764, %v2802
    %v2804 = vand.u32 %v2168, 4294901760
    %v2805 = vsub.f32 %v2168, %v2804
    %v2806 = vand.u32 %v2805, 4294901760
    %2807 = vmatmul.f32.gmra.mxu0 %v2806
    %v2808 = vpop.f32.mrf.mxu0
    %v2809 = vadd.f32 %v2769, %v2808
    %v2810 = vand.u32 %v2171, 4294901760
    %v2811 = vsub.f32 %v2171, %v2810
    %v2812 = vand.u32 %v2811, 4294901760
    %2813 = vmatmul.f32.gmra.mxu0 %v2812
    %v2814 = vpop.f32.mrf.mxu0
    %v2815 = vadd.f32 %v2774, %v2814
    %v2816 = vand.u32 %v2174, 4294901760
    %v2817 = vsub.f32 %v2174, %v2816
    %v2818 = vand.u32 %v2817, 4294901760
    %2819 = vmatmul.f32.gmra.mxu0 %v2818
    %v2820 = vpop.f32.mrf.mxu0
    %v2821 = vadd.f32 %v2779, %v2820
    %2822 = vdwg.mxu0
    %2823 = vmatpush.msra.mxu0 0.0
    %2824 = vmatpush.msra.mxu0 0.0
    %2825 = vmatpush.msra.mxu0 0.0
    %2826 = vmatpush.msra.mxu0 0.0
    %2827 = vmatpush.msra.mxu0 0.0
    %2828 = vmatpush.msra.mxu0 0.0
    %2829 = vmatpush.msra.mxu0 0.0
    %2830 = vmatpush.msra.mxu0 0.0
    %2831 = vmatpush.msra.mxu0 0.0
    %2832 = vmatpush.msra.mxu0 0.0
    %2833 = vmatpush.msra.mxu0 0.0
    %2834 = vmatpush.msra.mxu0 0.0
    %2835 = vmatpush.msra.mxu0 0.0
    %2836 = vmatpush.msra.mxu0 0.0
    %2837 = vmatpush.msra.mxu0 0.0
    %v2838 = vand.u32 %v2157, 4294901760
    %v2839 = vsub.f32 %v2157, %v2838
    %v2840 = vand.u32 %v2839, 4294901760
    %2841 = vmatpush.msra.mxu0 %v2840
    %v2842 = vand.u32 %v2165, 4294901760
    %2843 = vmatmul.f32.gmra.mxu0 %v2842
    %v2844 = vpop.f32.mrf.mxu0
    %v2845 = vadd.f32 %v2803, %v2844
    %v2846 = vand.u32 %v2168, 4294901760
    %2847 = vmatmul.f32.gmra.mxu0 %v2846
    %v2848 = vpop.f32.mrf.mxu0
    %v2849 = vadd.f32 %v2809, %v2848
    %v2850 = vand.u32 %v2171, 4294901760
    %2851 = vmatmul.f32.gmra.mxu0 %v2850
    %v2852 = vpop.f32.mrf.mxu0
    %v2853 = vadd.f32 %v2815, %v2852
    %v2854 = vand.u32 %v2174, 4294901760
    %2855 = vmatmul.f32.gmra.mxu0 %v2854
    %v2856 = vpop.f32.mrf.mxu0
    %v2857 = vadd.f32 %v2821, %v2856
    %2858 = vdwg.mxu0
    %2859 = vmatpush.msra.mxu0 0.0
    %2860 = vmatpush.msra.mxu0 0.0
    %2861 = vmatpush.msra.mxu0 0.0
    %2862 = vmatpush.msra.mxu0 0.0
    %2863 = vmatpush.msra.mxu0 0.0
    %2864 = vmatpush.msra.mxu0 0.0
    %2865 = vmatpush.msra.mxu0 0.0
    %2866 = vmatpush.msra.mxu0 0.0
    %2867 = vmatpush.msra.mxu0 0.0
    %2868 = vmatpush.msra.mxu0 0.0
    %2869 = vmatpush.msra.mxu0 0.0
    %2870 = vmatpush.msra.mxu0 0.0
    %2871 = vmatpush.msra.mxu0 0.0
    %2872 = vmatpush.msra.mxu0 0.0
    %2873 = vmatpush.msra.mxu0 0.0
    %v2874 = vand.u32 %v2157, 4294901760
    %2875 = vmatpush.msra.mxu0 %v2874
    %v2876 = vand.u32 %v2165, 4294901760
    %2877 = vmatmul.f32.gmra.mxu0 %v2876
    %v2878 = vpop.f32.mrf.mxu0
    %v2879 = vadd.f32 %v2845, %v2878
    %v2880 = vand.u32 %v2168, 4294901760
    %2881 = vmatmul.f32.gmra.mxu0 %v2880
    %v2882 = vpop.f32.mrf.mxu0
    %v2883 = vadd.f32 %v2849, %v2882
    %v2884 = vand.u32 %v2171, 4294901760
    %2885 = vmatmul.f32.gmra.mxu0 %v2884
    %v2886 = vpop.f32.mrf.mxu0
    %v2887 = vadd.f32 %v2853, %v2886
    %v2888 = vand.u32 %v2174, 4294901760
    %2889 = vmatmul.f32.gmra.mxu0 %v2888
    %v2890 = vpop.f32.mrf.mxu0
    %v2891 = vadd.f32 %v2857, %v2890
    %2892 = vdwg.mxu0
    %2893 = vmatpush.msra.mxu0 0.0
    %2894 = vmatpush.msra.mxu0 0.0
    %2895 = vmatpush.msra.mxu0 0.0
    %2896 = vmatpush.msra.mxu0 0.0
    %2897 = vmatpush.msra.mxu0 0.0
    %2898 = vmatpush.msra.mxu0 0.0
    %2899 = vmatpush.msra.mxu0 0.0
    %2900 = vmatpush.msra.mxu0 0.0
    %2901 = vmatpush.msra.mxu0 0.0
    %2902 = vmatpush.msra.mxu0 0.0
    %2903 = vmatpush.msra.mxu0 0.0
    %2904 = vmatpush.msra.mxu0 0.0
    %2905 = vmatpush.msra.mxu0 0.0
    %2906 = vmatpush.msra.mxu0 0.0
    %2907 = vmatpush.msra.mxu0 0.0
    %v2908 = vand.u32 %v2158, 4294901760
    %2909 = vmatpush.msra.mxu0 %v2908
    %v2910 = vand.u32 %v2165, 4294901760
    %v2911 = vsub.f32 %v2165, %v2910
    %v2912 = vand.u32 %v2911, 4294901760
    %v2913 = vsub.f32 %v2911, %v2912
    %v2914 = vand.u32 %v2913, 4294901760
    %2915 = vmatmul.f32.gmra.mxu0 %v2914
    %v2916 = vpop.f32.mrf.mxu0
    %v2917 = vadd.f32 0.0, %v2916
    %v2918 = vand.u32 %v2168, 4294901760
    %v2919 = vsub.f32 %v2168, %v2918
    %v2920 = vand.u32 %v2919, 4294901760
    %v2921 = vsub.f32 %v2919, %v2920
    %v2922 = vand.u32 %v2921, 4294901760
    %2923 = vmatmul.f32.gmra.mxu0 %v2922
    %v2924 = vpop.f32.mrf.mxu0
    %v2925 = vadd.f32 0.0, %v2924
    %v2926 = vand.u32 %v2171, 4294901760
    %v2927 = vsub.f32 %v2171, %v2926
    %v2928 = vand.u32 %v2927, 4294901760
    %v2929 = vsub.f32 %v2927, %v2928
    %v2930 = vand.u32 %v2929, 4294901760
    %2931 = vmatmul.f32.gmra.mxu0 %v2930
    %v2932 = vpop.f32.mrf.mxu0
    %v2933 = vadd.f32 0.0, %v2932
    %v2934 = vand.u32 %v2174, 4294901760
    %v2935 = vsub.f32 %v2174, %v2934
    %v2936 = vand.u32 %v2935, 4294901760
    %v2937 = vsub.f32 %v2935, %v2936
    %v2938 = vand.u32 %v2937, 4294901760
    %2939 = vmatmul.f32.gmra.mxu0 %v2938
    %v2940 = vpop.f32.mrf.mxu0
    %v2941 = vadd.f32 0.0, %v2940
    %2942 = vdwg.mxu0
    %2943 = vmatpush.msra.mxu0 0.0
    %2944 = vmatpush.msra.mxu0 0.0
    %2945 = vmatpush.msra.mxu0 0.0
    %2946 = vmatpush.msra.mxu0 0.0
    %2947 = vmatpush.msra.mxu0 0.0
    %2948 = vmatpush.msra.mxu0 0.0
    %2949 = vmatpush.msra.mxu0 0.0
    %2950 = vmatpush.msra.mxu0 0.0
    %2951 = vmatpush.msra.mxu0 0.0
    %2952 = vmatpush.msra.mxu0 0.0
    %2953 = vmatpush.msra.mxu0 0.0
    %2954 = vmatpush.msra.mxu0 0.0
    %2955 = vmatpush.msra.mxu0 0.0
    %2956 = vmatpush.msra.mxu0 0.0
    %2957 = vmatpush.msra.mxu0 0.0
    %v2958 = vand.u32 %v2158, 4294901760
    %v2959 = vsub.f32 %v2158, %v2958
    %v2960 = vand.u32 %v2959, 4294901760
    %v2961 = vsub.f32 %v2959, %v2960
    %v2962 = vand.u32 %v2961, 4294901760
    %2963 = vmatpush.msra.mxu0 %v2962
    %v2964 = vand.u32 %v2165, 4294901760
    %2965 = vmatmul.f32.gmra.mxu0 %v2964
    %v2966 = vpop.f32.mrf.mxu0
    %v2967 = vadd.f32 %v2917, %v2966
    %v2968 = vand.u32 %v2168, 4294901760
    %2969 = vmatmul.f32.gmra.mxu0 %v2968
    %v2970 = vpop.f32.mrf.mxu0
    %v2971 = vadd.f32 %v2925, %v2970
    %v2972 = vand.u32 %v2171, 4294901760
    %2973 = vmatmul.f32.gmra.mxu0 %v2972
    %v2974 = vpop.f32.mrf.mxu0
    %v2975 = vadd.f32 %v2933, %v2974
    %v2976 = vand.u32 %v2174, 4294901760
    %2977 = vmatmul.f32.gmra.mxu0 %v2976
    %v2978 = vpop.f32.mrf.mxu0
    %v2979 = vadd.f32 %v2941, %v2978
    %2980 = vdwg.mxu0
    %2981 = vmatpush.msra.mxu0 0.0
    %2982 = vmatpush.msra.mxu0 0.0
    %2983 = vmatpush.msra.mxu0 0.0
    %2984 = vmatpush.msra.mxu0 0.0
    %2985 = vmatpush.msra.mxu0 0.0
    %2986 = vmatpush.msra.mxu0 0.0
    %2987 = vmatpush.msra.mxu0 0.0
    %2988 = vmatpush.msra.mxu0 0.0
    %2989 = vmatpush.msra.mxu0 0.0
    %2990 = vmatpush.msra.mxu0 0.0
    %2991 = vmatpush.msra.mxu0 0.0
    %2992 = vmatpush.msra.mxu0 0.0
    %2993 = vmatpush.msra.mxu0 0.0
    %2994 = vmatpush.msra.mxu0 0.0
    %2995 = vmatpush.msra.mxu0 0.0
    %v2996 = vand.u32 %v2158, 4294901760
    %v2997 = vsub.f32 %v2158, %v2996
    %2998 = vmatpush.msra.mxu0 %v2997
    %v2999 = vand.u32 %v2165, 4294901760
    %v3000 = vsub.f32 %v2165, %v2999
    %3001 = vmatmul.f32.gmra.mxu0 %v3000
    %v3002 = vpop.f32.mrf.mxu0
    %v3003 = vadd.f32 %v2967, %v3002
    %v3004 = vand.u32 %v2168, 4294901760
    %v3005 = vsub.f32 %v2168, %v3004
    %3006 = vmatmul.f32.gmra.mxu0 %v3005
    %v3007 = vpop.f32.mrf.mxu0
    %v3008 = vadd.f32 %v2971, %v3007
    %v3009 = vand.u32 %v2171, 4294901760
    %v3010 = vsub.f32 %v2171, %v3009
    %3011 = vmatmul.f32.gmra.mxu0 %v3010
    %v3012 = vpop.f32.mrf.mxu0
    %v3013 = vadd.f32 %v2975, %v3012
    %v3014 = vand.u32 %v2174, 4294901760
    %v3015 = vsub.f32 %v2174, %v3014
    %3016 = vmatmul.f32.gmra.mxu0 %v3015
    %v3017 = vpop.f32.mrf.mxu0
    %v3018 = vadd.f32 %v2979, %v3017
    %3019 = vdwg.mxu0
    %3020 = vmatpush.msra.mxu0 0.0
    %3021 = vmatpush.msra.mxu0 0.0
    %3022 = vmatpush.msra.mxu0 0.0
    %3023 = vmatpush.msra.mxu0 0.0
    %3024 = vmatpush.msra.mxu0 0.0
    %3025 = vmatpush.msra.mxu0 0.0
    %3026 = vmatpush.msra.mxu0 0.0
    %3027 = vmatpush.msra.mxu0 0.0
    %3028 = vmatpush.msra.mxu0 0.0
    %3029 = vmatpush.msra.mxu0 0.0
    %3030 = vmatpush.msra.mxu0 0.0
    %3031 = vmatpush.msra.mxu0 0.0
    %3032 = vmatpush.msra.mxu0 0.0
    %3033 = vmatpush.msra.mxu0 0.0
    %3034 = vmatpush.msra.mxu0 0.0
    %v3035 = vand.u32 %v2158, 4294901760
    %3036 = vmatpush.msra.mxu0 %v3035
    %v3037 = vand.u32 %v2165, 4294901760
    %v3038 = vsub.f32 %v2165, %v3037
    %v3039 = vand.u32 %v3038, 4294901760
    %3040 = vmatmul.f32.gmra.mxu0 %v3039
    %v3041 = vpop.f32.mrf.mxu0
    %v3042 = vadd.f32 %v3003, %v3041
    %v3043 = vand.u32 %v2168, 4294901760
    %v3044 = vsub.f32 %v2168, %v3043
    %v3045 = vand.u32 %v3044, 4294901760
    %3046 = vmatmul.f32.gmra.mxu0 %v3045
    %v3047 = vpop.f32.mrf.mxu0
    %v3048 = vadd.f32 %v3008, %v3047
    %v3049 = vand.u32 %v2171, 4294901760
    %v3050 = vsub.f32 %v2171, %v3049
    %v3051 = vand.u32 %v3050, 4294901760
    %3052 = vmatmul.f32.gmra.mxu0 %v3051
    %v3053 = vpop.f32.mrf.mxu0
    %v3054 = vadd.f32 %v3013, %v3053
    %v3055 = vand.u32 %v2174, 4294901760
    %v3056 = vsub.f32 %v2174, %v3055
    %v3057 = vand.u32 %v3056, 4294901760
    %3058 = vmatmul.f32.gmra.mxu0 %v3057
    %v3059 = vpop.f32.mrf.mxu0
    %v3060 = vadd.f32 %v3018, %v3059
    %3061 = vdwg.mxu0
    %3062 = vmatpush.msra.mxu0 0.0
    %3063 = vmatpush.msra.mxu0 0.0
    %3064 = vmatpush.msra.mxu0 0.0
    %3065 = vmatpush.msra.mxu0 0.0
    %3066 = vmatpush.msra.mxu0 0.0
    %3067 = vmatpush.msra.mxu0 0.0
    %3068 = vmatpush.msra.mxu0 0.0
    %3069 = vmatpush.msra.mxu0 0.0
    %3070 = vmatpush.msra.mxu0 0.0
    %3071 = vmatpush.msra.mxu0 0.0
    %3072 = vmatpush.msra.mxu0 0.0
    %3073 = vmatpush.msra.mxu0 0.0
    %3074 = vmatpush.msra.mxu0 0.0
    %3075 = vmatpush.msra.mxu0 0.0
    %3076 = vmatpush.msra.mxu0 0.0
    %v3077 = vand.u32 %v2158, 4294901760
    %v3078 = vsub.f32 %v2158, %v3077
    %v3079 = vand.u32 %v3078, 4294901760
    %3080 = vmatpush.msra.mxu0 %v3079
    %v3081 = vand.u32 %v2165, 4294901760
    %3082 = vmatmul.f32.gmra.mxu0 %v3081
    %v3083 = vpop.f32.mrf.mxu0
    %v3084 = vadd.f32 %v3042, %v3083
    %v3085 = vand.u32 %v2168, 4294901760
    %3086 = vmatmul.f32.gmra.mxu0 %v3085
    %v3087 = vpop.f32.mrf.mxu0
    %v3088 = vadd.f32 %v3048, %v3087
    %v3089 = vand.u32 %v2171, 4294901760
    %3090 = vmatmul.f32.gmra.mxu0 %v3089
    %v3091 = vpop.f32.mrf.mxu0
    %v3092 = vadd.f32 %v3054, %v3091
    %v3093 = vand.u32 %v2174, 4294901760
    %3094 = vmatmul.f32.gmra.mxu0 %v3093
    %v3095 = vpop.f32.mrf.mxu0
    %v3096 = vadd.f32 %v3060, %v3095
    %3097 = vdwg.mxu0
    %3098 = vmatpush.msra.mxu0 0.0
    %3099 = vmatpush.msra.mxu0 0.0
    %3100 = vmatpush.msra.mxu0 0.0
    %3101 = vmatpush.msra.mxu0 0.0
    %3102 = vmatpush.msra.mxu0 0.0
    %3103 = vmatpush.msra.mxu0 0.0
    %3104 = vmatpush.msra.mxu0 0.0
    %3105 = vmatpush.msra.mxu0 0.0
    %3106 = vmatpush.msra.mxu0 0.0
    %3107 = vmatpush.msra.mxu0 0.0
    %3108 = vmatpush.msra.mxu0 0.0
    %3109 = vmatpush.msra.mxu0 0.0
    %3110 = vmatpush.msra.mxu0 0.0
    %3111 = vmatpush.msra.mxu0 0.0
    %3112 = vmatpush.msra.mxu0 0.0
    %v3113 = vand.u32 %v2158, 4294901760
    %3114 = vmatpush.msra.mxu0 %v3113
    %v3115 = vand.u32 %v2165, 4294901760
    %3116 = vmatmul.f32.gmra.mxu0 %v3115
    %v3117 = vpop.f32.mrf.mxu0
    %v3118 = vadd.f32 %v3084, %v3117
    %v3119 = vand.u32 %v2168, 4294901760
    %3120 = vmatmul.f32.gmra.mxu0 %v3119
    %v3121 = vpop.f32.mrf.mxu0
    %v3122 = vadd.f32 %v3088, %v3121
    %v3123 = vand.u32 %v2171, 4294901760
    %3124 = vmatmul.f32.gmra.mxu0 %v3123
    %v3125 = vpop.f32.mrf.mxu0
    %v3126 = vadd.f32 %v3092, %v3125
    %v3127 = vand.u32 %v2174, 4294901760
    %3128 = vmatmul.f32.gmra.mxu0 %v3127
    %v3129 = vpop.f32.mrf.mxu0
    %v3130 = vadd.f32 %v3096, %v3129
    %3131 = vdwg.mxu0
    %v3132 = vadd.f32 %v2401, %v2640
    %v3133 = vadd.f32 %v3132, %v2879
    %v3134 = vadd.f32 %v3133, %v3118
    %3135 = vadd.xlane.f32.xlu0 %v3134
    %v3136 = vpop.xlane.xlu0 %3135
    %v3137 = vadd.f32 %v2405, %v2644
    %v3138 = vadd.f32 %v3137, %v2883
    %v3139 = vadd.f32 %v3138, %v3122
    %3140 = vadd.xlane.f32.xlu0 %v3139
    %v3141 = vpop.xlane.xlu0 %3140
    %v3142 = vadd.f32 %v2409, %v2648
    %v3143 = vadd.f32 %v3142, %v2887
    %v3144 = vadd.f32 %v3143, %v3126
    %3145 = vadd.xlane.f32.xlu0 %v3144
    %v3146 = vpop.xlane.xlu0 %3145
    %v3147 = vadd.f32 %v2413, %v2652
    %v3148 = vadd.f32 %v3147, %v2891
    %v3149 = vadd.f32 %v3148, %v3130
    %3150 = vadd.xlane.f32.xlu0 %v3149
    %v3151 = vpop.xlane.xlu0 %3150
    %v3152 = vmul.f32 %v2401, %v2401
    %v3153 = vmul.f32 %v2640, %v2640
    %v3154 = vmul.f32 %v2879, %v2879
    %v3155 = vmul.f32 %v3118, %v3118
    %v3156 = vmul.f32 %v2405, %v2405
    %v3157 = vmul.f32 %v2644, %v2644
    %v3158 = vmul.f32 %v2883, %v2883
    %v3159 = vmul.f32 %v3122, %v3122
    %v3160 = vmul.f32 %v2409, %v2409
    %v3161 = vmul.f32 %v2648, %v2648
    %v3162 = vmul.f32 %v2887, %v2887
    %v3163 = vmul.f32 %v3126, %v3126
    %v3164 = vmul.f32 %v2413, %v2413
    %v3165 = vmul.f32 %v2652, %v2652
    %v3166 = vmul.f32 %v2891, %v2891
    %v3167 = vmul.f32 %v3130, %v3130
    %v3168 = vadd.f32 %v3152, %v3153
    %v3169 = vadd.f32 %v3168, %v3154
    %v3170 = vadd.f32 %v3169, %v3155
    %3171 = vadd.xlane.f32.xlu0 %v3170
    %v3172 = vpop.xlane.xlu0 %3171
    %v3173 = vadd.f32 %v3156, %v3157
    %v3174 = vadd.f32 %v3173, %v3158
    %v3175 = vadd.f32 %v3174, %v3159
    %3176 = vadd.xlane.f32.xlu0 %v3175
    %v3177 = vpop.xlane.xlu0 %3176
    %v3178 = vadd.f32 %v3160, %v3161
    %v3179 = vadd.f32 %v3178, %v3162
    %v3180 = vadd.f32 %v3179, %v3163
    %3181 = vadd.xlane.f32.xlu0 %v3180
    %v3182 = vpop.xlane.xlu0 %3181
    %v3183 = vadd.f32 %v3164, %v3165
    %v3184 = vadd.f32 %v3183, %v3166
    %v3185 = vadd.f32 %v3184, %v3167
    %3186 = vadd.xlane.f32.xlu0 %v3185
    %v3187 = vpop.xlane.xlu0 %3186
    %v3188 = vmul.f32 %v3136, 0.001953125
    %v3189 = vmul.f32 %v3141, 0.001953125
    %v3190 = vmul.f32 %v3146, 0.001953125
    %v3191 = vmul.f32 %v3151, 0.001953125
    %v3192 = vmul.f32 %v3172, 0.001953125
    %v3193 = vmul.f32 %v3177, 0.001953125
    %v3194 = vmul.f32 %v3182, 0.001953125
    %v3195 = vmul.f32 %v3187, 0.001953125
    %v3196 = vmul.f32 %v3188, %v3188
    %v3197 = vmul.f32 %v3189, %v3189
    %v3198 = vmul.f32 %v3190, %v3190
    %v3199 = vmul.f32 %v3191, %v3191
    %v3200 = vsub.f32 %v3192, %v3196
    %v3201 = vsub.f32 %v3193, %v3197
    %v3202 = vsub.f32 %v3194, %v3198
    %v3203 = vsub.f32 %v3195, %v3199
    %v3204 = vsub.f32 %v2401, %v3188
    %v3205 = vsub.f32 %v2640, %v3188
    %v3206 = vsub.f32 %v2879, %v3188
    %v3207 = vsub.f32 %v3118, %v3188
    %v3208 = vsub.f32 %v2405, %v3189
    %v3209 = vsub.f32 %v2644, %v3189
    %v3210 = vsub.f32 %v2883, %v3189
    %v3211 = vsub.f32 %v3122, %v3189
    %v3212 = vsub.f32 %v2409, %v3190
    %v3213 = vsub.f32 %v2648, %v3190
    %v3214 = vsub.f32 %v2887, %v3190
    %v3215 = vsub.f32 %v3126, %v3190
    %v3216 = vsub.f32 %v2413, %v3191
    %v3217 = vsub.f32 %v2652, %v3191
    %v3218 = vsub.f32 %v2891, %v3191
    %v3219 = vsub.f32 %v3130, %v3191
    %v3220 = vadd.f32 %v3200, 1e-05
    %v3221 = vadd.f32 %v3201, 1e-05
    %v3222 = vadd.f32 %v3202, 1e-05
    %v3223 = vadd.f32 %v3203, 1e-05
    %v3224 = vrsqrt.pop %v3220
    %v3225 = vmul.f32 %v3224, %v3220
    %v3226 = vmul.f32 %v3225, %v3224
    %v3227 = vmul.f32 0.5, %v3226
    %v3228 = vsub.f32 1.5, %v3227
    %v3229 = vmul.f32 %v3224, %v3228
    %vm3230 = vweird.f32 %v3220
    %vm3231 = vweird.f32 %v3224
    %vm3232 = vmor %vm3230, %vm3231
    %v3233 = vsel %vm3232, %v3224, %v3229
    %v3234 = vrsqrt.pop %v3221
    %v3235 = vmul.f32 %v3234, %v3221
    %v3236 = vmul.f32 %v3235, %v3234
    %v3237 = vmul.f32 0.5, %v3236
    %v3238 = vsub.f32 1.5, %v3237
    %v3239 = vmul.f32 %v3234, %v3238
    %vm3240 = vweird.f32 %v3221
    %vm3241 = vweird.f32 %v3234
    %vm3242 = vmor %vm3240, %vm3241
    %v3243 = vsel %vm3242, %v3234, %v3239
    %v3244 = vrsqrt.pop %v3222
    %v3245 = vmul.f32 %v3244, %v3222
    %v3246 = vmul.f32 %v3245, %v3244
    %v3247 = vmul.f32 0.5, %v3246
    %v3248 = vsub.f32 1.5, %v3247
    %v3249 = vmul.f32 %v3244, %v3248
    %vm3250 = vweird.f32 %v3222
    %vm3251 = vweird.f32 %v3244
    %vm3252 = vmor %vm3250, %vm3251
    %v3253 = vsel %vm3252, %v3244, %v3249
    %v3254 = vrsqrt.pop %v3223
    %v3255 = vmul.f32 %v3254, %v3223
    %v3256 = vmul.f32 %v3255, %v3254
    %v3257 = vmul.f32 0.5, %v3256
    %v3258 = vsub.f32 1.5, %v3257
    %v3259 = vmul.f32 %v3254, %v3258
    %vm3260 = vweird.f32 %v3223
    %vm3261 = vweird.f32 %v3254
    %vm3262 = vmor %vm3260, %vm3261
    %v3263 = vsel %vm3262, %v3254, %v3259
    %v3264 = vmul.f32 %v3204, %v3233
    %v3265 = vmul.f32 %v3205, %v3233
    %v3266 = vmul.f32 %v3206, %v3233
    %v3267 = vmul.f32 %v3207, %v3233
    %v3268 = vmul.f32 %v3208, %v3243
    %v3269 = vmul.f32 %v3209, %v3243
    %v3270 = vmul.f32 %v3210, %v3243
    %v3271 = vmul.f32 %v3211, %v3243
    %v3272 = vmul.f32 %v3212, %v3253
    %v3273 = vmul.f32 %v3213, %v3253
    %v3274 = vmul.f32 %v3214, %v3253
    %v3275 = vmul.f32 %v3215, %v3253
    %v3276 = vmul.f32 %v3216, %v3263
    %v3277 = vmul.f32 %v3217, %v3263
    %v3278 = vmul.f32 %v3218, %v3263
    %v3279 = vmul.f32 %v3219, %v3263
    %3280 = vset.pattern.permute.xlu0 4
    %3281 = vperm.xlu0 %3280, %v54
    %v3282 = vpop.permute.xlu0 %3281
    %3285 = vset.pattern.permute.xlu0 4
    %3286 = vperm.xlu0 %3285, %v55
    %v3287 = vpop.permute.xlu0 %3286
    %3290 = vset.pattern.permute.xlu0 4
    %3291 = vperm.xlu0 %3290, %v56
    %v3292 = vpop.permute.xlu0 %3291
    %3295 = vset.pattern.permute.xlu0 4
    %3296 = vperm.xlu0 %3295, %v57
    %v3297 = vpop.permute.xlu0 %3296
    %v3299 = vmul.f32 %v3264, %v3282
    %v3300 = vmul.f32 %v3265, %v3282
    %v3301 = vmul.f32 %v3266, %v3282
    %v3302 = vmul.f32 %v3267, %v3282
    %v3303 = vmul.f32 %v3268, %v3287
    %v3304 = vmul.f32 %v3269, %v3287
    %v3305 = vmul.f32 %v3270, %v3287
    %v3306 = vmul.f32 %v3271, %v3287
    %v3307 = vmul.f32 %v3272, %v3292
    %v3308 = vmul.f32 %v3273, %v3292
    %v3309 = vmul.f32 %v3274, %v3292
    %v3310 = vmul.f32 %v3275, %v3292
    %v3311 = vmul.f32 %v3276, %v3297
    %v3312 = vmul.f32 %v3277, %v3297
    %v3313 = vmul.f32 %v3278, %v3297
    %v3314 = vmul.f32 %v3279, %v3297
    %3315 = vset.pattern.permute.xlu0 5
    %3316 = vperm.xlu0 %3315, %v54
    %v3317 = vpop.permute.xlu0 %3316
    %3319 = vset.pattern.permute.xlu0 5
    %3320 = vperm.xlu0 %3319, %v55
    %v3321 = vpop.permute.xlu0 %3320
    %3323 = vset.pattern.permute.xlu0 5
    %3324 = vperm.xlu0 %3323, %v56
    %v3325 = vpop.permute.xlu0 %3324
    %3327 = vset.pattern.permute.xlu0 5
    %3328 = vperm.xlu0 %3327, %v57
    %v3329 = vpop.permute.xlu0 %3328
    %v3331 = vadd.f32 %v3299, %v3317
    %v3332 = vadd.f32 %v3300, %v3317
    %v3333 = vadd.f32 %v3301, %v3317
    %v3334 = vadd.f32 %v3302, %v3317
    %v3335 = vadd.f32 %v3303, %v3321
    %v3336 = vadd.f32 %v3304, %v3321
    %v3337 = vadd.f32 %v3305, %v3321
    %v3338 = vadd.f32 %v3306, %v3321
    %v3339 = vadd.f32 %v3307, %v3325
    %v3340 = vadd.f32 %v3308, %v3325
    %v3341 = vadd.f32 %v3309, %v3325
    %v3342 = vadd.f32 %v3310, %v3325
    %v3343 = vadd.f32 %v3311, %v3329
    %v3344 = vadd.f32 %v3312, %v3329
    %v3345 = vadd.f32 %v3313, %v3329
    %v3346 = vadd.f32 %v3314, %v3329
    %v3347 = vadd.f32 %v3331, %v66
    %v3348 = vadd.f32 %v3332, %v67
    %v3349 = vadd.f32 %v3333, %v68
    %v3350 = vadd.f32 %v3334, %v69
    %v3351 = vadd.f32 %v3335, %v70
    %v3352 = vadd.f32 %v3336, %v71
    %v3353 = vadd.f32 %v3337, %v72
    %v3354 = vadd.f32 %v3338, %v73
    %v3355 = vadd.f32 %v3339, %v74
    %v3356 = vadd.f32 %v3340, %v75
    %v3357 = vadd.f32 %v3341, %v76
    %v3358 = vadd.f32 %v3342, %v77
    %v3359 = vadd.f32 %v3343, %v78
    %v3360 = vadd.f32 %v3344, %v79
    %v3361 = vadd.f32 %v3345, %v80
    %v3362 = vadd.f32 %v3346, %v81
    %v3363 = vmax.f32 %v3347, 0.0
    %v3364 = vmax.f32 %v3348, 0.0
    %v3365 = vmax.f32 %v3349, 0.0
    %v3366 = vmax.f32 %v3350, 0.0
    %v3367 = vmax.f32 %v3351, 0.0
    %v3368 = vmax.f32 %v3352, 0.0
    %v3369 = vmax.f32 %v3353, 0.0
    %v3370 = vmax.f32 %v3354, 0.0
    %v3371 = vmax.f32 %v3355, 0.0
    %v3372 = vmax.f32 %v3356, 0.0
    %v3373 = vmax.f32 %v3357, 0.0
    %v3374 = vmax.f32 %v3358, 0.0
    %v3375 = vmax.f32 %v3359, 0.0
    %v3376 = vmax.f32 %v3360, 0.0
    %v3377 = vmax.f32 %v3361, 0.0
    %v3378 = vmax.f32 %v3362, 0.0
    %3379 = vst [vmem:[#allocation7] sm:$0xff] %v3363
    %3380 = vst [vmem:[#allocation7 + $0x8] sm:$0xff] %v3364
    %3381 = vst [vmem:[#allocation7 + $0x10] sm:$0xff] %v3365
    %3382 = vst [vmem:[#allocation7 + $0x18] sm:$0xff] %v3366
    %3383 = vst [vmem:[#allocation7 + $0x20] sm:$0xff] %v3367
    %3384 = vst [vmem:[#allocation7 + $0x28] sm:$0xff] %v3368
    %3385 = vst [vmem:[#allocation7 + $0x30] sm:$0xff] %v3369
    %3386 = vst [vmem:[#allocation7 + $0x38] sm:$0xff] %v3370
    %3387 = vst [vmem:[#allocation7 + $0x40] sm:$0xff] %v3371
    %3388 = vst [vmem:[#allocation7 + $0x48] sm:$0xff] %v3372
    %3389 = vst [vmem:[#allocation7 + $0x50] sm:$0xff] %v3373
    %3390 = vst [vmem:[#allocation7 + $0x58] sm:$0xff] %v3374
    %3391 = vst [vmem:[#allocation7 + $0x60] sm:$0xff] %v3375
    %3392 = vst [vmem:[#allocation7 + $0x68] sm:$0xff] %v3376
    %3393 = vst [vmem:[#allocation7 + $0x70] sm:$0xff] %v3377
    %3394 = vst [vmem:[#allocation7 + $0x78] sm:$0xff] %v3378
    // Predicated region
    $region34: #{tpu_custom_call.1} parent=1 // pred_check
      _
    $region35: #{tpu_custom_call.1} parent=1 // pred_check_branch
      %3396 = sbr.rel (0) target = $region37
    $region36: #{tpu_custom_call.1} parent=1 // pred_region
      %3398 = vsyncadd [#allocation4], 0
      %s3399 = sshll.u32 [#allocation7], 4
      %s3400 = int_to_ptr.vmem [resolvable:$true] %s3399
      %s3401 = sshll.u32 %s6, 4
      %s3402 = int_to_ptr.hbm [resolvable:$true] %s3401
      %3407 = dma.vmem_to_hbm [thread:$0]  %s3400, 2048, %s3402, [#allocation4], 512, 512, 32
    $region37: #{tpu_custom_call.1} parent=1 // pred_fallthru
      _
    // Predicated region
    $region38: #{tpu_custom_call.1} parent=1 // pred_check
      _
    $region39: #{tpu_custom_call.1} parent=1 // pred_check_branch
      %3409 = sbr.rel (0) target = $region41
    $region40: #{tpu_custom_call.1} parent=1 // pred_region
      %3411 = dma.done [#allocation4], 2048
    $region41: #{tpu_custom_call.1} parent=1 // pred_fallthru
      _
    %3412 = vsyncpa [#allocation3], 1
    %3413 = vsyncpa [#allocation6], 1
    %3414 = vsyncpa [#allocation4], 1

</llo_original>
